<compile_context>
chip_gen: v7x
topology: tpu7x:2x2x1
jax: 0.10.0
libtpu: 0.0.40
codegen_flags: <defaults>
</compile_context>

<pallas_src>
import functools

import jax
import jax.numpy as jnp
from jax.experimental import pallas as pl
from jax.experimental.pallas import tpu as pltpu


def attention_kernel(x_ref, wqkv_ref, wout_ref, bout_ref, o_ref, ctx_ref,
                     *, heads, dim_head, scale):
    bt, n, dim = x_ref.shape
    inner = heads * dim_head
    mxu_dt = wqkv_ref.dtype              # bf16 operands, f32 accumulation
    rows = bt * n

    # Cast activations in-kernel (no wrapper-side HBM pass).  The leading-dim
    # reshape (bt, n, dim) -> (bt*n, dim) is layout-free.
    x = x_ref[...].reshape(rows, dim).astype(mxu_dt)

    # Fused QKV projection: one lane-dense (rows, 3*inner) MXU matmul, f32 acc.
    qkv = jnp.dot(x, wqkv_ref[...], preferred_element_type=jnp.float32)

    # Process heads in pairs when 2*dim_head fills 128 lanes so every ctx store
    # into the scratch is a full-vreg, unmasked store.
    pair = 2 if (heads % 2 == 0 and (2 * dim_head) % 128 == 0) else 1

    # TODO(synk): for N >> 512 switch to a flash-style query-tile grid axis
    # (online softmax, K/V resident per head); the (N, N) f32 scores would
    # otherwise dominate VMEM, first on v7x (64 MiB).
    for e in range(bt):
        r0 = e * n
        qkv_e = qkv[r0:r0 + n]                                    # (n, 3*inner) f32
        for g in range(heads // pair):
            parts = []
            for p in range(pair):
                h = g * pair + p
                lo = h * dim_head
                # Fold the softmax scale into q at cast time (fuses into an
                # existing cast; avoids an (n, n) f32 scaled temporary).
                q_h = (qkv_e[:, lo:lo + dim_head] * scale).astype(mxu_dt)
                k_h = qkv_e[:, inner + lo:inner + lo + dim_head].astype(mxu_dt)
                v_h = qkv_e[:, 2 * inner + lo:2 * inner + lo + dim_head].astype(mxu_dt)

                # scores: q @ k^T without materializing a transpose.
                dots = jax.lax.dot_general(
                    q_h, k_h, (((1,), (1,)), ((), ())),
                    preferred_element_type=jnp.float32)           # (n, n) f32

                # TODO(synk): mask path (F.pad(mask) + masked_fill) not
                # implemented; this kernel covers the mask=None forward only.

                # Numerically-stable softmax in f32 (VPU max/sub, EUP exp +
                # approx reciprocal; ~1e-3 rel err, within demo tolerance).
                dots = dots - jnp.max(dots, axis=-1, keepdims=True)
                pexp = jnp.exp(dots)
                attn = pexp * pl.reciprocal(
                    jnp.sum(pexp, axis=-1, keepdims=True), approx=True)

                parts.append(jnp.dot(attn.astype(mxu_dt), v_h,
                                     preferred_element_type=jnp.float32))

            ctx_blk = parts[0] if pair == 1 else jnp.concatenate(parts, axis=-1)
            col0 = g * pair * dim_head
            # Retire this head group NOW: bf16 store into the VMEM scratch at a
            # 128-lane-aligned offset.  No lingering per-head f32 list, no
            # 8-way concat before the out-projection.
            ctx_ref[r0:r0 + n, col0:col0 + pair * dim_head] = \
                ctx_blk.astype(ctx_ref.dtype)

    # Output projection: single fused K=inner MXU matmul over the whole block
    # (do NOT split per head), bias add in f32.  Dropout(p=0.0) == identity.
    out = jnp.dot(ctx_ref[...], wout_ref[...],
                  preferred_element_type=jnp.float32) + bout_ref[...]
    o_ref[...] = out.reshape(bt, n, dim).astype(o_ref.dtype)


def _resident_spec(shape):
    """Whole-array block with a constant index_map: fetched once, never
    re-DMA'd across grid steps.  Single-buffered (pl.Buffered(1)) because the
    second pipeline buffer is dead for a constant block — halves weight VMEM,
    which matters once dim/inner grow on v7x's 64 MiB VMEM."""
    index_map = lambda *_: (0,) * len(shape)
    try:
        return pl.BlockSpec(shape, index_map, pipeline_mode=pl.Buffered(1))
    except TypeError:   # pipeline_mode unavailable: default double-buffering is fine here
        return pl.BlockSpec(shape, index_map)


def attention_forward(x, w_qkv, w_out, b_out, *, heads, dim_head,
                      block_b=None, mxu_dtype=jnp.bfloat16, out_dtype=None):
    """x: (B, N, dim).  Weights in (in, out) layout (== torch W^T), ideally
    already cast to `mxu_dtype` at parameter-load time (a per-call cast would
    add a full extra HBM pass).  Returns (B, N, dim) in `out_dtype`
    (default: x.dtype; pass bf16 to halve the output writeback if the
    downstream layer accepts it)."""
    B, N, dim = x.shape
    inner = heads * dim_head
    assert w_qkv.shape == (dim, 3 * inner)
    assert w_out.shape == (inner, dim)
    scale = dim ** (-0.5)                 # matches module: self.scale = dim ** -0.5

    # Weights/bias: no per-call cast when the caller already provides mxu_dtype.
    if w_qkv.dtype != mxu_dtype:
        w_qkv = w_qkv.astype(mxu_dtype)   # prefer pre-casting at load time
    if w_out.dtype != mxu_dtype:
        w_out = w_out.astype(mxu_dtype)
    b_out = jnp.asarray(b_out, jnp.float32).reshape(1, dim)

    if out_dtype is None:
        out_dtype = x.dtype

    if block_b is None:
        # Amortize per-step overhead (~0.35us) while keeping >= 2 grid steps so
        # both v7x TensorCores get work (batch axis marked "parallel").
        block_b = 1
        for cand in (8, 4, 2):
            if B % cand == 0 and B // cand >= 2:
                block_b = cand
                break
    assert B % block_b == 0, "block_b must divide the batch size"

    kernel = functools.partial(attention_kernel,
                               heads=heads, dim_head=dim_head, scale=scale)

    return pl.pallas_call(
        kernel,
        out_shape=jax.ShapeDtypeStruct((B, N, dim), out_dtype),
        grid=(B // block_b,),
        in_specs=[
            # activations: block_b batch elements per grid step
            pl.BlockSpec((block_b, N, dim), lambda b: (b, 0, 0)),
            # weights / bias: full arrays, constant index_map, single-buffered
            _resident_spec((dim, 3 * inner)),
            _resident_spec((inner, dim)),
            _resident_spec((1, dim)),
        ],
        out_specs=pl.BlockSpec((block_b, N, dim), lambda b: (b, 0, 0)),
        scratch_shapes=[pltpu.VMEM((block_b * N, inner), jnp.bfloat16)],
        compiler_params=pltpu.CompilerParams(
            dimension_semantics=("parallel",)),
    )(x, w_qkv, w_out, b_out)


def reference_forward(x, w_qkv, w_out, b_out, *, heads, dim_head):
    B, N, dim = x.shape
    inner = heads * dim_head
    scale = dim ** (-0.5)
    qkv = x @ w_qkv
    q, k, v = jnp.split(qkv, 3, axis=-1)
    to_h = lambda t: jnp.transpose(t.reshape(B, N, heads, dim_head), (0, 2, 1, 3))
    q, k, v = map(to_h, (q, k, v))
    dots = jnp.einsum('bhid,bhjd->bhij', q, k) * scale
    attn = jax.nn.softmax(dots, axis=-1)
    out = jnp.einsum('bhij,bhjd->bhid', attn, v)
    out = jnp.transpose(out, (0, 2, 1, 3)).reshape(B, N, inner)
    return out @ w_out + b_out


if __name__ == "__main__":
    # Small, deterministic shapes; dim=128 keeps the output lane-dense and
    # N=128 fills the MXU rows.  heads/dim_head are the module defaults.
    B, N, dim = 2, 128, 128
    heads, dim_head = 8, 64
    inner = heads * dim_head

    key = jax.random.PRNGKey(0)
    kx, kq, ko, kb = jax.random.split(key, 4)

    x = jax.random.normal(kx, (B, N, dim), dtype=jnp.float32)
    lim_qkv = 1.0 / (dim ** 0.5)
    lim_out = 1.0 / (inner ** 0.5)
    w_qkv = jax.random.uniform(kq, (dim, 3 * inner), jnp.float32, -lim_qkv, lim_qkv)
    w_out = jax.random.uniform(ko, (inner, dim), jnp.float32, -lim_out, lim_out)
    b_out = jax.random.uniform(kb, (1, dim), jnp.float32, -lim_out, lim_out)

    # Cast MXU weights ONCE at "parameter-load time" (not per forward call).
    w_qkv_bf16 = w_qkv.astype(jnp.bfloat16)
    w_out_bf16 = w_out.astype(jnp.bfloat16)

    out = attention_forward(x, w_qkv_bf16, w_out_bf16, b_out,
                            heads=heads, dim_head=dim_head)
    out = jax.block_until_ready(out)

    ref = reference_forward(x, w_qkv, w_out, b_out, heads=heads, dim_head=dim_head)
    assert out.shape == (B, N, dim)
    max_err = float(jnp.max(jnp.abs(out - ref)))
    # bf16 MXU operands / f32 accumulation vs pure-f32 reference -> ~1e-2 deviation.
    assert jnp.allclose(out, ref, atol=3e-2, rtol=3e-2), \
        f"mismatch vs pure-JAX reference (max|diff|={max_err})"

    print("KERNEL_OK")
</pallas_src>

<mosaic_0001>
module attributes {stable_mosaic.version = 11 : i64} {
  func.func @attention_kernel(%arg0: i32, %arg1: memref<1x128x128xf32, #tpu.memory_space<vmem>>, %arg2: memref<128x1536xbf16, #tpu.memory_space<vmem>>, %arg3: memref<512x128xbf16, #tpu.memory_space<vmem>>, %arg4: memref<1x128xf32, #tpu.memory_space<vmem>>, %arg5: memref<1x128x128xf32, #tpu.memory_space<vmem>>, %arg6: memref<128x512xbf16, #tpu.memory_space<vmem>>) attributes {dimension_semantics = [#tpu.dimension_semantics<parallel>], iteration_bounds = array<i64: 2>, scalar_prefetch = 0 : i64, scratch_operands = 1 : i64, tpu.core_type = #tpu.core_type<tc>, window_params = [{transform_indices = @transform_0, window_bounds = array<i64: 1, 128, 128>}, {pipeline_mode = #tpu.pipeline_mode<synchronous>, transform_indices = @transform_1, window_bounds = array<i64: 128, 1536>}, {pipeline_mode = #tpu.pipeline_mode<synchronous>, transform_indices = @transform_2, window_bounds = array<i64: 512, 128>}, {pipeline_mode = #tpu.pipeline_mode<synchronous>, transform_indices = @transform_3, window_bounds = array<i64: 1, 128>}, {transform_indices = @transform_4, window_bounds = array<i64: 1, 128, 128>}]} {
    %c0 = arith.constant 0 : index
    %c0_0 = arith.constant 0 : index
    %c0_1 = arith.constant 0 : index
    %0 = vector.load %arg1[%c0, %c0_0, %c0_1] : memref<1x128x128xf32, #tpu.memory_space<vmem>>, vector<1x128x128xf32>
    %1 = vector.shape_cast %0 : vector<1x128x128xf32> to vector<128x128xf32>
    %2 = arith.truncf %1 : vector<128x128xf32> to vector<128x128xbf16>
    %c0_2 = arith.constant 0 : index
    %c0_3 = arith.constant 0 : index
    %3 = vector.load %arg2[%c0_2, %c0_3] : memref<128x1536xbf16, #tpu.memory_space<vmem>>, vector<128x1536xbf16>
    %cst = arith.constant dense<0.000000e+00> : vector<128x1536xf32>
    %4 = tpu.matmul %2, %3, %cst {dimension_numbers = #tpu.dot_dimension_numbers<[1], [0], [0], [1], [0, 0, 1, 1], [], []>} : vector<128x128xbf16>, vector<128x1536xbf16>, vector<128x1536xf32> -> vector<128x1536xf32>
    %5 = vector.extract_strided_slice %4 {offsets = [0, 0], sizes = [128, 64], strides = [1, 1]} : vector<128x1536xf32> to vector<128x64xf32>
    %cst_4 = arith.constant 0.0883883461 : f32
    %6 = vector.broadcast %cst_4 : f32 to vector<128x64xf32>
    %7 = arith.mulf %5, %6 : vector<128x64xf32>
    %8 = arith.truncf %7 : vector<128x64xf32> to vector<128x64xbf16>
    %9 = vector.extract_strided_slice %4 {offsets = [0, 512], sizes = [128, 64], strides = [1, 1]} : vector<128x1536xf32> to vector<128x64xf32>
    %10 = arith.truncf %9 : vector<128x64xf32> to vector<128x64xbf16>
    %11 = vector.extract_strided_slice %4 {offsets = [0, 1024], sizes = [128, 64], strides = [1, 1]} : vector<128x1536xf32> to vector<128x64xf32>
    %12 = arith.truncf %11 : vector<128x64xf32> to vector<128x64xbf16>
    %cst_5 = arith.constant dense<0.000000e+00> : vector<128x128xf32>
    %13 = tpu.matmul %8, %10, %cst_5 {dimension_numbers = #tpu.dot_dimension_numbers<[1], [1], [0], [0], [0, 0, 1, 0], [], []>} : vector<128x64xbf16>, vector<128x64xbf16>, vector<128x128xf32> -> vector<128x128xf32>
    %cst_6 = arith.constant dense<0xFF800000> : vector<128xf32>
    %14 = vector.multi_reduction <maximumf>, %13, %cst_6 [1] : vector<128x128xf32> to vector<128xf32>
    %15 = vector.shape_cast %14 : vector<128xf32> to vector<128x1xf32>
    %16 = vector.broadcast %15 : vector<128x1xf32> to vector<128x128xf32>
    %17 = arith.subf %13, %16 : vector<128x128xf32>
    %18 = math.exp %17 : vector<128x128xf32>
    %cst_7 = arith.constant dense<0.000000e+00> : vector<128xf32>
    %19 = vector.multi_reduction <add>, %18, %cst_7 [1] : vector<128x128xf32> to vector<128xf32>
    %20 = vector.shape_cast %19 : vector<128xf32> to vector<128x1xf32>
    %21 = tpu.reciprocal %20 {approx = true} : vector<128x1xf32> -> vector<128x1xf32>
    %22 = vector.broadcast %21 : vector<128x1xf32> to vector<128x128xf32>
    %23 = arith.mulf %18, %22 : vector<128x128xf32>
    %24 = arith.truncf %23 : vector<128x128xf32> to vector<128x128xbf16>
    %cst_8 = arith.constant dense<0.000000e+00> : vector<128x64xf32>
    %25 = tpu.matmul %24, %12, %cst_8 {dimension_numbers = #tpu.dot_dimension_numbers<[1], [0], [0], [1], [0, 0, 1, 1], [], []>} : vector<128x128xbf16>, vector<128x64xbf16>, vector<128x64xf32> -> vector<128x64xf32>
    %26 = vector.extract_strided_slice %4 {offsets = [0, 64], sizes = [128, 64], strides = [1, 1]} : vector<128x1536xf32> to vector<128x64xf32>
    %cst_9 = arith.constant 0.0883883461 : f32
    %27 = vector.broadcast %cst_9 : f32 to vector<128x64xf32>
    %28 = arith.mulf %26, %27 : vector<128x64xf32>
    %29 = arith.truncf %28 : vector<128x64xf32> to vector<128x64xbf16>
    %30 = vector.extract_strided_slice %4 {offsets = [0, 576], sizes = [128, 64], strides = [1, 1]} : vector<128x1536xf32> to vector<128x64xf32>
    %31 = arith.truncf %30 : vector<128x64xf32> to vector<128x64xbf16>
    %32 = vector.extract_strided_slice %4 {offsets = [0, 1088], sizes = [128, 64], strides = [1, 1]} : vector<128x1536xf32> to vector<128x64xf32>
    %33 = arith.truncf %32 : vector<128x64xf32> to vector<128x64xbf16>
    %cst_10 = arith.constant dense<0.000000e+00> : vector<128x128xf32>
    %34 = tpu.matmul %29, %31, %cst_10 {dimension_numbers = #tpu.dot_dimension_numbers<[1], [1], [0], [0], [0, 0, 1, 0], [], []>} : vector<128x64xbf16>, vector<128x64xbf16>, vector<128x128xf32> -> vector<128x128xf32>
    %cst_11 = arith.constant dense<0xFF800000> : vector<128xf32>
    %35 = vector.multi_reduction <maximumf>, %34, %cst_11 [1] : vector<128x128xf32> to vector<128xf32>
    %36 = vector.shape_cast %35 : vector<128xf32> to vector<128x1xf32>
    %37 = vector.broadcast %36 : vector<128x1xf32> to vector<128x128xf32>
    %38 = arith.subf %34, %37 : vector<128x128xf32>
    %39 = math.exp %38 : vector<128x128xf32>
    %cst_12 = arith.constant dense<0.000000e+00> : vector<128xf32>
    %40 = vector.multi_reduction <add>, %39, %cst_12 [1] : vector<128x128xf32> to vector<128xf32>
    %41 = vector.shape_cast %40 : vector<128xf32> to vector<128x1xf32>
    %42 = tpu.reciprocal %41 {approx = true} : vector<128x1xf32> -> vector<128x1xf32>
    %43 = vector.broadcast %42 : vector<128x1xf32> to vector<128x128xf32>
    %44 = arith.mulf %39, %43 : vector<128x128xf32>
    %45 = arith.truncf %44 : vector<128x128xf32> to vector<128x128xbf16>
    %cst_13 = arith.constant dense<0.000000e+00> : vector<128x64xf32>
    %46 = tpu.matmul %45, %33, %cst_13 {dimension_numbers = #tpu.dot_dimension_numbers<[1], [0], [0], [1], [0, 0, 1, 1], [], []>} : vector<128x128xbf16>, vector<128x64xbf16>, vector<128x64xf32> -> vector<128x64xf32>
    %47 = tpu.concatenate %25, %46 in 1 : vector<128x64xf32>, vector<128x64xf32> -> vector<128x128xf32>
    %48 = arith.truncf %47 : vector<128x128xf32> to vector<128x128xbf16>
    %c0_14 = arith.constant 0 : index
    %c0_15 = arith.constant 0 : index
    %49 = vector.load %arg6[%c0_14, %c0_15] : memref<128x512xbf16, #tpu.memory_space<vmem>>, vector<128x128xbf16>
    tpu.vector_store %arg6[%c0_14, %c0_15], %48 {strides = array<i32>} : memref<128x512xbf16, #tpu.memory_space<vmem>>, vector<128x128xbf16>,
    %50 = vector.extract_strided_slice %4 {offsets = [0, 128], sizes = [128, 64], strides = [1, 1]} : vector<128x1536xf32> to vector<128x64xf32>
    %cst_16 = arith.constant 0.0883883461 : f32
    %51 = vector.broadcast %cst_16 : f32 to vector<128x64xf32>
    %52 = arith.mulf %50, %51 : vector<128x64xf32>
    %53 = arith.truncf %52 : vector<128x64xf32> to vector<128x64xbf16>
    %54 = vector.extract_strided_slice %4 {offsets = [0, 640], sizes = [128, 64], strides = [1, 1]} : vector<128x1536xf32> to vector<128x64xf32>
    %55 = arith.truncf %54 : vector<128x64xf32> to vector<128x64xbf16>
    %56 = vector.extract_strided_slice %4 {offsets = [0, 1152], sizes = [128, 64], strides = [1, 1]} : vector<128x1536xf32> to vector<128x64xf32>
    %57 = arith.truncf %56 : vector<128x64xf32> to vector<128x64xbf16>
    %cst_17 = arith.constant dense<0.000000e+00> : vector<128x128xf32>
    %58 = tpu.matmul %53, %55, %cst_17 {dimension_numbers = #tpu.dot_dimension_numbers<[1], [1], [0], [0], [0, 0, 1, 0], [], []>} : vector<128x64xbf16>, vector<128x64xbf16>, vector<128x128xf32> -> vector<128x128xf32>
    %cst_18 = arith.constant dense<0xFF800000> : vector<128xf32>
    %59 = vector.multi_reduction <maximumf>, %58, %cst_18 [1] : vector<128x128xf32> to vector<128xf32>
    %60 = vector.shape_cast %59 : vector<128xf32> to vector<128x1xf32>
    %61 = vector.broadcast %60 : vector<128x1xf32> to vector<128x128xf32>
    %62 = arith.subf %58, %61 : vector<128x128xf32>
    %63 = math.exp %62 : vector<128x128xf32>
    %cst_19 = arith.constant dense<0.000000e+00> : vector<128xf32>
    %64 = vector.multi_reduction <add>, %63, %cst_19 [1] : vector<128x128xf32> to vector<128xf32>
    %65 = vector.shape_cast %64 : vector<128xf32> to vector<128x1xf32>
    %66 = tpu.reciprocal %65 {approx = true} : vector<128x1xf32> -> vector<128x1xf32>
    %67 = vector.broadcast %66 : vector<128x1xf32> to vector<128x128xf32>
    %68 = arith.mulf %63, %67 : vector<128x128xf32>
    %69 = arith.truncf %68 : vector<128x128xf32> to vector<128x128xbf16>
    %cst_20 = arith.constant dense<0.000000e+00> : vector<128x64xf32>
    %70 = tpu.matmul %69, %57, %cst_20 {dimension_numbers = #tpu.dot_dimension_numbers<[1], [0], [0], [1], [0, 0, 1, 1], [], []>} : vector<128x128xbf16>, vector<128x64xbf16>, vector<128x64xf32> -> vector<128x64xf32>
    %71 = vector.extract_strided_slice %4 {offsets = [0, 192], sizes = [128, 64], strides = [1, 1]} : vector<128x1536xf32> to vector<128x64xf32>
    %cst_21 = arith.constant 0.0883883461 : f32
    %72 = vector.broadcast %cst_21 : f32 to vector<128x64xf32>
    %73 = arith.mulf %71, %72 : vector<128x64xf32>
    %74 = arith.truncf %73 : vector<128x64xf32> to vector<128x64xbf16>
    %75 = vector.extract_strided_slice %4 {offsets = [0, 704], sizes = [128, 64], strides = [1, 1]} : vector<128x1536xf32> to vector<128x64xf32>
    %76 = arith.truncf %75 : vector<128x64xf32> to vector<128x64xbf16>
    %77 = vector.extract_strided_slice %4 {offsets = [0, 1216], sizes = [128, 64], strides = [1, 1]} : vector<128x1536xf32> to vector<128x64xf32>
    %78 = arith.truncf %77 : vector<128x64xf32> to vector<128x64xbf16>
    %cst_22 = arith.constant dense<0.000000e+00> : vector<128x128xf32>
    %79 = tpu.matmul %74, %76, %cst_22 {dimension_numbers = #tpu.dot_dimension_numbers<[1], [1], [0], [0], [0, 0, 1, 0], [], []>} : vector<128x64xbf16>, vector<128x64xbf16>, vector<128x128xf32> -> vector<128x128xf32>
    %cst_23 = arith.constant dense<0xFF800000> : vector<128xf32>
    %80 = vector.multi_reduction <maximumf>, %79, %cst_23 [1] : vector<128x128xf32> to vector<128xf32>
    %81 = vector.shape_cast %80 : vector<128xf32> to vector<128x1xf32>
    %82 = vector.broadcast %81 : vector<128x1xf32> to vector<128x128xf32>
    %83 = arith.subf %79, %82 : vector<128x128xf32>
    %84 = math.exp %83 : vector<128x128xf32>
    %cst_24 = arith.constant dense<0.000000e+00> : vector<128xf32>
    %85 = vector.multi_reduction <add>, %84, %cst_24 [1] : vector<128x128xf32> to vector<128xf32>
    %86 = vector.shape_cast %85 : vector<128xf32> to vector<128x1xf32>
    %87 = tpu.reciprocal %86 {approx = true} : vector<128x1xf32> -> vector<128x1xf32>
    %88 = vector.broadcast %87 : vector<128x1xf32> to vector<128x128xf32>
    %89 = arith.mulf %84, %88 : vector<128x128xf32>
    %90 = arith.truncf %89 : vector<128x128xf32> to vector<128x128xbf16>
    %cst_25 = arith.constant dense<0.000000e+00> : vector<128x64xf32>
    %91 = tpu.matmul %90, %78, %cst_25 {dimension_numbers = #tpu.dot_dimension_numbers<[1], [0], [0], [1], [0, 0, 1, 1], [], []>} : vector<128x128xbf16>, vector<128x64xbf16>, vector<128x64xf32> -> vector<128x64xf32>
    %92 = tpu.concatenate %70, %91 in 1 : vector<128x64xf32>, vector<128x64xf32> -> vector<128x128xf32>
    %93 = arith.truncf %92 : vector<128x128xf32> to vector<128x128xbf16>
    %c0_26 = arith.constant 0 : index
    %c128 = arith.constant 128 : index
    %94 = vector.load %arg6[%c0_26, %c128] : memref<128x512xbf16, #tpu.memory_space<vmem>>, vector<128x128xbf16>
    tpu.vector_store %arg6[%c0_26, %c128], %93 {strides = array<i32>} : memref<128x512xbf16, #tpu.memory_space<vmem>>, vector<128x128xbf16>,
    %95 = vector.extract_strided_slice %4 {offsets = [0, 256], sizes = [128, 64], strides = [1, 1]} : vector<128x1536xf32> to vector<128x64xf32>
    %cst_27 = arith.constant 0.0883883461 : f32
    %96 = vector.broadcast %cst_27 : f32 to vector<128x64xf32>
    %97 = arith.mulf %95, %96 : vector<128x64xf32>
    %98 = arith.truncf %97 : vector<128x64xf32> to vector<128x64xbf16>
    %99 = vector.extract_strided_slice %4 {offsets = [0, 768], sizes = [128, 64], strides = [1, 1]} : vector<128x1536xf32> to vector<128x64xf32>
    %100 = arith.truncf %99 : vector<128x64xf32> to vector<128x64xbf16>
    %101 = vector.extract_strided_slice %4 {offsets = [0, 1280], sizes = [128, 64], strides = [1, 1]} : vector<128x1536xf32> to vector<128x64xf32>
    %102 = arith.truncf %101 : vector<128x64xf32> to vector<128x64xbf16>
    %cst_28 = arith.constant dense<0.000000e+00> : vector<128x128xf32>
    %103 = tpu.matmul %98, %100, %cst_28 {dimension_numbers = #tpu.dot_dimension_numbers<[1], [1], [0], [0], [0, 0, 1, 0], [], []>} : vector<128x64xbf16>, vector<128x64xbf16>, vector<128x128xf32> -> vector<128x128xf32>
    %cst_29 = arith.constant dense<0xFF800000> : vector<128xf32>
    %104 = vector.multi_reduction <maximumf>, %103, %cst_29 [1] : vector<128x128xf32> to vector<128xf32>
    %105 = vector.shape_cast %104 : vector<128xf32> to vector<128x1xf32>
    %106 = vector.broadcast %105 : vector<128x1xf32> to vector<128x128xf32>
    %107 = arith.subf %103, %106 : vector<128x128xf32>
    %108 = math.exp %107 : vector<128x128xf32>
    %cst_30 = arith.constant dense<0.000000e+00> : vector<128xf32>
    %109 = vector.multi_reduction <add>, %108, %cst_30 [1] : vector<128x128xf32> to vector<128xf32>
    %110 = vector.shape_cast %109 : vector<128xf32> to vector<128x1xf32>
    %111 = tpu.reciprocal %110 {approx = true} : vector<128x1xf32> -> vector<128x1xf32>
    %112 = vector.broadcast %111 : vector<128x1xf32> to vector<128x128xf32>
    %113 = arith.mulf %108, %112 : vector<128x128xf32>
    %114 = arith.truncf %113 : vector<128x128xf32> to vector<128x128xbf16>
    %cst_31 = arith.constant dense<0.000000e+00> : vector<128x64xf32>
    %115 = tpu.matmul %114, %102, %cst_31 {dimension_numbers = #tpu.dot_dimension_numbers<[1], [0], [0], [1], [0, 0, 1, 1], [], []>} : vector<128x128xbf16>, vector<128x64xbf16>, vector<128x64xf32> -> vector<128x64xf32>
    %116 = vector.extract_strided_slice %4 {offsets = [0, 320], sizes = [128, 64], strides = [1, 1]} : vector<128x1536xf32> to vector<128x64xf32>
    %cst_32 = arith.constant 0.0883883461 : f32
    %117 = vector.broadcast %cst_32 : f32 to vector<128x64xf32>
    %118 = arith.mulf %116, %117 : vector<128x64xf32>
    %119 = arith.truncf %118 : vector<128x64xf32> to vector<128x64xbf16>
    %120 = vector.extract_strided_slice %4 {offsets = [0, 832], sizes = [128, 64], strides = [1, 1]} : vector<128x1536xf32> to vector<128x64xf32>
    %121 = arith.truncf %120 : vector<128x64xf32> to vector<128x64xbf16>
    %122 = vector.extract_strided_slice %4 {offsets = [0, 1344], sizes = [128, 64], strides = [1, 1]} : vector<128x1536xf32> to vector<128x64xf32>
    %123 = arith.truncf %122 : vector<128x64xf32> to vector<128x64xbf16>
    %cst_33 = arith.constant dense<0.000000e+00> : vector<128x128xf32>
    %124 = tpu.matmul %119, %121, %cst_33 {dimension_numbers = #tpu.dot_dimension_numbers<[1], [1], [0], [0], [0, 0, 1, 0], [], []>} : vector<128x64xbf16>, vector<128x64xbf16>, vector<128x128xf32> -> vector<128x128xf32>
    %cst_34 = arith.constant dense<0xFF800000> : vector<128xf32>
    %125 = vector.multi_reduction <maximumf>, %124, %cst_34 [1] : vector<128x128xf32> to vector<128xf32>
    %126 = vector.shape_cast %125 : vector<128xf32> to vector<128x1xf32>
    %127 = vector.broadcast %126 : vector<128x1xf32> to vector<128x128xf32>
    %128 = arith.subf %124, %127 : vector<128x128xf32>
    %129 = math.exp %128 : vector<128x128xf32>
    %cst_35 = arith.constant dense<0.000000e+00> : vector<128xf32>
    %130 = vector.multi_reduction <add>, %129, %cst_35 [1] : vector<128x128xf32> to vector<128xf32>
    %131 = vector.shape_cast %130 : vector<128xf32> to vector<128x1xf32>
    %132 = tpu.reciprocal %131 {approx = true} : vector<128x1xf32> -> vector<128x1xf32>
    %133 = vector.broadcast %132 : vector<128x1xf32> to vector<128x128xf32>
    %134 = arith.mulf %129, %133 : vector<128x128xf32>
    %135 = arith.truncf %134 : vector<128x128xf32> to vector<128x128xbf16>
    %cst_36 = arith.constant dense<0.000000e+00> : vector<128x64xf32>
    %136 = tpu.matmul %135, %123, %cst_36 {dimension_numbers = #tpu.dot_dimension_numbers<[1], [0], [0], [1], [0, 0, 1, 1], [], []>} : vector<128x128xbf16>, vector<128x64xbf16>, vector<128x64xf32> -> vector<128x64xf32>
    %137 = tpu.concatenate %115, %136 in 1 : vector<128x64xf32>, vector<128x64xf32> -> vector<128x128xf32>
    %138 = arith.truncf %137 : vector<128x128xf32> to vector<128x128xbf16>
    %c0_37 = arith.constant 0 : index
    %c256 = arith.constant 256 : index
    %139 = vector.load %arg6[%c0_37, %c256] : memref<128x512xbf16, #tpu.memory_space<vmem>>, vector<128x128xbf16>
    tpu.vector_store %arg6[%c0_37, %c256], %138 {strides = array<i32>} : memref<128x512xbf16, #tpu.memory_space<vmem>>, vector<128x128xbf16>,
    %140 = vector.extract_strided_slice %4 {offsets = [0, 384], sizes = [128, 64], strides = [1, 1]} : vector<128x1536xf32> to vector<128x64xf32>
    %cst_38 = arith.constant 0.0883883461 : f32
    %141 = vector.broadcast %cst_38 : f32 to vector<128x64xf32>
    %142 = arith.mulf %140, %141 : vector<128x64xf32>
    %143 = arith.truncf %142 : vector<128x64xf32> to vector<128x64xbf16>
    %144 = vector.extract_strided_slice %4 {offsets = [0, 896], sizes = [128, 64], strides = [1, 1]} : vector<128x1536xf32> to vector<128x64xf32>
    %145 = arith.truncf %144 : vector<128x64xf32> to vector<128x64xbf16>
    %146 = vector.extract_strided_slice %4 {offsets = [0, 1408], sizes = [128, 64], strides = [1, 1]} : vector<128x1536xf32> to vector<128x64xf32>
    %147 = arith.truncf %146 : vector<128x64xf32> to vector<128x64xbf16>
    %cst_39 = arith.constant dense<0.000000e+00> : vector<128x128xf32>
    %148 = tpu.matmul %143, %145, %cst_39 {dimension_numbers = #tpu.dot_dimension_numbers<[1], [1], [0], [0], [0, 0, 1, 0], [], []>} : vector<128x64xbf16>, vector<128x64xbf16>, vector<128x128xf32> -> vector<128x128xf32>
    %cst_40 = arith.constant dense<0xFF800000> : vector<128xf32>
    %149 = vector.multi_reduction <maximumf>, %148, %cst_40 [1] : vector<128x128xf32> to vector<128xf32>
    %150 = vector.shape_cast %149 : vector<128xf32> to vector<128x1xf32>
    %151 = vector.broadcast %150 : vector<128x1xf32> to vector<128x128xf32>
    %152 = arith.subf %148, %151 : vector<128x128xf32>
    %153 = math.exp %152 : vector<128x128xf32>
    %cst_41 = arith.constant dense<0.000000e+00> : vector<128xf32>
    %154 = vector.multi_reduction <add>, %153, %cst_41 [1] : vector<128x128xf32> to vector<128xf32>
    %155 = vector.shape_cast %154 : vector<128xf32> to vector<128x1xf32>
    %156 = tpu.reciprocal %155 {approx = true} : vector<128x1xf32> -> vector<128x1xf32>
    %157 = vector.broadcast %156 : vector<128x1xf32> to vector<128x128xf32>
    %158 = arith.mulf %153, %157 : vector<128x128xf32>
    %159 = arith.truncf %158 : vector<128x128xf32> to vector<128x128xbf16>
    %cst_42 = arith.constant dense<0.000000e+00> : vector<128x64xf32>
    %160 = tpu.matmul %159, %147, %cst_42 {dimension_numbers = #tpu.dot_dimension_numbers<[1], [0], [0], [1], [0, 0, 1, 1], [], []>} : vector<128x128xbf16>, vector<128x64xbf16>, vector<128x64xf32> -> vector<128x64xf32>
    %161 = vector.extract_strided_slice %4 {offsets = [0, 448], sizes = [128, 64], strides = [1, 1]} : vector<128x1536xf32> to vector<128x64xf32>
    %cst_43 = arith.constant 0.0883883461 : f32
    %162 = vector.broadcast %cst_43 : f32 to vector<128x64xf32>
    %163 = arith.mulf %161, %162 : vector<128x64xf32>
    %164 = arith.truncf %163 : vector<128x64xf32> to vector<128x64xbf16>
    %165 = vector.extract_strided_slice %4 {offsets = [0, 960], sizes = [128, 64], strides = [1, 1]} : vector<128x1536xf32> to vector<128x64xf32>
    %166 = arith.truncf %165 : vector<128x64xf32> to vector<128x64xbf16>
    %167 = vector.extract_strided_slice %4 {offsets = [0, 1472], sizes = [128, 64], strides = [1, 1]} : vector<128x1536xf32> to vector<128x64xf32>
    %168 = arith.truncf %167 : vector<128x64xf32> to vector<128x64xbf16>
    %cst_44 = arith.constant dense<0.000000e+00> : vector<128x128xf32>
    %169 = tpu.matmul %164, %166, %cst_44 {dimension_numbers = #tpu.dot_dimension_numbers<[1], [1], [0], [0], [0, 0, 1, 0], [], []>} : vector<128x64xbf16>, vector<128x64xbf16>, vector<128x128xf32> -> vector<128x128xf32>
    %cst_45 = arith.constant dense<0xFF800000> : vector<128xf32>
    %170 = vector.multi_reduction <maximumf>, %169, %cst_45 [1] : vector<128x128xf32> to vector<128xf32>
    %171 = vector.shape_cast %170 : vector<128xf32> to vector<128x1xf32>
    %172 = vector.broadcast %171 : vector<128x1xf32> to vector<128x128xf32>
    %173 = arith.subf %169, %172 : vector<128x128xf32>
    %174 = math.exp %173 : vector<128x128xf32>
    %cst_46 = arith.constant dense<0.000000e+00> : vector<128xf32>
    %175 = vector.multi_reduction <add>, %174, %cst_46 [1] : vector<128x128xf32> to vector<128xf32>
    %176 = vector.shape_cast %175 : vector<128xf32> to vector<128x1xf32>
    %177 = tpu.reciprocal %176 {approx = true} : vector<128x1xf32> -> vector<128x1xf32>
    %178 = vector.broadcast %177 : vector<128x1xf32> to vector<128x128xf32>
    %179 = arith.mulf %174, %178 : vector<128x128xf32>
    %180 = arith.truncf %179 : vector<128x128xf32> to vector<128x128xbf16>
    %cst_47 = arith.constant dense<0.000000e+00> : vector<128x64xf32>
    %181 = tpu.matmul %180, %168, %cst_47 {dimension_numbers = #tpu.dot_dimension_numbers<[1], [0], [0], [1], [0, 0, 1, 1], [], []>} : vector<128x128xbf16>, vector<128x64xbf16>, vector<128x64xf32> -> vector<128x64xf32>
    %182 = tpu.concatenate %160, %181 in 1 : vector<128x64xf32>, vector<128x64xf32> -> vector<128x128xf32>
    %183 = arith.truncf %182 : vector<128x128xf32> to vector<128x128xbf16>
    %c0_48 = arith.constant 0 : index
    %c384 = arith.constant 384 : index
    %184 = vector.load %arg6[%c0_48, %c384] : memref<128x512xbf16, #tpu.memory_space<vmem>>, vector<128x128xbf16>
    tpu.vector_store %arg6[%c0_48, %c384], %183 {strides = array<i32>} : memref<128x512xbf16, #tpu.memory_space<vmem>>, vector<128x128xbf16>,
    %c0_49 = arith.constant 0 : index
    %c0_50 = arith.constant 0 : index
    %185 = vector.load %arg6[%c0_49, %c0_50] : memref<128x512xbf16, #tpu.memory_space<vmem>>, vector<128x512xbf16>
    %c0_51 = arith.constant 0 : index
    %c0_52 = arith.constant 0 : index
    %186 = vector.load %arg3[%c0_51, %c0_52] : memref<512x128xbf16, #tpu.memory_space<vmem>>, vector<512x128xbf16>
    %cst_53 = arith.constant dense<0.000000e+00> : vector<128x128xf32>
    %187 = tpu.matmul %185, %186, %cst_53 {dimension_numbers = #tpu.dot_dimension_numbers<[1], [0], [0], [1], [0, 0, 1, 1], [], []>} : vector<128x512xbf16>, vector<512x128xbf16>, vector<128x128xf32> -> vector<128x128xf32>
    %c0_54 = arith.constant 0 : index
    %c0_55 = arith.constant 0 : index
    %188 = vector.load %arg4[%c0_54, %c0_55] : memref<1x128xf32, #tpu.memory_space<vmem>>, vector<1x128xf32>
    %189 = vector.broadcast %188 : vector<1x128xf32> to vector<128x128xf32>
    %190 = arith.addf %187, %189 : vector<128x128xf32>
    %191 = vector.shape_cast %190 : vector<128x128xf32> to vector<1x128x128xf32>
    %c0_56 = arith.constant 0 : index
    %c0_57 = arith.constant 0 : index
    %c0_58 = arith.constant 0 : index
    %192 = vector.load %arg5[%c0_56, %c0_57, %c0_58] : memref<1x128x128xf32, #tpu.memory_space<vmem>>, vector<1x128x128xf32>
    tpu.vector_store %arg5[%c0_56, %c0_57, %c0_58], %191 {strides = array<i32>} : memref<1x128x128xf32, #tpu.memory_space<vmem>>, vector<1x128x128xf32>,
    return
  }
  func.func @transform_0(%arg0: i32) -> (i32, i32, i32) {
    %c0_i32 = arith.constant 0 : i32
    %c0_i32_0 = arith.constant 0 : i32
    %c0_i32_1 = arith.constant 0 : i32
    return %arg0, %c0_i32, %c0_i32_0 : i32, i32, i32
  }
  func.func @transform_1(%arg0: i32) -> (i32, i32) {
    %c0_i32 = arith.constant 0 : i32
    %c0_i32_0 = arith.constant 0 : i32
    %c0_i32_1 = arith.constant 0 : i32
    return %c0_i32, %c0_i32_0 : i32, i32
  }
  func.func @transform_2(%arg0: i32) -> (i32, i32) {
    %c0_i32 = arith.constant 0 : i32
    %c0_i32_0 = arith.constant 0 : i32
    %c0_i32_1 = arith.constant 0 : i32
    return %c0_i32, %c0_i32_0 : i32, i32
  }
  func.func @transform_3(%arg0: i32) -> (i32, i32) {
    %c0_i32 = arith.constant 0 : i32
    %c0_i32_0 = arith.constant 0 : i32
    %c0_i32_1 = arith.constant 0 : i32
    return %c0_i32, %c0_i32_0 : i32, i32
  }
  func.func @transform_4(%arg0: i32) -> (i32, i32, i32) {
    %c0_i32 = arith.constant 0 : i32
    %c0_i32_0 = arith.constant 0 : i32
    %c0_i32_1 = arith.constant 0 : i32
    return %arg0, %c0_i32, %c0_i32_0 : i32, i32, i32
  }
}

</mosaic_0001>

<llo_original>
// kernel: tpu_custom_call.1
$region0: #{tpu_custom_call.1}
  #allocation0 [shape = 'u32[]', space=smem, size = 0x4, offset = 0x4, fixed_abs, tag = 'smem constant byte address 0x4 - core index']
  #allocation1 [shape = 'u32[144,128]{1,0:T(1,128)}', space=vmem, size = 0x12000, scoped, tag = 'internal scratch']
  #allocation2 [shape = 'bf16[128,512]{1,0:T(16,128)(2,1)}', space=vmem, size = 0x20000, scoped, tag = 'scratch operand']
  %s0 = inlined_call_operand.hbm [shape: f32[2,128,128], index: 0, kind: input, shape index: {}]
  %s1 = inlined_call_operand.hbm [shape: bf16[128,1536], index: 1, kind: input, shape index: {}]
  %s2 = inlined_call_operand.hbm [shape: bf16[512,128], index: 2, kind: input, shape index: {}]
  %s3 = inlined_call_operand.vmem [shape: f32[1,128], index: 3, kind: input, shape index: {}]
  %s4 = inlined_call_operand.hbm [shape: f32[2,128,128], index: 4, kind: output, shape index: {}]
  %s5 = sld [smem:[#allocation0]]
  $region61: #{tpu_custom_call.1} parent=0
    _
  %s7 = ssub.s32 1, %s5
  %s8 = scalar_select 0, %s7, %s5
  $region1: #{tpu_custom_call.1} parent=0
    #allocation3 [shape = 'u8[131072]{0}', space=vmem, size = 0x20000, scoped, tag = 'input window, operand 0']
    #allocation4 [shape = 's32[2]{0}', space=sflag, size = 0x8, scoped, tag = 'scoped memory for tpu_custom_call.1']
    #allocation5 [shape = 's32[2]{0}', space=sflag, size = 0x8, scoped, tag = 'scoped memory for tpu_custom_call.1']
    #allocation6 [shape = 'u8[393216]{0}', space=vmem, size = 0x60000, scoped, tag = 'input window, operand 1, single buffered']
    #allocation7 [shape = 's32[1]{0}', space=sflag, size = 0x4, scoped, tag = 'scoped memory for tpu_custom_call.1']
    #allocation8 [shape = 'u8[131072]{0}', space=vmem, size = 0x20000, scoped, tag = 'input window, operand 2, single buffered']
    #allocation9 [shape = 'u8[131072]{0}', space=vmem, size = 0x20000, scoped, tag = 'output window, operand 0']
    %9 = vsyncpa [#allocation4], 0
    %s10 = scalar_lea.sflag [#allocation4], 1
    %11 = vsyncpa %s10, 0
    %12 = vsyncpa [#allocation7], 0
    %13 = vsyncpa [#allocation5], 0
    %s14 = scalar_lea.sflag [#allocation5], 1
    %15 = vsyncpa %s14, 0
    loop: start=0, step=1, limit=4
    $region2: #{tpu_custom_call.1} parent=1 // loop_pre_header
      _
    $region3: #{tpu_custom_call.1} parent=1 // loop_header
      %s17 = sphi 0, %s21
      %p18 = scmp.ge.s32.totalorder %s17, 4
      %s27 = sphi 0, %s29
      %s30 = sphi 0, %s27
      %s31 = sphi 0, %s30
      %s47 = sphi 0, %s31
      %s51 = sphi 0, %s51
      %s53 = sphi 0, %s51
      %s54 = sphi 0, %s53
      %s68 = sphi 0, %s54
      %s72 = sphi 0, %s72
      %s74 = sphi 0, %s72
      %s75 = sphi 0, %s74
      %s89 = sphi 0, %s75
      %s93 = sphi 0, %s93
      %s95 = sphi 0, %s93
      %s96 = sphi 0, %s95
      %s110 = sphi 0, %s96
      %s116 = sphi 0, %s118
      %s119 = sphi 0, %s116
      %s120 = sphi 0, %s119
      %s136 = sphi 0, %s120
    $region4: #{tpu_custom_call.1} parent=1 // loop_header_branch
      %20 = sbr.rel (%p18) target = $region8
    $region5: #{tpu_custom_call.1} parent=1 // loop_body
      %s22 = ssub.s32 %s17, 1
      %s23 = ssub.s32 %s17, 2
      %s24 = sadd.s32 %s17, 1
      %s25 = ssub.s32 %s17, %s24
      %p26 = scmp.eq.s32.totalorder %s25, 0
      %s28 = sadd.s32 %s27, 1
      %s29 = scalar_select %p26, %s27, %s28
      %p32 = pneg %p26
      %p33 = scmp.eq.s32.totalorder %s17, 1
      %p34 = por %p32, %p33
      %p35 = scmp.ne.s32.totalorder %s27, %s30
      %p36 = scmp.eq.s32.totalorder %s17, 0
      %p37 = por %p35, %p36
      %p38 = scmp.ne.s32.totalorder %s27, %s30
      %p39 = scmp.eq.s32.totalorder %s22, 1
      %p40 = por %p38, %p39
      %p41 = scmp.ne.s32.totalorder %s30, %s31
      %p42 = scmp.eq.s32.totalorder %s22, 0
      %p43 = por %p41, %p42
      %p44 = scmp.ne.s32.totalorder %s30, %s31
      %p45 = scmp.eq.s32.totalorder %s23, 1
      %p46 = por %p44, %p45
      %p48 = scmp.ne.s32.totalorder %s31, %s47
      %p49 = scmp.eq.s32.totalorder %s23, 0
      %p50 = por %p48, %p49
      %s52 = sadd.s32 %s51, 1
      %p55 = scmp.eq.s32.totalorder %s17, 1
      %p56 = scmp.ne.s32.totalorder %s51, %s53
      %p57 = scmp.eq.s32.totalorder %s17, 0
      %p58 = por %p56, %p57
      %p59 = scmp.ne.s32.totalorder %s51, %s53
      %p60 = scmp.eq.s32.totalorder %s22, 1
      %p61 = por %p59, %p60
      %p62 = scmp.ne.s32.totalorder %s53, %s54
      %p63 = scmp.eq.s32.totalorder %s22, 0
      %p64 = por %p62, %p63
      %p65 = scmp.ne.s32.totalorder %s53, %s54
      %p66 = scmp.eq.s32.totalorder %s23, 1
      %p67 = por %p65, %p66
      %p69 = scmp.ne.s32.totalorder %s54, %s68
      %p70 = scmp.eq.s32.totalorder %s23, 0
      %p71 = por %p69, %p70
      %s73 = sadd.s32 %s72, 1
      %p76 = scmp.eq.s32.totalorder %s17, 1
      %p77 = scmp.ne.s32.totalorder %s72, %s74
      %p78 = scmp.eq.s32.totalorder %s17, 0
      %p79 = por %p77, %p78
      %p80 = scmp.ne.s32.totalorder %s72, %s74
      %p81 = scmp.eq.s32.totalorder %s22, 1
      %p82 = por %p80, %p81
      %p83 = scmp.ne.s32.totalorder %s74, %s75
      %p84 = scmp.eq.s32.totalorder %s22, 0
      %p85 = por %p83, %p84
      %p86 = scmp.ne.s32.totalorder %s74, %s75
      %p87 = scmp.eq.s32.totalorder %s23, 1
      %p88 = por %p86, %p87
      %p90 = scmp.ne.s32.totalorder %s75, %s89
      %p91 = scmp.eq.s32.totalorder %s23, 0
      %p92 = por %p90, %p91
      %s94 = sadd.s32 %s93, 1
      %p97 = scmp.eq.s32.totalorder %s17, 1
      %p98 = scmp.ne.s32.totalorder %s93, %s95
      %p99 = scmp.eq.s32.totalorder %s17, 0
      %p100 = por %p98, %p99
      %p101 = scmp.ne.s32.totalorder %s93, %s95
      %p102 = scmp.eq.s32.totalorder %s22, 1
      %p103 = por %p101, %p102
      %p104 = scmp.ne.s32.totalorder %s95, %s96
      %p105 = scmp.eq.s32.totalorder %s22, 0
      %p106 = por %p104, %p105
      %p107 = scmp.ne.s32.totalorder %s95, %s96
      %p108 = scmp.eq.s32.totalorder %s23, 1
      %p109 = por %p107, %p108
      %p111 = scmp.ne.s32.totalorder %s96, %s110
      %p112 = scmp.eq.s32.totalorder %s23, 0
      %p113 = por %p111, %p112
      %s114 = ssub.s32 %s17, %s24
      %p115 = scmp.eq.s32.totalorder %s114, 0
      %s117 = sadd.s32 %s116, 1
      %s118 = scalar_select %p115, %s116, %s117
      %p121 = pneg %p115
      %p122 = scmp.eq.s32.totalorder %s17, 1
      %p123 = por %p121, %p122
      %p124 = scmp.ne.s32.totalorder %s116, %s119
      %p125 = scmp.eq.s32.totalorder %s17, 0
      %p126 = por %p124, %p125
      %p127 = scmp.ne.s32.totalorder %s116, %s119
      %p128 = scmp.eq.s32.totalorder %s22, 1
      %p129 = por %p127, %p128
      %p130 = scmp.ne.s32.totalorder %s119, %s120
      %p131 = scmp.eq.s32.totalorder %s22, 0
      %p132 = por %p130, %p131
      %p133 = scmp.ne.s32.totalorder %s119, %s120
      %p134 = scmp.eq.s32.totalorder %s23, 1
      %p135 = por %p133, %p134
      %p137 = scmp.ne.s32.totalorder %s120, %s136
      %p138 = scmp.eq.s32.totalorder %s23, 0
      %p139 = por %p137, %p138
      %p140 = scmp.le.s32.totalorder 1, %s17
      %p141 = scmp.lt.s32.totalorder %s17, 3
      %p142 = pnand %p140, %p141
      %p143 = pneg %p142
      // Predicated region
      $region9: #{tpu_custom_call.1} parent=5 // pred_check
        _
      $region10: #{tpu_custom_call.1} parent=5 // pred_check_branch
        %145 = sbr.rel (%p142) target = $region12
      $region11: #{tpu_custom_call.1} parent=5 // pred_region
        %s146 = ssub.s32 %s17, 1
        // Predicated region
        $region13: #{tpu_custom_call.1} parent=11 // pred_check
          %p147 = pneg %p64
        $region14: #{tpu_custom_call.1} parent=11 // pred_check_branch
          %149 = sbr.rel (%p147) target = $region16
        $region15: #{tpu_custom_call.1} parent=11 // pred_region
          %s151 = ssub.s32 12288, 12288
          %152 = vsyncadd [#allocation7], %s151
          %s153 = sshll.u32 [#allocation6], 4
          %s154 = int_to_ptr.vmem [resolvable:$true] %s153
          %159 = dma.hbm_to_vmem [thread:$0]  %s1, 12288, %s154, [#allocation7], 768, 768, 48
        $region16: #{tpu_custom_call.1} parent=11 // pred_fallthru
          _
        // Predicated region
        $region17: #{tpu_custom_call.1} parent=11 // pred_check
          %p160 = pneg %p85
        $region18: #{tpu_custom_call.1} parent=11 // pred_check_branch
          %162 = sbr.rel (%p160) target = $region20
        $region19: #{tpu_custom_call.1} parent=11 // pred_region
          %s164 = ssub.s32 4096, 4096
          %165 = vsyncadd [#allocation7], %s164
          %s166 = sshll.u32 [#allocation8], 4
          %s167 = int_to_ptr.vmem [resolvable:$true] %s166
          %172 = dma.hbm_to_vmem [thread:$0]  %s2, 4096, %s167, [#allocation7], 64, 64, 4
        $region20: #{tpu_custom_call.1} parent=11 // pred_fallthru
          _
        // Predicated region
        $region21: #{tpu_custom_call.1} parent=11 // pred_check
          %p173 = pneg %p106
        $region22: #{tpu_custom_call.1} parent=11 // pred_check_branch
          %175 = sbr.rel (%p173) target = $region24
        $region23: #{tpu_custom_call.1} parent=11 // pred_region
          _
        $region24: #{tpu_custom_call.1} parent=11 // pred_fallthru
          _
      $region12: #{tpu_custom_call.1} parent=5 // pred_fallthru
        _
      %p176 = scmp.lt.s32.totalorder %s17, 2
      // Predicated region
      $region25: #{tpu_custom_call.1} parent=5 // pred_check
        %p177 = pneg %p176
      $region26: #{tpu_custom_call.1} parent=5 // pred_check_branch
        %179 = sbr.rel (%p177) target = $region28
      $region27: #{tpu_custom_call.1} parent=5 // pred_region
        // Predicated region
        $region29: #{tpu_custom_call.1} parent=27 // pred_check
          %p180 = pneg %p37
        $region30: #{tpu_custom_call.1} parent=27 // pred_check_branch
          %182 = sbr.rel (%p180) target = $region32
        $region31: #{tpu_custom_call.1} parent=27 // pred_region
          %s183 = sand.u32 %s27, 1
          %s184 = scalar_lea.sflag [#allocation4], %s183
          %s185 = sand.u32 %s27, 1
          %s186 = smul.addr %s185, 128
          %s187 = scalar_lea.vmem [#allocation3], %s186
          %s189 = ssub.s32 2048, 2048
          %190 = vsyncadd %s184, %s189
          %s191 = smul.addr %s17, 16
          %s192 = smul.addr %s191, 128
          %s193 = scalar_lea.hbm %s0, %s192
          %s194 = sshll.u32 %s187, 4
          %s195 = int_to_ptr.vmem [resolvable:$true] %s194
          %200 = dma.hbm_to_vmem [thread:$0]  %s193, 2048, %s195, %s184, 128, 128, 8
        $region32: #{tpu_custom_call.1} parent=27 // pred_fallthru
          _
      $region28: #{tpu_custom_call.1} parent=5 // pred_fallthru
        _
      %p201 = scmp.le.s32.totalorder 1, %s17
      %p202 = scmp.lt.s32.totalorder %s17, 3
      %p203 = pnand %p201, %p202
      %p204 = pneg %p203
      // Predicated region
      $region33: #{tpu_custom_call.1} parent=5 // pred_check
        _
      $region34: #{tpu_custom_call.1} parent=5 // pred_check_branch
        %206 = sbr.rel (%p203) target = $region36
      $region35: #{tpu_custom_call.1} parent=5 // pred_region
        %s207 = ssub.s32 %s17, 1
        %s208 = sand.u32 %s30, 1
        %s209 = scalar_lea.sflag [#allocation4], %s208
        %s210 = sand.u32 %s30, 1
        %s211 = smul.addr %s210, 128
        %s212 = scalar_lea.vmem [#allocation3], %s211
        // Predicated region
        $region37: #{tpu_custom_call.1} parent=35 // pred_check
          %p213 = pneg %p43
        $region38: #{tpu_custom_call.1} parent=35 // pred_check_branch
          %215 = sbr.rel (%p213) target = $region40
        $region39: #{tpu_custom_call.1} parent=35 // pred_region
          %216 = dma.done %s209, 2048
        $region40: #{tpu_custom_call.1} parent=35 // pred_fallthru
          _
        // Predicated region
        $region41: #{tpu_custom_call.1} parent=35 // pred_check
          %p217 = pneg %p64
        $region42: #{tpu_custom_call.1} parent=35 // pred_check_branch
          %219 = sbr.rel (%p217) target = $region44
        $region43: #{tpu_custom_call.1} parent=35 // pred_region
          %220 = dma.done [#allocation7], 12288
        $region44: #{tpu_custom_call.1} parent=35 // pred_fallthru
          _
        // Predicated region
        $region45: #{tpu_custom_call.1} parent=35 // pred_check
          %p221 = pneg %p85
        $region46: #{tpu_custom_call.1} parent=35 // pred_check_branch
          %223 = sbr.rel (%p221) target = $region48
        $region47: #{tpu_custom_call.1} parent=35 // pred_region
          %224 = dma.done [#allocation7], 4096
        $region48: #{tpu_custom_call.1} parent=35 // pred_fallthru
          _
        %s225 = sand.u32 %s30, 1
        %s226 = scalar_lea.sflag [#allocation4], %s225
        %s227 = sand.u32 %s30, 1
        %s228 = smul.addr %s227, 128
        %s229 = scalar_lea.vmem [#allocation3], %s228
        %p230 = pneg %p43
        %p231 = pneg %p40
        %p232 = pneg %p64
        %p233 = pneg %p61
        %p234 = pneg %p85
        %p235 = pneg %p82
        %p236 = pneg %p106
        %p237 = pneg %p103
        %p238 = pneg %p132
        %p239 = pneg %p129
        %s240 = sand.u32 %s119, 1
        %s241 = scalar_lea.sflag [#allocation5], %s240
        %s242 = sand.u32 %s119, 1
        %s243 = smul.addr %s242, 128
        %s244 = scalar_lea.vmem [#allocation9], %s243
        %v246 = vld [vmem:[%s212] sm:$0xff]
        %v247 = vld [vmem:[%s212 + $0x8] sm:$0xff]
        %v248 = vld [vmem:[%s212 + $0x10] sm:$0xff]
        %v249 = vld [vmem:[%s212 + $0x18] sm:$0xff]
        %v250 = vld [vmem:[%s212 + $0x20] sm:$0xff]
        %v251 = vld [vmem:[%s212 + $0x28] sm:$0xff]
        %v252 = vld [vmem:[%s212 + $0x30] sm:$0xff]
        %v253 = vld [vmem:[%s212 + $0x38] sm:$0xff]
        %v254 = vld [vmem:[%s212 + $0x40] sm:$0xff]
        %v255 = vld [vmem:[%s212 + $0x48] sm:$0xff]
        %v256 = vld [vmem:[%s212 + $0x50] sm:$0xff]
        %v257 = vld [vmem:[%s212 + $0x58] sm:$0xff]
        %v258 = vld [vmem:[%s212 + $0x60] sm:$0xff]
        %v259 = vld [vmem:[%s212 + $0x68] sm:$0xff]
        %v260 = vld [vmem:[%s212 + $0x70] sm:$0xff]
        %v261 = vld [vmem:[%s212 + $0x78] sm:$0xff]
        %v262 = vpack.c.bf16 %v247, %v246
        %v263 = vpack.c.bf16 %v249, %v248
        %v264 = vpack.c.bf16 %v251, %v250
        %v265 = vpack.c.bf16 %v253, %v252
        %v266 = vpack.c.bf16 %v255, %v254
        %v267 = vpack.c.bf16 %v257, %v256
        %v268 = vpack.c.bf16 %v259, %v258
        %v269 = vpack.c.bf16 %v261, %v260
        %v270 = vld [vmem:[#allocation6] sm:$0xff]
        %v271 = vld [vmem:[#allocation6 + $0x8] sm:$0xff]
        %v272 = vld [vmem:[#allocation6 + $0x10] sm:$0xff]
        %v273 = vld [vmem:[#allocation6 + $0x18] sm:$0xff]
        %v274 = vld [vmem:[#allocation6 + $0x20] sm:$0xff]
        %v275 = vld [vmem:[#allocation6 + $0x28] sm:$0xff]
        %v276 = vld [vmem:[#allocation6 + $0x30] sm:$0xff]
        %v277 = vld [vmem:[#allocation6 + $0x38] sm:$0xff]
        %v278 = vld [vmem:[#allocation6 + $0x40] sm:$0xff]
        %v279 = vld [vmem:[#allocation6 + $0x48] sm:$0xff]
        %v280 = vld [vmem:[#allocation6 + $0x50] sm:$0xff]
        %v281 = vld [vmem:[#allocation6 + $0x58] sm:$0xff]
        %v282 = vld [vmem:[#allocation6 + $0x60] sm:$0xff]
        %v283 = vld [vmem:[#allocation6 + $0x68] sm:$0xff]
        %v284 = vld [vmem:[#allocation6 + $0x70] sm:$0xff]
        %v285 = vld [vmem:[#allocation6 + $0x78] sm:$0xff]
        %v286 = vld [vmem:[#allocation6 + $0x80] sm:$0xff]
        %v287 = vld [vmem:[#allocation6 + $0x88] sm:$0xff]
        %v288 = vld [vmem:[#allocation6 + $0x90] sm:$0xff]
        %v289 = vld [vmem:[#allocation6 + $0x98] sm:$0xff]
        %v290 = vld [vmem:[#allocation6 + $0xa0] sm:$0xff]
        %v291 = vld [vmem:[#allocation6 + $0xa8] sm:$0xff]
        %v292 = vld [vmem:[#allocation6 + $0xb0] sm:$0xff]
        %v293 = vld [vmem:[#allocation6 + $0xb8] sm:$0xff]
        %v294 = vld [vmem:[#allocation6 + $0xc0] sm:$0xff]
        %v295 = vld [vmem:[#allocation6 + $0xc8] sm:$0xff]
        %v296 = vld [vmem:[#allocation6 + $0xd0] sm:$0xff]
        %v297 = vld [vmem:[#allocation6 + $0xd8] sm:$0xff]
        %v298 = vld [vmem:[#allocation6 + $0xe0] sm:$0xff]
        %v299 = vld [vmem:[#allocation6 + $0xe8] sm:$0xff]
        %v300 = vld [vmem:[#allocation6 + $0xf0] sm:$0xff]
        %v301 = vld [vmem:[#allocation6 + $0xf8] sm:$0xff]
        %v302 = vld [vmem:[#allocation6 + $0x100] sm:$0xff]
        %v303 = vld [vmem:[#allocation6 + $0x108] sm:$0xff]
        %v304 = vld [vmem:[#allocation6 + $0x110] sm:$0xff]
        %v305 = vld [vmem:[#allocation6 + $0x118] sm:$0xff]
        %v306 = vld [vmem:[#allocation6 + $0x120] sm:$0xff]
        %v307 = vld [vmem:[#allocation6 + $0x128] sm:$0xff]
        %v308 = vld [vmem:[#allocation6 + $0x130] sm:$0xff]
        %v309 = vld [vmem:[#allocation6 + $0x138] sm:$0xff]
        %v310 = vld [vmem:[#allocation6 + $0x140] sm:$0xff]
        %v311 = vld [vmem:[#allocation6 + $0x148] sm:$0xff]
        %v312 = vld [vmem:[#allocation6 + $0x150] sm:$0xff]
        %v313 = vld [vmem:[#allocation6 + $0x158] sm:$0xff]
        %v314 = vld [vmem:[#allocation6 + $0x160] sm:$0xff]
        %v315 = vld [vmem:[#allocation6 + $0x168] sm:$0xff]
        %v316 = vld [vmem:[#allocation6 + $0x170] sm:$0xff]
        %v317 = vld [vmem:[#allocation6 + $0x178] sm:$0xff]
        %v318 = vld [vmem:[#allocation6 + $0x180] sm:$0xff]
        %v319 = vld [vmem:[#allocation6 + $0x188] sm:$0xff]
        %v320 = vld [vmem:[#allocation6 + $0x190] sm:$0xff]
        %v321 = vld [vmem:[#allocation6 + $0x198] sm:$0xff]
        %v322 = vld [vmem:[#allocation6 + $0x1a0] sm:$0xff]
        %v323 = vld [vmem:[#allocation6 + $0x1a8] sm:$0xff]
        %v324 = vld [vmem:[#allocation6 + $0x1b0] sm:$0xff]
        %v325 = vld [vmem:[#allocation6 + $0x1b8] sm:$0xff]
        %v326 = vld [vmem:[#allocation6 + $0x1c0] sm:$0xff]
        %v327 = vld [vmem:[#allocation6 + $0x1c8] sm:$0xff]
        %v328 = vld [vmem:[#allocation6 + $0x1d0] sm:$0xff]
        %v329 = vld [vmem:[#allocation6 + $0x1d8] sm:$0xff]
        %v330 = vld [vmem:[#allocation6 + $0x1e0] sm:$0xff]
        %v331 = vld [vmem:[#allocation6 + $0x1e8] sm:$0xff]
        %v332 = vld [vmem:[#allocation6 + $0x1f0] sm:$0xff]
        %v333 = vld [vmem:[#allocation6 + $0x1f8] sm:$0xff]
        %v334 = vld [vmem:[#allocation6 + $0x200] sm:$0xff]
        %v335 = vld [vmem:[#allocation6 + $0x208] sm:$0xff]
        %v336 = vld [vmem:[#allocation6 + $0x210] sm:$0xff]
        %v337 = vld [vmem:[#allocation6 + $0x218] sm:$0xff]
        %v338 = vld [vmem:[#allocation6 + $0x220] sm:$0xff]
        %v339 = vld [vmem:[#allocation6 + $0x228] sm:$0xff]
        %v340 = vld [vmem:[#allocation6 + $0x230] sm:$0xff]
        %v341 = vld [vmem:[#allocation6 + $0x238] sm:$0xff]
        %v342 = vld [vmem:[#allocation6 + $0x240] sm:$0xff]
        %v343 = vld [vmem:[#allocation6 + $0x248] sm:$0xff]
        %v344 = vld [vmem:[#allocation6 + $0x250] sm:$0xff]
        %v345 = vld [vmem:[#allocation6 + $0x258] sm:$0xff]
        %v346 = vld [vmem:[#allocation6 + $0x260] sm:$0xff]
        %v347 = vld [vmem:[#allocation6 + $0x268] sm:$0xff]
        %v348 = vld [vmem:[#allocation6 + $0x270] sm:$0xff]
        %v349 = vld [vmem:[#allocation6 + $0x278] sm:$0xff]
        %v350 = vld [vmem:[#allocation6 + $0x280] sm:$0xff]
        %v351 = vld [vmem:[#allocation6 + $0x288] sm:$0xff]
        %v352 = vld [vmem:[#allocation6 + $0x290] sm:$0xff]
        %v353 = vld [vmem:[#allocation6 + $0x298] sm:$0xff]
        %v354 = vld [vmem:[#allocation6 + $0x2a0] sm:$0xff]
        %v355 = vld [vmem:[#allocation6 + $0x2a8] sm:$0xff]
        %v356 = vld [vmem:[#allocation6 + $0x2b0] sm:$0xff]
        %v357 = vld [vmem:[#allocation6 + $0x2b8] sm:$0xff]
        %v358 = vld [vmem:[#allocation6 + $0x2c0] sm:$0xff]
        %v359 = vld [vmem:[#allocation6 + $0x2c8] sm:$0xff]
        %v360 = vld [vmem:[#allocation6 + $0x2d0] sm:$0xff]
        %v361 = vld [vmem:[#allocation6 + $0x2d8] sm:$0xff]
        %v362 = vld [vmem:[#allocation6 + $0x2e0] sm:$0xff]
        %v363 = vld [vmem:[#allocation6 + $0x2e8] sm:$0xff]
        %v364 = vld [vmem:[#allocation6 + $0x2f0] sm:$0xff]
        %v365 = vld [vmem:[#allocation6 + $0x2f8] sm:$0xff]
        %v462 = vunpack.c.l.b16 %v270
        %v463 = vunpack.c.h.b16 %v270
        %v464 = vunpack.c.l.b16 %v271
        %v465 = vunpack.c.h.b16 %v271
        %v466 = vunpack.c.l.b16 %v272
        %v467 = vunpack.c.h.b16 %v272
        %v468 = vunpack.c.l.b16 %v273
        %v469 = vunpack.c.h.b16 %v273
        %v470 = vunpack.c.l.b16 %v274
        %v471 = vunpack.c.h.b16 %v274
        %v472 = vunpack.c.l.b16 %v275
        %v473 = vunpack.c.h.b16 %v275
        %v474 = vunpack.c.l.b16 %v276
        %v475 = vunpack.c.h.b16 %v276
        %v476 = vunpack.c.l.b16 %v277
        %v477 = vunpack.c.h.b16 %v277
        %v478 = vunpack.c.l.b16 %v278
        %v479 = vunpack.c.h.b16 %v278
        %v480 = vunpack.c.l.b16 %v279
        %v481 = vunpack.c.h.b16 %v279
        %v482 = vunpack.c.l.b16 %v280
        %v483 = vunpack.c.h.b16 %v280
        %v484 = vunpack.c.l.b16 %v281
        %v485 = vunpack.c.h.b16 %v281
        %v486 = vunpack.c.l.b16 %v282
        %v487 = vunpack.c.h.b16 %v282
        %v488 = vunpack.c.l.b16 %v283
        %v489 = vunpack.c.h.b16 %v283
        %v490 = vunpack.c.l.b16 %v284
        %v491 = vunpack.c.h.b16 %v284
        %v492 = vunpack.c.l.b16 %v285
        %v493 = vunpack.c.h.b16 %v285
        %v494 = vunpack.c.l.b16 %v286
        %v495 = vunpack.c.h.b16 %v286
        %v496 = vunpack.c.l.b16 %v287
        %v497 = vunpack.c.h.b16 %v287
        %v498 = vunpack.c.l.b16 %v288
        %v499 = vunpack.c.h.b16 %v288
        %v500 = vunpack.c.l.b16 %v289
        %v501 = vunpack.c.h.b16 %v289
        %v502 = vunpack.c.l.b16 %v290
        %v503 = vunpack.c.h.b16 %v290
        %v504 = vunpack.c.l.b16 %v291
        %v505 = vunpack.c.h.b16 %v291
        %v506 = vunpack.c.l.b16 %v292
        %v507 = vunpack.c.h.b16 %v292
        %v508 = vunpack.c.l.b16 %v293
        %v509 = vunpack.c.h.b16 %v293
        %v510 = vunpack.c.l.b16 %v294
        %v511 = vunpack.c.h.b16 %v294
        %v512 = vunpack.c.l.b16 %v295
        %v513 = vunpack.c.h.b16 %v295
        %v514 = vunpack.c.l.b16 %v296
        %v515 = vunpack.c.h.b16 %v296
        %v516 = vunpack.c.l.b16 %v297
        %v517 = vunpack.c.h.b16 %v297
        %v518 = vunpack.c.l.b16 %v298
        %v519 = vunpack.c.h.b16 %v298
        %v520 = vunpack.c.l.b16 %v299
        %v521 = vunpack.c.h.b16 %v299
        %v522 = vunpack.c.l.b16 %v300
        %v523 = vunpack.c.h.b16 %v300
        %v524 = vunpack.c.l.b16 %v301
        %v525 = vunpack.c.h.b16 %v301
        %v526 = vunpack.c.l.b16 %v302
        %v527 = vunpack.c.h.b16 %v302
        %v528 = vunpack.c.l.b16 %v303
        %v529 = vunpack.c.h.b16 %v303
        %v530 = vunpack.c.l.b16 %v304
        %v531 = vunpack.c.h.b16 %v304
        %v532 = vunpack.c.l.b16 %v305
        %v533 = vunpack.c.h.b16 %v305
        %v534 = vunpack.c.l.b16 %v306
        %v535 = vunpack.c.h.b16 %v306
        %v536 = vunpack.c.l.b16 %v307
        %v537 = vunpack.c.h.b16 %v307
        %v538 = vunpack.c.l.b16 %v308
        %v539 = vunpack.c.h.b16 %v308
        %v540 = vunpack.c.l.b16 %v309
        %v541 = vunpack.c.h.b16 %v309
        %v542 = vunpack.c.l.b16 %v310
        %v543 = vunpack.c.h.b16 %v310
        %v544 = vunpack.c.l.b16 %v311
        %v545 = vunpack.c.h.b16 %v311
        %v546 = vunpack.c.l.b16 %v312
        %v547 = vunpack.c.h.b16 %v312
        %v548 = vunpack.c.l.b16 %v313
        %v549 = vunpack.c.h.b16 %v313
        %v550 = vunpack.c.l.b16 %v314
        %v551 = vunpack.c.h.b16 %v314
        %v552 = vunpack.c.l.b16 %v315
        %v553 = vunpack.c.h.b16 %v315
        %v554 = vunpack.c.l.b16 %v316
        %v555 = vunpack.c.h.b16 %v316
        %v556 = vunpack.c.l.b16 %v317
        %v557 = vunpack.c.h.b16 %v317
        %v558 = vunpack.c.l.b16 %v318
        %v559 = vunpack.c.h.b16 %v318
        %v560 = vunpack.c.l.b16 %v319
        %v561 = vunpack.c.h.b16 %v319
        %v562 = vunpack.c.l.b16 %v320
        %v563 = vunpack.c.h.b16 %v320
        %v564 = vunpack.c.l.b16 %v321
        %v565 = vunpack.c.h.b16 %v321
        %v566 = vunpack.c.l.b16 %v322
        %v567 = vunpack.c.h.b16 %v322
        %v568 = vunpack.c.l.b16 %v323
        %v569 = vunpack.c.h.b16 %v323
        %v570 = vunpack.c.l.b16 %v324
        %v571 = vunpack.c.h.b16 %v324
        %v572 = vunpack.c.l.b16 %v325
        %v573 = vunpack.c.h.b16 %v325
        %v574 = vunpack.c.l.b16 %v326
        %v575 = vunpack.c.h.b16 %v326
        %v576 = vunpack.c.l.b16 %v327
        %v577 = vunpack.c.h.b16 %v327
        %v578 = vunpack.c.l.b16 %v328
        %v579 = vunpack.c.h.b16 %v328
        %v580 = vunpack.c.l.b16 %v329
        %v581 = vunpack.c.h.b16 %v329
        %v582 = vunpack.c.l.b16 %v330
        %v583 = vunpack.c.h.b16 %v330
        %v584 = vunpack.c.l.b16 %v331
        %v585 = vunpack.c.h.b16 %v331
        %v586 = vunpack.c.l.b16 %v332
        %v587 = vunpack.c.h.b16 %v332
        %v588 = vunpack.c.l.b16 %v333
        %v589 = vunpack.c.h.b16 %v333
        %v590 = vunpack.c.l.b16 %v334
        %v591 = vunpack.c.h.b16 %v334
        %v592 = vunpack.c.l.b16 %v335
        %v593 = vunpack.c.h.b16 %v335
        %v594 = vunpack.c.l.b16 %v336
        %v595 = vunpack.c.h.b16 %v336
        %v596 = vunpack.c.l.b16 %v337
        %v597 = vunpack.c.h.b16 %v337
        %v598 = vunpack.c.l.b16 %v338
        %v599 = vunpack.c.h.b16 %v338
        %v600 = vunpack.c.l.b16 %v339
        %v601 = vunpack.c.h.b16 %v339
        %v602 = vunpack.c.l.b16 %v340
        %v603 = vunpack.c.h.b16 %v340
        %v604 = vunpack.c.l.b16 %v341
        %v605 = vunpack.c.h.b16 %v341
        %v606 = vunpack.c.l.b16 %v342
        %v607 = vunpack.c.h.b16 %v342
        %v608 = vunpack.c.l.b16 %v343
        %v609 = vunpack.c.h.b16 %v343
        %v610 = vunpack.c.l.b16 %v344
        %v611 = vunpack.c.h.b16 %v344
        %v612 = vunpack.c.l.b16 %v345
        %v613 = vunpack.c.h.b16 %v345
        %v614 = vunpack.c.l.b16 %v346
        %v615 = vunpack.c.h.b16 %v346
        %v616 = vunpack.c.l.b16 %v347
        %v617 = vunpack.c.h.b16 %v347
        %v618 = vunpack.c.l.b16 %v348
        %v619 = vunpack.c.h.b16 %v348
        %v620 = vunpack.c.l.b16 %v349
        %v621 = vunpack.c.h.b16 %v349
        %v622 = vunpack.c.l.b16 %v350
        %v623 = vunpack.c.h.b16 %v350
        %v624 = vunpack.c.l.b16 %v351
        %v625 = vunpack.c.h.b16 %v351
        %v626 = vunpack.c.l.b16 %v352
        %v627 = vunpack.c.h.b16 %v352
        %v628 = vunpack.c.l.b16 %v353
        %v629 = vunpack.c.h.b16 %v353
        %v630 = vunpack.c.l.b16 %v354
        %v631 = vunpack.c.h.b16 %v354
        %v632 = vunpack.c.l.b16 %v355
        %v633 = vunpack.c.h.b16 %v355
        %v634 = vunpack.c.l.b16 %v356
        %v635 = vunpack.c.h.b16 %v356
        %v636 = vunpack.c.l.b16 %v357
        %v637 = vunpack.c.h.b16 %v357
        %v638 = vunpack.c.l.b16 %v358
        %v639 = vunpack.c.h.b16 %v358
        %v640 = vunpack.c.l.b16 %v359
        %v641 = vunpack.c.h.b16 %v359
        %v642 = vunpack.c.l.b16 %v360
        %v643 = vunpack.c.h.b16 %v360
        %v644 = vunpack.c.l.b16 %v361
        %v645 = vunpack.c.h.b16 %v361
        %v646 = vunpack.c.l.b16 %v362
        %v647 = vunpack.c.h.b16 %v362
        %v648 = vunpack.c.l.b16 %v363
        %v649 = vunpack.c.h.b16 %v363
        %v650 = vunpack.c.l.b16 %v364
        %v651 = vunpack.c.h.b16 %v364
        %v652 = vunpack.c.l.b16 %v365
        %v653 = vunpack.c.h.b16 %v365
        %v654 = vpack.c.b16 %v474, %v462
        %v655 = vpack.c.b16 %v475, %v463
        %v656 = vpack.c.b16 %v476, %v464
        %v657 = vpack.c.b16 %v477, %v465
        %v658 = vpack.c.b16 %v478, %v466
        %v659 = vpack.c.b16 %v479, %v467
        %v660 = vpack.c.b16 %v480, %v468
        %v661 = vpack.c.b16 %v481, %v469
        %v662 = vpack.c.b16 %v482, %v470
        %v663 = vpack.c.b16 %v483, %v471
        %v664 = vpack.c.b16 %v484, %v472
        %v665 = vpack.c.b16 %v485, %v473
        %v666 = vpack.c.b16 %v498, %v486
        %v667 = vpack.c.b16 %v499, %v487
        %v668 = vpack.c.b16 %v500, %v488
        %v669 = vpack.c.b16 %v501, %v489
        %v670 = vpack.c.b16 %v502, %v490
        %v671 = vpack.c.b16 %v503, %v491
        %v672 = vpack.c.b16 %v504, %v492
        %v673 = vpack.c.b16 %v505, %v493
        %v674 = vpack.c.b16 %v506, %v494
        %v675 = vpack.c.b16 %v507, %v495
        %v676 = vpack.c.b16 %v508, %v496
        %v677 = vpack.c.b16 %v509, %v497
        %v678 = vpack.c.b16 %v522, %v510
        %v679 = vpack.c.b16 %v523, %v511
        %v680 = vpack.c.b16 %v524, %v512
        %v681 = vpack.c.b16 %v525, %v513
        %v682 = vpack.c.b16 %v526, %v514
        %v683 = vpack.c.b16 %v527, %v515
        %v684 = vpack.c.b16 %v528, %v516
        %v685 = vpack.c.b16 %v529, %v517
        %v686 = vpack.c.b16 %v530, %v518
        %v687 = vpack.c.b16 %v531, %v519
        %v688 = vpack.c.b16 %v532, %v520
        %v689 = vpack.c.b16 %v533, %v521
        %v690 = vpack.c.b16 %v546, %v534
        %v691 = vpack.c.b16 %v547, %v535
        %v692 = vpack.c.b16 %v548, %v536
        %v693 = vpack.c.b16 %v549, %v537
        %v694 = vpack.c.b16 %v550, %v538
        %v695 = vpack.c.b16 %v551, %v539
        %v696 = vpack.c.b16 %v552, %v540
        %v697 = vpack.c.b16 %v553, %v541
        %v698 = vpack.c.b16 %v554, %v542
        %v699 = vpack.c.b16 %v555, %v543
        %v700 = vpack.c.b16 %v556, %v544
        %v701 = vpack.c.b16 %v557, %v545
        %v702 = vpack.c.b16 %v570, %v558
        %v703 = vpack.c.b16 %v571, %v559
        %v704 = vpack.c.b16 %v572, %v560
        %v705 = vpack.c.b16 %v573, %v561
        %v706 = vpack.c.b16 %v574, %v562
        %v707 = vpack.c.b16 %v575, %v563
        %v708 = vpack.c.b16 %v576, %v564
        %v709 = vpack.c.b16 %v577, %v565
        %v710 = vpack.c.b16 %v578, %v566
        %v711 = vpack.c.b16 %v579, %v567
        %v712 = vpack.c.b16 %v580, %v568
        %v713 = vpack.c.b16 %v581, %v569
        %v714 = vpack.c.b16 %v594, %v582
        %v715 = vpack.c.b16 %v595, %v583
        %v716 = vpack.c.b16 %v596, %v584
        %v717 = vpack.c.b16 %v597, %v585
        %v718 = vpack.c.b16 %v598, %v586
        %v719 = vpack.c.b16 %v599, %v587
        %v720 = vpack.c.b16 %v600, %v588
        %v721 = vpack.c.b16 %v601, %v589
        %v722 = vpack.c.b16 %v602, %v590
        %v723 = vpack.c.b16 %v603, %v591
        %v724 = vpack.c.b16 %v604, %v592
        %v725 = vpack.c.b16 %v605, %v593
        %v726 = vpack.c.b16 %v618, %v606
        %v727 = vpack.c.b16 %v619, %v607
        %v728 = vpack.c.b16 %v620, %v608
        %v729 = vpack.c.b16 %v621, %v609
        %v730 = vpack.c.b16 %v622, %v610
        %v731 = vpack.c.b16 %v623, %v611
        %v732 = vpack.c.b16 %v624, %v612
        %v733 = vpack.c.b16 %v625, %v613
        %v734 = vpack.c.b16 %v626, %v614
        %v735 = vpack.c.b16 %v627, %v615
        %v736 = vpack.c.b16 %v628, %v616
        %v737 = vpack.c.b16 %v629, %v617
        %v738 = vpack.c.b16 %v642, %v630
        %v739 = vpack.c.b16 %v643, %v631
        %v740 = vpack.c.b16 %v644, %v632
        %v741 = vpack.c.b16 %v645, %v633
        %v742 = vpack.c.b16 %v646, %v634
        %v743 = vpack.c.b16 %v647, %v635
        %v744 = vpack.c.b16 %v648, %v636
        %v745 = vpack.c.b16 %v649, %v637
        %v746 = vpack.c.b16 %v650, %v638
        %v747 = vpack.c.b16 %v651, %v639
        %v748 = vpack.c.b16 %v652, %v640
        %v749 = vpack.c.b16 %v653, %v641
        %846 = vmatprep.subr.bf16.mxu0 %v655
        %847 = vmatpush1.bf16.msra.mxu0 %v654
        %848 = vmatprep.subr.bf16.mxu0 %v667
        %849 = vmatpush1.bf16.msra.mxu0 %v666
        %850 = vmatprep.subr.bf16.mxu0 %v679
        %851 = vmatpush1.bf16.msra.mxu0 %v678
        %852 = vmatprep.subr.bf16.mxu0 %v691
        %853 = vmatpush1.bf16.msra.mxu0 %v690
        %854 = vmatprep.subr.bf16.mxu0 %v703
        %855 = vmatpush1.bf16.msra.mxu0 %v702
        %856 = vmatprep.subr.bf16.mxu0 %v715
        %857 = vmatpush1.bf16.msra.mxu0 %v714
        %858 = vmatprep.subr.bf16.mxu0 %v727
        %859 = vmatpush1.bf16.msra.mxu0 %v726
        %860 = vmatprep.subr.bf16.mxu0 %v739
        %861 = vmatpush1.bf16.msra.mxu0 %v738
        %862 = vmatprep.subr.bf16.mxu0 0
        %863 = vmatpush1.bf16.msra.mxu0 0
        %864 = vmatprep.subr.bf16.mxu0 0
        %865 = vmatpush1.bf16.msra.mxu0 0
        %866 = vmatprep.subr.bf16.mxu0 0
        %867 = vmatpush1.bf16.msra.mxu0 0
        %868 = vmatprep.subr.bf16.mxu0 0
        %869 = vmatpush1.bf16.msra.mxu0 0
        %870 = vmatprep.subr.bf16.mxu0 0
        %871 = vmatpush1.bf16.msra.mxu0 0
        %872 = vmatprep.subr.bf16.mxu0 0
        %873 = vmatpush1.bf16.msra.mxu0 0
        %874 = vmatprep.subr.bf16.mxu0 0
        %875 = vmatpush1.bf16.msra.mxu0 0
        %876 = vmatprep.subr.bf16.mxu0 0
        %877 = vmatpush1.bf16.msra.mxu0 0
        %878 = vmatprep.mubr.bf16.mxu0 0
        %879 = vmatmul.mubr.bf16.gmra.mrb[0].mxu0 %v262
        %v880 = vpop.f32.mrb[0].mxu0
        %v881 = vadd.f32 0.0, %v880
        %v882 = vpop.f32.mrb[0].mxu0
        %v883 = vadd.f32 0.0, %v882
        %v884 = vpop.f32.mrb[0].mxu0
        %v885 = vadd.f32 0.0, %v884
        %v886 = vpop.f32.mrb[0].mxu0
        %v887 = vadd.f32 0.0, %v886
        %888 = vmatprep.mubr.bf16.mxu0 0
        %889 = vmatmul.mubr.bf16.gmra.mrb[0].mxu0 %v263
        %v890 = vpop.f32.mrb[0].mxu0
        %v891 = vadd.f32 0.0, %v890
        %v892 = vpop.f32.mrb[0].mxu0
        %v893 = vadd.f32 0.0, %v892
        %v894 = vpop.f32.mrb[0].mxu0
        %v895 = vadd.f32 0.0, %v894
        %v896 = vpop.f32.mrb[0].mxu0
        %v897 = vadd.f32 0.0, %v896
        %898 = vmatprep.mubr.bf16.mxu0 0
        %899 = vmatmul.mubr.bf16.gmra.mrb[0].mxu0 %v264
        %v900 = vpop.f32.mrb[0].mxu0
        %v901 = vadd.f32 0.0, %v900
        %v902 = vpop.f32.mrb[0].mxu0
        %v903 = vadd.f32 0.0, %v902
        %v904 = vpop.f32.mrb[0].mxu0
        %v905 = vadd.f32 0.0, %v904
        %v906 = vpop.f32.mrb[0].mxu0
        %v907 = vadd.f32 0.0, %v906
        %908 = vmatprep.mubr.bf16.mxu0 0
        %909 = vmatmul.mubr.bf16.gmra.mrb[0].mxu0 %v265
        %v910 = vpop.f32.mrb[0].mxu0
        %v911 = vadd.f32 0.0, %v910
        %v912 = vpop.f32.mrb[0].mxu0
        %v913 = vadd.f32 0.0, %v912
        %v914 = vpop.f32.mrb[0].mxu0
        %v915 = vadd.f32 0.0, %v914
        %v916 = vpop.f32.mrb[0].mxu0
        %v917 = vadd.f32 0.0, %v916
        %918 = vmatprep.mubr.bf16.mxu0 0
        %919 = vmatmul.mubr.bf16.gmra.mrb[0].mxu0 %v266
        %v920 = vpop.f32.mrb[0].mxu0
        %v921 = vadd.f32 0.0, %v920
        %v922 = vpop.f32.mrb[0].mxu0
        %v923 = vadd.f32 0.0, %v922
        %v924 = vpop.f32.mrb[0].mxu0
        %v925 = vadd.f32 0.0, %v924
        %v926 = vpop.f32.mrb[0].mxu0
        %v927 = vadd.f32 0.0, %v926
        %928 = vmatprep.mubr.bf16.mxu0 0
        %929 = vmatmul.mubr.bf16.gmra.mrb[0].mxu0 %v267
        %v930 = vpop.f32.mrb[0].mxu0
        %v931 = vadd.f32 0.0, %v930
        %v932 = vpop.f32.mrb[0].mxu0
        %v933 = vadd.f32 0.0, %v932
        %v934 = vpop.f32.mrb[0].mxu0
        %v935 = vadd.f32 0.0, %v934
        %v936 = vpop.f32.mrb[0].mxu0
        %v937 = vadd.f32 0.0, %v936
        %938 = vmatprep.mubr.bf16.mxu0 0
        %939 = vmatmul.mubr.bf16.gmra.mrb[0].mxu0 %v268
        %v940 = vpop.f32.mrb[0].mxu0
        %v941 = vadd.f32 0.0, %v940
        %v942 = vpop.f32.mrb[0].mxu0
        %v943 = vadd.f32 0.0, %v942
        %v944 = vpop.f32.mrb[0].mxu0
        %v945 = vadd.f32 0.0, %v944
        %v946 = vpop.f32.mrb[0].mxu0
        %v947 = vadd.f32 0.0, %v946
        %948 = vmatprep.mubr.bf16.mxu0 0
        %949 = vmatmul.mubr.bf16.gmra.mrb[0].mxu0 %v269
        %v950 = vpop.f32.mrb[0].mxu0
        %v951 = vadd.f32 0.0, %v950
        %v952 = vpop.f32.mrb[0].mxu0
        %v953 = vadd.f32 0.0, %v952
        %v954 = vpop.f32.mrb[0].mxu0
        %v955 = vadd.f32 0.0, %v954
        %v956 = vpop.f32.mrb[0].mxu0
        %v957 = vadd.f32 0.0, %v956
        %958 = vdwg.mxu0
        %959 = vmatprep.subr.bf16.mxu0 %v657
        %960 = vmatpush1.bf16.msra.mxu0 %v656
        %961 = vmatprep.subr.bf16.mxu0 %v669
        %962 = vmatpush1.bf16.msra.mxu0 %v668
        %963 = vmatprep.subr.bf16.mxu0 %v681
        %964 = vmatpush1.bf16.msra.mxu0 %v680
        %965 = vmatprep.subr.bf16.mxu0 %v693
        %966 = vmatpush1.bf16.msra.mxu0 %v692
        %967 = vmatprep.subr.bf16.mxu0 %v705
        %968 = vmatpush1.bf16.msra.mxu0 %v704
        %969 = vmatprep.subr.bf16.mxu0 %v717
        %970 = vmatpush1.bf16.msra.mxu0 %v716
        %971 = vmatprep.subr.bf16.mxu0 %v729
        %972 = vmatpush1.bf16.msra.mxu0 %v728
        %973 = vmatprep.subr.bf16.mxu0 %v741
        %974 = vmatpush1.bf16.msra.mxu0 %v740
        %975 = vmatprep.subr.bf16.mxu0 0
        %976 = vmatpush1.bf16.msra.mxu0 0
        %977 = vmatprep.subr.bf16.mxu0 0
        %978 = vmatpush1.bf16.msra.mxu0 0
        %979 = vmatprep.subr.bf16.mxu0 0
        %980 = vmatpush1.bf16.msra.mxu0 0
        %981 = vmatprep.subr.bf16.mxu0 0
        %982 = vmatpush1.bf16.msra.mxu0 0
        %983 = vmatprep.subr.bf16.mxu0 0
        %984 = vmatpush1.bf16.msra.mxu0 0
        %985 = vmatprep.subr.bf16.mxu0 0
        %986 = vmatpush1.bf16.msra.mxu0 0
        %987 = vmatprep.subr.bf16.mxu0 0
        %988 = vmatpush1.bf16.msra.mxu0 0
        %989 = vmatprep.subr.bf16.mxu0 0
        %990 = vmatpush1.bf16.msra.mxu0 0
        %991 = vmatprep.mubr.bf16.mxu0 0
        %992 = vmatmul.mubr.bf16.gmra.mrb[0].mxu0 %v262
        %v993 = vpop.f32.mrb[0].mxu0
        %v994 = vadd.f32 0.0, %v993
        %v995 = vpop.f32.mrb[0].mxu0
        %v996 = vadd.f32 0.0, %v995
        %v997 = vpop.f32.mrb[0].mxu0
        %v998 = vadd.f32 0.0, %v997
        %v999 = vpop.f32.mrb[0].mxu0
        %v1000 = vadd.f32 0.0, %v999
        %1001 = vmatprep.mubr.bf16.mxu0 0
        %1002 = vmatmul.mubr.bf16.gmra.mrb[0].mxu0 %v263
        %v1003 = vpop.f32.mrb[0].mxu0
        %v1004 = vadd.f32 0.0, %v1003
        %v1005 = vpop.f32.mrb[0].mxu0
        %v1006 = vadd.f32 0.0, %v1005
        %v1007 = vpop.f32.mrb[0].mxu0
        %v1008 = vadd.f32 0.0, %v1007
        %v1009 = vpop.f32.mrb[0].mxu0
        %v1010 = vadd.f32 0.0, %v1009
        %1011 = vmatprep.mubr.bf16.mxu0 0
        %1012 = vmatmul.mubr.bf16.gmra.mrb[0].mxu0 %v264
        %v1013 = vpop.f32.mrb[0].mxu0
        %v1014 = vadd.f32 0.0, %v1013
        %v1015 = vpop.f32.mrb[0].mxu0
        %v1016 = vadd.f32 0.0, %v1015
        %v1017 = vpop.f32.mrb[0].mxu0
        %v1018 = vadd.f32 0.0, %v1017
        %v1019 = vpop.f32.mrb[0].mxu0
        %v1020 = vadd.f32 0.0, %v1019
        %1021 = vmatprep.mubr.bf16.mxu0 0
        %1022 = vmatmul.mubr.bf16.gmra.mrb[0].mxu0 %v265
        %v1023 = vpop.f32.mrb[0].mxu0
        %v1024 = vadd.f32 0.0, %v1023
        %v1025 = vpop.f32.mrb[0].mxu0
        %v1026 = vadd.f32 0.0, %v1025
        %v1027 = vpop.f32.mrb[0].mxu0
        %v1028 = vadd.f32 0.0, %v1027
        %v1029 = vpop.f32.mrb[0].mxu0
        %v1030 = vadd.f32 0.0, %v1029
        %1031 = vmatprep.mubr.bf16.mxu0 0
        %1032 = vmatmul.mubr.bf16.gmra.mrb[0].mxu0 %v266
        %v1033 = vpop.f32.mrb[0].mxu0
        %v1034 = vadd.f32 0.0, %v1033
        %v1035 = vpop.f32.mrb[0].mxu0
        %v1036 = vadd.f32 0.0, %v1035
        %v1037 = vpop.f32.mrb[0].mxu0
        %v1038 = vadd.f32 0.0, %v1037
        %v1039 = vpop.f32.mrb[0].mxu0
        %v1040 = vadd.f32 0.0, %v1039
        %1041 = vmatprep.mubr.bf16.mxu0 0
        %1042 = vmatmul.mubr.bf16.gmra.mrb[0].mxu0 %v267
        %v1043 = vpop.f32.mrb[0].mxu0
        %v1044 = vadd.f32 0.0, %v1043
        %v1045 = vpop.f32.mrb[0].mxu0
        %v1046 = vadd.f32 0.0, %v1045
        %v1047 = vpop.f32.mrb[0].mxu0
        %v1048 = vadd.f32 0.0, %v1047
        %v1049 = vpop.f32.mrb[0].mxu0
        %v1050 = vadd.f32 0.0, %v1049
        %1051 = vmatprep.mubr.bf16.mxu0 0
        %1052 = vmatmul.mubr.bf16.gmra.mrb[0].mxu0 %v268
        %v1053 = vpop.f32.mrb[0].mxu0
        %v1054 = vadd.f32 0.0, %v1053
        %v1055 = vpop.f32.mrb[0].mxu0
        %v1056 = vadd.f32 0.0, %v1055
        %v1057 = vpop.f32.mrb[0].mxu0
        %v1058 = vadd.f32 0.0, %v1057
        %v1059 = vpop.f32.mrb[0].mxu0
        %v1060 = vadd.f32 0.0, %v1059
        %1061 = vmatprep.mubr.bf16.mxu0 0
        %1062 = vmatmul.mubr.bf16.gmra.mrb[0].mxu0 %v269
        %v1063 = vpop.f32.mrb[0].mxu0
        %v1064 = vadd.f32 0.0, %v1063
        %v1065 = vpop.f32.mrb[0].mxu0
        %v1066 = vadd.f32 0.0, %v1065
        %v1067 = vpop.f32.mrb[0].mxu0
        %v1068 = vadd.f32 0.0, %v1067
        %v1069 = vpop.f32.mrb[0].mxu0
        %v1070 = vadd.f32 0.0, %v1069
        %1071 = vdwg.mxu0
        %1072 = vmatprep.subr.bf16.mxu0 %v659
        %1073 = vmatpush1.bf16.msra.mxu0 %v658
        %1074 = vmatprep.subr.bf16.mxu0 %v671
        %1075 = vmatpush1.bf16.msra.mxu0 %v670
        %1076 = vmatprep.subr.bf16.mxu0 %v683
        %1077 = vmatpush1.bf16.msra.mxu0 %v682
        %1078 = vmatprep.subr.bf16.mxu0 %v695
        %1079 = vmatpush1.bf16.msra.mxu0 %v694
        %1080 = vmatprep.subr.bf16.mxu0 %v707
        %1081 = vmatpush1.bf16.msra.mxu0 %v706
        %1082 = vmatprep.subr.bf16.mxu0 %v719
        %1083 = vmatpush1.bf16.msra.mxu0 %v718
        %1084 = vmatprep.subr.bf16.mxu0 %v731
        %1085 = vmatpush1.bf16.msra.mxu0 %v730
        %1086 = vmatprep.subr.bf16.mxu0 %v743
        %1087 = vmatpush1.bf16.msra.mxu0 %v742
        %1088 = vmatprep.subr.bf16.mxu0 0
        %1089 = vmatpush1.bf16.msra.mxu0 0
        %1090 = vmatprep.subr.bf16.mxu0 0
        %1091 = vmatpush1.bf16.msra.mxu0 0
        %1092 = vmatprep.subr.bf16.mxu0 0
        %1093 = vmatpush1.bf16.msra.mxu0 0
        %1094 = vmatprep.subr.bf16.mxu0 0
        %1095 = vmatpush1.bf16.msra.mxu0 0
        %1096 = vmatprep.subr.bf16.mxu0 0
        %1097 = vmatpush1.bf16.msra.mxu0 0
        %1098 = vmatprep.subr.bf16.mxu0 0
        %1099 = vmatpush1.bf16.msra.mxu0 0
        %1100 = vmatprep.subr.bf16.mxu0 0
        %1101 = vmatpush1.bf16.msra.mxu0 0
        %1102 = vmatprep.subr.bf16.mxu0 0
        %1103 = vmatpush1.bf16.msra.mxu0 0
        %1104 = vmatprep.mubr.bf16.mxu0 0
        %1105 = vmatmul.mubr.bf16.gmra.mrb[0].mxu0 %v262
        %v1106 = vpop.f32.mrb[0].mxu0
        %v1107 = vadd.f32 0.0, %v1106
        %v1108 = vpop.f32.mrb[0].mxu0
        %v1109 = vadd.f32 0.0, %v1108
        %v1110 = vpop.f32.mrb[0].mxu0
        %v1111 = vadd.f32 0.0, %v1110
        %v1112 = vpop.f32.mrb[0].mxu0
        %v1113 = vadd.f32 0.0, %v1112
        %1114 = vmatprep.mubr.bf16.mxu0 0
        %1115 = vmatmul.mubr.bf16.gmra.mrb[0].mxu0 %v263
        %v1116 = vpop.f32.mrb[0].mxu0
        %v1117 = vadd.f32 0.0, %v1116
        %v1118 = vpop.f32.mrb[0].mxu0
        %v1119 = vadd.f32 0.0, %v1118
        %v1120 = vpop.f32.mrb[0].mxu0
        %v1121 = vadd.f32 0.0, %v1120
        %v1122 = vpop.f32.mrb[0].mxu0
        %v1123 = vadd.f32 0.0, %v1122
        %1124 = vmatprep.mubr.bf16.mxu0 0
        %1125 = vmatmul.mubr.bf16.gmra.mrb[0].mxu0 %v264
        %v1126 = vpop.f32.mrb[0].mxu0
        %v1127 = vadd.f32 0.0, %v1126
        %v1128 = vpop.f32.mrb[0].mxu0
        %v1129 = vadd.f32 0.0, %v1128
        %v1130 = vpop.f32.mrb[0].mxu0
        %v1131 = vadd.f32 0.0, %v1130
        %v1132 = vpop.f32.mrb[0].mxu0
        %v1133 = vadd.f32 0.0, %v1132
        %1134 = vmatprep.mubr.bf16.mxu0 0
        %1135 = vmatmul.mubr.bf16.gmra.mrb[0].mxu0 %v265
        %v1136 = vpop.f32.mrb[0].mxu0
        %v1137 = vadd.f32 0.0, %v1136
        %v1138 = vpop.f32.mrb[0].mxu0
        %v1139 = vadd.f32 0.0, %v1138
        %v1140 = vpop.f32.mrb[0].mxu0
        %v1141 = vadd.f32 0.0, %v1140
        %v1142 = vpop.f32.mrb[0].mxu0
        %v1143 = vadd.f32 0.0, %v1142
        %1144 = vmatprep.mubr.bf16.mxu0 0
        %1145 = vmatmul.mubr.bf16.gmra.mrb[0].mxu0 %v266
        %v1146 = vpop.f32.mrb[0].mxu0
        %v1147 = vadd.f32 0.0, %v1146
        %v1148 = vpop.f32.mrb[0].mxu0
        %v1149 = vadd.f32 0.0, %v1148
        %v1150 = vpop.f32.mrb[0].mxu0
        %v1151 = vadd.f32 0.0, %v1150
        %v1152 = vpop.f32.mrb[0].mxu0
        %v1153 = vadd.f32 0.0, %v1152
        %1154 = vmatprep.mubr.bf16.mxu0 0
        %1155 = vmatmul.mubr.bf16.gmra.mrb[0].mxu0 %v267
        %v1156 = vpop.f32.mrb[0].mxu0
        %v1157 = vadd.f32 0.0, %v1156
        %v1158 = vpop.f32.mrb[0].mxu0
        %v1159 = vadd.f32 0.0, %v1158
        %v1160 = vpop.f32.mrb[0].mxu0
        %v1161 = vadd.f32 0.0, %v1160
        %v1162 = vpop.f32.mrb[0].mxu0
        %v1163 = vadd.f32 0.0, %v1162
        %1164 = vmatprep.mubr.bf16.mxu0 0
        %1165 = vmatmul.mubr.bf16.gmra.mrb[0].mxu0 %v268
        %v1166 = vpop.f32.mrb[0].mxu0
        %v1167 = vadd.f32 0.0, %v1166
        %v1168 = vpop.f32.mrb[0].mxu0
        %v1169 = vadd.f32 0.0, %v1168
        %v1170 = vpop.f32.mrb[0].mxu0
        %v1171 = vadd.f32 0.0, %v1170
        %v1172 = vpop.f32.mrb[0].mxu0
        %v1173 = vadd.f32 0.0, %v1172
        %1174 = vmatprep.mubr.bf16.mxu0 0
        %1175 = vmatmul.mubr.bf16.gmra.mrb[0].mxu0 %v269
        %v1176 = vpop.f32.mrb[0].mxu0
        %v1177 = vadd.f32 0.0, %v1176
        %v1178 = vpop.f32.mrb[0].mxu0
        %v1179 = vadd.f32 0.0, %v1178
        %v1180 = vpop.f32.mrb[0].mxu0
        %v1181 = vadd.f32 0.0, %v1180
        %v1182 = vpop.f32.mrb[0].mxu0
        %v1183 = vadd.f32 0.0, %v1182
        %1184 = vdwg.mxu0
        %1185 = vmatprep.subr.bf16.mxu0 %v661
        %1186 = vmatpush1.bf16.msra.mxu0 %v660
        %1187 = vmatprep.subr.bf16.mxu0 %v673
        %1188 = vmatpush1.bf16.msra.mxu0 %v672
        %1189 = vmatprep.subr.bf16.mxu0 %v685
        %1190 = vmatpush1.bf16.msra.mxu0 %v684
        %1191 = vmatprep.subr.bf16.mxu0 %v697
        %1192 = vmatpush1.bf16.msra.mxu0 %v696
        %1193 = vmatprep.subr.bf16.mxu0 %v709
        %1194 = vmatpush1.bf16.msra.mxu0 %v708
        %1195 = vmatprep.subr.bf16.mxu0 %v721
        %1196 = vmatpush1.bf16.msra.mxu0 %v720
        %1197 = vmatprep.subr.bf16.mxu0 %v733
        %1198 = vmatpush1.bf16.msra.mxu0 %v732
        %1199 = vmatprep.subr.bf16.mxu0 %v745
        %1200 = vmatpush1.bf16.msra.mxu0 %v744
        %1201 = vmatprep.subr.bf16.mxu0 0
        %1202 = vmatpush1.bf16.msra.mxu0 0
        %1203 = vmatprep.subr.bf16.mxu0 0
        %1204 = vmatpush1.bf16.msra.mxu0 0
        %1205 = vmatprep.subr.bf16.mxu0 0
        %1206 = vmatpush1.bf16.msra.mxu0 0
        %1207 = vmatprep.subr.bf16.mxu0 0
        %1208 = vmatpush1.bf16.msra.mxu0 0
        %1209 = vmatprep.subr.bf16.mxu0 0
        %1210 = vmatpush1.bf16.msra.mxu0 0
        %1211 = vmatprep.subr.bf16.mxu0 0
        %1212 = vmatpush1.bf16.msra.mxu0 0
        %1213 = vmatprep.subr.bf16.mxu0 0
        %1214 = vmatpush1.bf16.msra.mxu0 0
        %1215 = vmatprep.subr.bf16.mxu0 0
        %1216 = vmatpush1.bf16.msra.mxu0 0
        %1217 = vmatprep.mubr.bf16.mxu0 0
        %1218 = vmatmul.mubr.bf16.gmra.mrb[0].mxu0 %v262
        %v1219 = vpop.f32.mrb[0].mxu0
        %v1220 = vadd.f32 0.0, %v1219
        %v1221 = vpop.f32.mrb[0].mxu0
        %v1222 = vadd.f32 0.0, %v1221
        %v1223 = vpop.f32.mrb[0].mxu0
        %v1224 = vadd.f32 0.0, %v1223
        %v1225 = vpop.f32.mrb[0].mxu0
        %v1226 = vadd.f32 0.0, %v1225
        %1227 = vmatprep.mubr.bf16.mxu0 0
        %1228 = vmatmul.mubr.bf16.gmra.mrb[0].mxu0 %v263
        %v1229 = vpop.f32.mrb[0].mxu0
        %v1230 = vadd.f32 0.0, %v1229
        %v1231 = vpop.f32.mrb[0].mxu0
        %v1232 = vadd.f32 0.0, %v1231
        %v1233 = vpop.f32.mrb[0].mxu0
        %v1234 = vadd.f32 0.0, %v1233
        %v1235 = vpop.f32.mrb[0].mxu0
        %v1236 = vadd.f32 0.0, %v1235
        %1237 = vmatprep.mubr.bf16.mxu0 0
        %1238 = vmatmul.mubr.bf16.gmra.mrb[0].mxu0 %v264
        %v1239 = vpop.f32.mrb[0].mxu0
        %v1240 = vadd.f32 0.0, %v1239
        %v1241 = vpop.f32.mrb[0].mxu0
        %v1242 = vadd.f32 0.0, %v1241
        %v1243 = vpop.f32.mrb[0].mxu0
        %v1244 = vadd.f32 0.0, %v1243
        %v1245 = vpop.f32.mrb[0].mxu0
        %v1246 = vadd.f32 0.0, %v1245
        %1247 = vmatprep.mubr.bf16.mxu0 0
        %1248 = vmatmul.mubr.bf16.gmra.mrb[0].mxu0 %v265
        %v1249 = vpop.f32.mrb[0].mxu0
        %v1250 = vadd.f32 0.0, %v1249
        %v1251 = vpop.f32.mrb[0].mxu0
        %v1252 = vadd.f32 0.0, %v1251
        %v1253 = vpop.f32.mrb[0].mxu0
        %v1254 = vadd.f32 0.0, %v1253
        %v1255 = vpop.f32.mrb[0].mxu0
        %v1256 = vadd.f32 0.0, %v1255
        %1257 = vmatprep.mubr.bf16.mxu0 0
        %1258 = vmatmul.mubr.bf16.gmra.mrb[0].mxu0 %v266
        %v1259 = vpop.f32.mrb[0].mxu0
        %v1260 = vadd.f32 0.0, %v1259
        %v1261 = vpop.f32.mrb[0].mxu0
        %v1262 = vadd.f32 0.0, %v1261
        %v1263 = vpop.f32.mrb[0].mxu0
        %v1264 = vadd.f32 0.0, %v1263
        %v1265 = vpop.f32.mrb[0].mxu0
        %v1266 = vadd.f32 0.0, %v1265
        %1267 = vmatprep.mubr.bf16.mxu0 0
        %1268 = vmatmul.mubr.bf16.gmra.mrb[0].mxu0 %v267
        %v1269 = vpop.f32.mrb[0].mxu0
        %v1270 = vadd.f32 0.0, %v1269
        %v1271 = vpop.f32.mrb[0].mxu0
        %v1272 = vadd.f32 0.0, %v1271
        %v1273 = vpop.f32.mrb[0].mxu0
        %v1274 = vadd.f32 0.0, %v1273
        %v1275 = vpop.f32.mrb[0].mxu0
        %v1276 = vadd.f32 0.0, %v1275
        %1277 = vmatprep.mubr.bf16.mxu0 0
        %1278 = vmatmul.mubr.bf16.gmra.mrb[0].mxu0 %v268
        %v1279 = vpop.f32.mrb[0].mxu0
        %v1280 = vadd.f32 0.0, %v1279
        %v1281 = vpop.f32.mrb[0].mxu0
        %v1282 = vadd.f32 0.0, %v1281
        %v1283 = vpop.f32.mrb[0].mxu0
        %v1284 = vadd.f32 0.0, %v1283
        %v1285 = vpop.f32.mrb[0].mxu0
        %v1286 = vadd.f32 0.0, %v1285
        %1287 = vmatprep.mubr.bf16.mxu0 0
        %1288 = vmatmul.mubr.bf16.gmra.mrb[0].mxu0 %v269
        %v1289 = vpop.f32.mrb[0].mxu0
        %v1290 = vadd.f32 0.0, %v1289
        %v1291 = vpop.f32.mrb[0].mxu0
        %v1292 = vadd.f32 0.0, %v1291
        %v1293 = vpop.f32.mrb[0].mxu0
        %v1294 = vadd.f32 0.0, %v1293
        %v1295 = vpop.f32.mrb[0].mxu0
        %v1296 = vadd.f32 0.0, %v1295
        %1297 = vdwg.mxu0
        %1298 = vmatprep.subr.bf16.mxu0 %v663
        %1299 = vmatpush1.bf16.msra.mxu0 %v662
        %1300 = vmatprep.subr.bf16.mxu0 %v675
        %1301 = vmatpush1.bf16.msra.mxu0 %v674
        %1302 = vmatprep.subr.bf16.mxu0 %v687
        %1303 = vmatpush1.bf16.msra.mxu0 %v686
        %1304 = vmatprep.subr.bf16.mxu0 %v699
        %1305 = vmatpush1.bf16.msra.mxu0 %v698
        %1306 = vmatprep.subr.bf16.mxu0 %v711
        %1307 = vmatpush1.bf16.msra.mxu0 %v710
        %1308 = vmatprep.subr.bf16.mxu0 %v723
        %1309 = vmatpush1.bf16.msra.mxu0 %v722
        %1310 = vmatprep.subr.bf16.mxu0 %v735
        %1311 = vmatpush1.bf16.msra.mxu0 %v734
        %1312 = vmatprep.subr.bf16.mxu0 %v747
        %1313 = vmatpush1.bf16.msra.mxu0 %v746
        %1314 = vmatprep.subr.bf16.mxu0 0
        %1315 = vmatpush1.bf16.msra.mxu0 0
        %1316 = vmatprep.subr.bf16.mxu0 0
        %1317 = vmatpush1.bf16.msra.mxu0 0
        %1318 = vmatprep.subr.bf16.mxu0 0
        %1319 = vmatpush1.bf16.msra.mxu0 0
        %1320 = vmatprep.subr.bf16.mxu0 0
        %1321 = vmatpush1.bf16.msra.mxu0 0
        %1322 = vmatprep.subr.bf16.mxu0 0
        %1323 = vmatpush1.bf16.msra.mxu0 0
        %1324 = vmatprep.subr.bf16.mxu0 0
        %1325 = vmatpush1.bf16.msra.mxu0 0
        %1326 = vmatprep.subr.bf16.mxu0 0
        %1327 = vmatpush1.bf16.msra.mxu0 0
        %1328 = vmatprep.subr.bf16.mxu0 0
        %1329 = vmatpush1.bf16.msra.mxu0 0
        %1330 = vmatprep.mubr.bf16.mxu0 0
        %1331 = vmatmul.mubr.bf16.gmra.mrb[0].mxu0 %v262
        %v1332 = vpop.f32.mrb[0].mxu0
        %v1333 = vadd.f32 0.0, %v1332
        %v1334 = vpop.f32.mrb[0].mxu0
        %v1335 = vadd.f32 0.0, %v1334
        %v1336 = vpop.f32.mrb[0].mxu0
        %v1337 = vadd.f32 0.0, %v1336
        %v1338 = vpop.f32.mrb[0].mxu0
        %v1339 = vadd.f32 0.0, %v1338
        %1340 = vmatprep.mubr.bf16.mxu0 0
        %1341 = vmatmul.mubr.bf16.gmra.mrb[0].mxu0 %v263
        %v1342 = vpop.f32.mrb[0].mxu0
        %v1343 = vadd.f32 0.0, %v1342
        %v1344 = vpop.f32.mrb[0].mxu0
        %v1345 = vadd.f32 0.0, %v1344
        %v1346 = vpop.f32.mrb[0].mxu0
        %v1347 = vadd.f32 0.0, %v1346
        %v1348 = vpop.f32.mrb[0].mxu0
        %v1349 = vadd.f32 0.0, %v1348
        %1350 = vmatprep.mubr.bf16.mxu0 0
        %1351 = vmatmul.mubr.bf16.gmra.mrb[0].mxu0 %v264
        %v1352 = vpop.f32.mrb[0].mxu0
        %v1353 = vadd.f32 0.0, %v1352
        %v1354 = vpop.f32.mrb[0].mxu0
        %v1355 = vadd.f32 0.0, %v1354
        %v1356 = vpop.f32.mrb[0].mxu0
        %v1357 = vadd.f32 0.0, %v1356
        %v1358 = vpop.f32.mrb[0].mxu0
        %v1359 = vadd.f32 0.0, %v1358
        %1360 = vmatprep.mubr.bf16.mxu0 0
        %1361 = vmatmul.mubr.bf16.gmra.mrb[0].mxu0 %v265
        %v1362 = vpop.f32.mrb[0].mxu0
        %v1363 = vadd.f32 0.0, %v1362
        %v1364 = vpop.f32.mrb[0].mxu0
        %v1365 = vadd.f32 0.0, %v1364
        %v1366 = vpop.f32.mrb[0].mxu0
        %v1367 = vadd.f32 0.0, %v1366
        %v1368 = vpop.f32.mrb[0].mxu0
        %v1369 = vadd.f32 0.0, %v1368
        %1370 = vmatprep.mubr.bf16.mxu0 0
        %1371 = vmatmul.mubr.bf16.gmra.mrb[0].mxu0 %v266
        %v1372 = vpop.f32.mrb[0].mxu0
        %v1373 = vadd.f32 0.0, %v1372
        %v1374 = vpop.f32.mrb[0].mxu0
        %v1375 = vadd.f32 0.0, %v1374
        %v1376 = vpop.f32.mrb[0].mxu0
        %v1377 = vadd.f32 0.0, %v1376
        %v1378 = vpop.f32.mrb[0].mxu0
        %v1379 = vadd.f32 0.0, %v1378
        %1380 = vmatprep.mubr.bf16.mxu0 0
        %1381 = vmatmul.mubr.bf16.gmra.mrb[0].mxu0 %v267
        %v1382 = vpop.f32.mrb[0].mxu0
        %v1383 = vadd.f32 0.0, %v1382
        %v1384 = vpop.f32.mrb[0].mxu0
        %v1385 = vadd.f32 0.0, %v1384
        %v1386 = vpop.f32.mrb[0].mxu0
        %v1387 = vadd.f32 0.0, %v1386
        %v1388 = vpop.f32.mrb[0].mxu0
        %v1389 = vadd.f32 0.0, %v1388
        %1390 = vmatprep.mubr.bf16.mxu0 0
        %1391 = vmatmul.mubr.bf16.gmra.mrb[0].mxu0 %v268
        %v1392 = vpop.f32.mrb[0].mxu0
        %v1393 = vadd.f32 0.0, %v1392
        %v1394 = vpop.f32.mrb[0].mxu0
        %v1395 = vadd.f32 0.0, %v1394
        %v1396 = vpop.f32.mrb[0].mxu0
        %v1397 = vadd.f32 0.0, %v1396
        %v1398 = vpop.f32.mrb[0].mxu0
        %v1399 = vadd.f32 0.0, %v1398
        %1400 = vmatprep.mubr.bf16.mxu0 0
        %1401 = vmatmul.mubr.bf16.gmra.mrb[0].mxu0 %v269
        %v1402 = vpop.f32.mrb[0].mxu0
        %v1403 = vadd.f32 0.0, %v1402
        %v1404 = vpop.f32.mrb[0].mxu0
        %v1405 = vadd.f32 0.0, %v1404
        %v1406 = vpop.f32.mrb[0].mxu0
        %v1407 = vadd.f32 0.0, %v1406
        %v1408 = vpop.f32.mrb[0].mxu0
        %v1409 = vadd.f32 0.0, %v1408
        %1410 = vdwg.mxu0
        %1411 = vmatprep.subr.bf16.mxu0 %v665
        %1412 = vmatpush1.bf16.msra.mxu0 %v664
        %1413 = vmatprep.subr.bf16.mxu0 %v677
        %1414 = vmatpush1.bf16.msra.mxu0 %v676
        %1415 = vmatprep.subr.bf16.mxu0 %v689
        %1416 = vmatpush1.bf16.msra.mxu0 %v688
        %1417 = vmatprep.subr.bf16.mxu0 %v701
        %1418 = vmatpush1.bf16.msra.mxu0 %v700
        %1419 = vmatprep.subr.bf16.mxu0 %v713
        %1420 = vmatpush1.bf16.msra.mxu0 %v712
        %1421 = vmatprep.subr.bf16.mxu0 %v725
        %1422 = vmatpush1.bf16.msra.mxu0 %v724
        %1423 = vmatprep.subr.bf16.mxu0 %v737
        %1424 = vmatpush1.bf16.msra.mxu0 %v736
        %1425 = vmatprep.subr.bf16.mxu0 %v749
        %1426 = vmatpush1.bf16.msra.mxu0 %v748
        %1427 = vmatprep.subr.bf16.mxu0 0
        %1428 = vmatpush1.bf16.msra.mxu0 0
        %1429 = vmatprep.subr.bf16.mxu0 0
        %1430 = vmatpush1.bf16.msra.mxu0 0
        %1431 = vmatprep.subr.bf16.mxu0 0
        %1432 = vmatpush1.bf16.msra.mxu0 0
        %1433 = vmatprep.subr.bf16.mxu0 0
        %1434 = vmatpush1.bf16.msra.mxu0 0
        %1435 = vmatprep.subr.bf16.mxu0 0
        %1436 = vmatpush1.bf16.msra.mxu0 0
        %1437 = vmatprep.subr.bf16.mxu0 0
        %1438 = vmatpush1.bf16.msra.mxu0 0
        %1439 = vmatprep.subr.bf16.mxu0 0
        %1440 = vmatpush1.bf16.msra.mxu0 0
        %1441 = vmatprep.subr.bf16.mxu0 0
        %1442 = vmatpush1.bf16.msra.mxu0 0
        %1443 = vmatprep.mubr.bf16.mxu0 0
        %1444 = vmatmul.mubr.bf16.gmra.mrb[0].mxu0 %v262
        %v1445 = vpop.f32.mrb[0].mxu0
        %v1446 = vadd.f32 0.0, %v1445
        %v1447 = vpop.f32.mrb[0].mxu0
        %v1448 = vadd.f32 0.0, %v1447
        %v1449 = vpop.f32.mrb[0].mxu0
        %v1450 = vadd.f32 0.0, %v1449
        %v1451 = vpop.f32.mrb[0].mxu0
        %v1452 = vadd.f32 0.0, %v1451
        %1453 = vmatprep.mubr.bf16.mxu0 0
        %1454 = vmatmul.mubr.bf16.gmra.mrb[0].mxu0 %v263
        %v1455 = vpop.f32.mrb[0].mxu0
        %v1456 = vadd.f32 0.0, %v1455
        %v1457 = vpop.f32.mrb[0].mxu0
        %v1458 = vadd.f32 0.0, %v1457
        %v1459 = vpop.f32.mrb[0].mxu0
        %v1460 = vadd.f32 0.0, %v1459
        %v1461 = vpop.f32.mrb[0].mxu0
        %v1462 = vadd.f32 0.0, %v1461
        %1463 = vmatprep.mubr.bf16.mxu0 0
        %1464 = vmatmul.mubr.bf16.gmra.mrb[0].mxu0 %v264
        %v1465 = vpop.f32.mrb[0].mxu0
        %v1466 = vadd.f32 0.0, %v1465
        %v1467 = vpop.f32.mrb[0].mxu0
        %v1468 = vadd.f32 0.0, %v1467
        %v1469 = vpop.f32.mrb[0].mxu0
        %v1470 = vadd.f32 0.0, %v1469
        %v1471 = vpop.f32.mrb[0].mxu0
        %v1472 = vadd.f32 0.0, %v1471
        %1473 = vmatprep.mubr.bf16.mxu0 0
        %1474 = vmatmul.mubr.bf16.gmra.mrb[0].mxu0 %v265
        %v1475 = vpop.f32.mrb[0].mxu0
        %v1476 = vadd.f32 0.0, %v1475
        %v1477 = vpop.f32.mrb[0].mxu0
        %v1478 = vadd.f32 0.0, %v1477
        %v1479 = vpop.f32.mrb[0].mxu0
        %v1480 = vadd.f32 0.0, %v1479
        %v1481 = vpop.f32.mrb[0].mxu0
        %v1482 = vadd.f32 0.0, %v1481
        %1483 = vmatprep.mubr.bf16.mxu0 0
        %1484 = vmatmul.mubr.bf16.gmra.mrb[0].mxu0 %v266
        %v1485 = vpop.f32.mrb[0].mxu0
        %v1486 = vadd.f32 0.0, %v1485
        %v1487 = vpop.f32.mrb[0].mxu0
        %v1488 = vadd.f32 0.0, %v1487
        %v1489 = vpop.f32.mrb[0].mxu0
        %v1490 = vadd.f32 0.0, %v1489
        %v1491 = vpop.f32.mrb[0].mxu0
        %v1492 = vadd.f32 0.0, %v1491
        %1493 = vmatprep.mubr.bf16.mxu0 0
        %1494 = vmatmul.mubr.bf16.gmra.mrb[0].mxu0 %v267
        %v1495 = vpop.f32.mrb[0].mxu0
        %v1496 = vadd.f32 0.0, %v1495
        %v1497 = vpop.f32.mrb[0].mxu0
        %v1498 = vadd.f32 0.0, %v1497
        %v1499 = vpop.f32.mrb[0].mxu0
        %v1500 = vadd.f32 0.0, %v1499
        %v1501 = vpop.f32.mrb[0].mxu0
        %v1502 = vadd.f32 0.0, %v1501
        %1503 = vmatprep.mubr.bf16.mxu0 0
        %1504 = vmatmul.mubr.bf16.gmra.mrb[0].mxu0 %v268
        %v1505 = vpop.f32.mrb[0].mxu0
        %v1506 = vadd.f32 0.0, %v1505
        %v1507 = vpop.f32.mrb[0].mxu0
        %v1508 = vadd.f32 0.0, %v1507
        %v1509 = vpop.f32.mrb[0].mxu0
        %v1510 = vadd.f32 0.0, %v1509
        %v1511 = vpop.f32.mrb[0].mxu0
        %v1512 = vadd.f32 0.0, %v1511
        %1513 = vmatprep.mubr.bf16.mxu0 0
        %1514 = vmatmul.mubr.bf16.gmra.mrb[0].mxu0 %v269
        %v1515 = vpop.f32.mrb[0].mxu0
        %v1516 = vadd.f32 0.0, %v1515
        %v1517 = vpop.f32.mrb[0].mxu0
        %v1518 = vadd.f32 0.0, %v1517
        %v1519 = vpop.f32.mrb[0].mxu0
        %v1520 = vadd.f32 0.0, %v1519
        %v1521 = vpop.f32.mrb[0].mxu0
        %v1522 = vadd.f32 0.0, %v1521
        %1523 = vdwg.mxu0
        %v1524 = vmul.f32 %v881, 0.088388346
        %v1525 = vmul.f32 %v885, 0.088388346
        %v1526 = vmul.f32 %v891, 0.088388346
        %v1527 = vmul.f32 %v895, 0.088388346
        %v1528 = vmul.f32 %v901, 0.088388346
        %v1529 = vmul.f32 %v905, 0.088388346
        %v1530 = vmul.f32 %v911, 0.088388346
        %v1531 = vmul.f32 %v915, 0.088388346
        %v1532 = vmul.f32 %v921, 0.088388346
        %v1533 = vmul.f32 %v925, 0.088388346
        %v1534 = vmul.f32 %v931, 0.088388346
        %v1535 = vmul.f32 %v935, 0.088388346
        %v1536 = vmul.f32 %v941, 0.088388346
        %v1537 = vmul.f32 %v945, 0.088388346
        %v1538 = vmul.f32 %v951, 0.088388346
        %v1539 = vmul.f32 %v955, 0.088388346
        %v1540 = vpack.c.bf16 %v1525, %v1524
        %v1541 = vpack.c.bf16 %v1527, %v1526
        %v1542 = vpack.c.bf16 %v1529, %v1528
        %v1543 = vpack.c.bf16 %v1531, %v1530
        %v1544 = vpack.c.bf16 %v1533, %v1532
        %v1545 = vpack.c.bf16 %v1535, %v1534
        %v1546 = vpack.c.bf16 %v1537, %v1536
        %v1547 = vpack.c.bf16 %v1539, %v1538
        %v1548 = vpack.c.bf16 %v1111, %v1107
        %v1549 = vpack.c.bf16 %v1121, %v1117
        %v1550 = vpack.c.bf16 %v1131, %v1127
        %v1551 = vpack.c.bf16 %v1141, %v1137
        %v1552 = vpack.c.bf16 %v1151, %v1147
        %v1553 = vpack.c.bf16 %v1161, %v1157
        %v1554 = vpack.c.bf16 %v1171, %v1167
        %v1555 = vpack.c.bf16 %v1181, %v1177
        %v1556 = vpack.c.bf16 %v1337, %v1333
        %v1557 = vpack.c.bf16 %v1347, %v1343
        %v1558 = vpack.c.bf16 %v1357, %v1353
        %v1559 = vpack.c.bf16 %v1367, %v1363
        %v1560 = vpack.c.bf16 %v1377, %v1373
        %v1561 = vpack.c.bf16 %v1387, %v1383
        %v1562 = vpack.c.bf16 %v1397, %v1393
        %v1563 = vpack.c.bf16 %v1407, %v1403
        %vm1564 = vcmask 523264
        %v1566 = vsel %vm1564, %v1540, 0
        %v1569 = vsel %vm1564, %v1541, 0
        %v1572 = vsel %vm1564, %v1542, 0
        %v1575 = vsel %vm1564, %v1543, 0
        %v1578 = vsel %vm1564, %v1544, 0
        %v1581 = vsel %vm1564, %v1545, 0
        %v1584 = vsel %vm1564, %v1546, 0
        %v1587 = vsel %vm1564, %v1547, 0
        %v1590 = vsel %vm1564, %v1548, 0
        %v1593 = vsel %vm1564, %v1549, 0
        %v1596 = vsel %vm1564, %v1550, 0
        %v1599 = vsel %vm1564, %v1551, 0
        %v1602 = vsel %vm1564, %v1552, 0
        %v1605 = vsel %vm1564, %v1553, 0
        %v1608 = vsel %vm1564, %v1554, 0
        %v1611 = vsel %vm1564, %v1555, 0
        %1613 = vmatprep.subr.bf16.mxu0 0
        %1614 = vmatpush1.bf16.xpose.msra.mxu0 %v1590
        %1615 = vmatprep.subr.bf16.mxu0 0
        %1616 = vmatpush1.bf16.xpose.msra.mxu0 %v1593
        %1617 = vmatprep.subr.bf16.mxu0 0
        %1618 = vmatpush1.bf16.xpose.msra.mxu0 %v1596
        %1619 = vmatprep.subr.bf16.mxu0 0
        %1620 = vmatpush1.bf16.xpose.msra.mxu0 %v1599
        %1621 = vmatprep.subr.bf16.mxu0 0
        %1622 = vmatpush1.bf16.xpose.msra.mxu0 %v1602
        %1623 = vmatprep.subr.bf16.mxu0 0
        %1624 = vmatpush1.bf16.xpose.msra.mxu0 %v1605
        %1625 = vmatprep.subr.bf16.mxu0 0
        %1626 = vmatpush1.bf16.xpose.msra.mxu0 %v1608
        %1627 = vmatprep.subr.bf16.mxu0 0
        %1628 = vmatpush1.bf16.xpose.msra.mxu0 %v1611
        %1629 = vmatprep.subr.bf16.mxu0 0
        %1630 = vmatpush1.bf16.xpose.msra.mxu0 0
        %1631 = vmatprep.subr.bf16.mxu0 0
        %1632 = vmatpush1.bf16.xpose.msra.mxu0 0
        %1633 = vmatprep.subr.bf16.mxu0 0
        %1634 = vmatpush1.bf16.xpose.msra.mxu0 0
        %1635 = vmatprep.subr.bf16.mxu0 0
        %1636 = vmatpush1.bf16.xpose.msra.mxu0 0
        %1637 = vmatprep.subr.bf16.mxu0 0
        %1638 = vmatpush1.bf16.xpose.msra.mxu0 0
        %1639 = vmatprep.subr.bf16.mxu0 0
        %1640 = vmatpush1.bf16.xpose.msra.mxu0 0
        %1641 = vmatprep.subr.bf16.mxu0 0
        %1642 = vmatpush1.bf16.xpose.msra.mxu0 0
        %1643 = vmatprep.subr.bf16.mxu0 0
        %1644 = vmatpush1.bf16.xpose.msra.mxu0 0
        %1645 = vmatprep.mubr.bf16.mxu0 0
        %1646 = vmatmul.mubr.bf16.gmra.mrb[0].mxu0 %v1566
        %v1647 = vpop.f32.mrb[0].mxu0
        %v1648 = vadd.f32 0.0, %v1647
        %v1649 = vpop.f32.mrb[0].mxu0
        %v1650 = vpop.f32.mrb[0].mxu0
        %v1651 = vadd.f32 0.0, %v1650
        %v1652 = vpop.f32.mrb[0].mxu0
        %1653 = vmatprep.mubr.bf16.mxu0 0
        %1654 = vmatmul.mubr.bf16.gmra.mrb[0].mxu0 %v1569
        %v1655 = vpop.f32.mrb[0].mxu0
        %v1656 = vadd.f32 0.0, %v1655
        %v1657 = vpop.f32.mrb[0].mxu0
        %v1658 = vpop.f32.mrb[0].mxu0
        %v1659 = vadd.f32 0.0, %v1658
        %v1660 = vpop.f32.mrb[0].mxu0
        %1661 = vmatprep.mubr.bf16.mxu0 0
        %1662 = vmatmul.mubr.bf16.gmra.mrb[0].mxu0 %v1572
        %v1663 = vpop.f32.mrb[0].mxu0
        %v1664 = vadd.f32 0.0, %v1663
        %v1665 = vpop.f32.mrb[0].mxu0
        %v1666 = vpop.f32.mrb[0].mxu0
        %v1667 = vadd.f32 0.0, %v1666
        %v1668 = vpop.f32.mrb[0].mxu0
        %1669 = vmatprep.mubr.bf16.mxu0 0
        %1670 = vmatmul.mubr.bf16.gmra.mrb[0].mxu0 %v1575
        %v1671 = vpop.f32.mrb[0].mxu0
        %v1672 = vadd.f32 0.0, %v1671
        %v1673 = vpop.f32.mrb[0].mxu0
        %v1674 = vpop.f32.mrb[0].mxu0
        %v1675 = vadd.f32 0.0, %v1674
        %v1676 = vpop.f32.mrb[0].mxu0
        %1677 = vmatprep.mubr.bf16.mxu0 0
        %1678 = vmatmul.mubr.bf16.gmra.mrb[0].mxu0 %v1578
        %v1679 = vpop.f32.mrb[0].mxu0
        %v1680 = vadd.f32 0.0, %v1679
        %v1681 = vpop.f32.mrb[0].mxu0
        %v1682 = vpop.f32.mrb[0].mxu0
        %v1683 = vadd.f32 0.0, %v1682
        %v1684 = vpop.f32.mrb[0].mxu0
        %1685 = vmatprep.mubr.bf16.mxu0 0
        %1686 = vmatmul.mubr.bf16.gmra.mrb[0].mxu0 %v1581
        %v1687 = vpop.f32.mrb[0].mxu0
        %v1688 = vadd.f32 0.0, %v1687
        %v1689 = vpop.f32.mrb[0].mxu0
        %v1690 = vpop.f32.mrb[0].mxu0
        %v1691 = vadd.f32 0.0, %v1690
        %v1692 = vpop.f32.mrb[0].mxu0
        %1693 = vmatprep.mubr.bf16.mxu0 0
        %1694 = vmatmul.mubr.bf16.gmra.mrb[0].mxu0 %v1584
        %v1695 = vpop.f32.mrb[0].mxu0
        %v1696 = vadd.f32 0.0, %v1695
        %v1697 = vpop.f32.mrb[0].mxu0
        %v1698 = vpop.f32.mrb[0].mxu0
        %v1699 = vadd.f32 0.0, %v1698
        %v1700 = vpop.f32.mrb[0].mxu0
        %1701 = vmatprep.mubr.bf16.mxu0 0
        %1702 = vmatmul.mubr.bf16.gmra.mrb[0].mxu0 %v1587
        %v1703 = vpop.f32.mrb[0].mxu0
        %v1704 = vadd.f32 0.0, %v1703
        %v1705 = vpop.f32.mrb[0].mxu0
        %v1706 = vpop.f32.mrb[0].mxu0
        %v1707 = vadd.f32 0.0, %v1706
        %v1708 = vpop.f32.mrb[0].mxu0
        %1709 = vdwg.mxu0
        %1710 = vmax.xlane.f32.xlu0 %v1648
        %v1711 = vpop.xlane.xlu0 %1710
        %1712 = vmax.xlane.f32.xlu0 %v1651
        %v1713 = vpop.xlane.xlu0 %1712
        %1714 = vmax.xlane.f32.xlu0 %v1656
        %v1715 = vpop.xlane.xlu0 %1714
        %1716 = vmax.xlane.f32.xlu0 %v1659
        %v1717 = vpop.xlane.xlu0 %1716
        %1718 = vmax.xlane.f32.xlu0 %v1664
        %v1719 = vpop.xlane.xlu0 %1718
        %1720 = vmax.xlane.f32.xlu0 %v1667
        %v1721 = vpop.xlane.xlu0 %1720
        %1722 = vmax.xlane.f32.xlu0 %v1672
        %v1723 = vpop.xlane.xlu0 %1722
        %1724 = vmax.xlane.f32.xlu0 %v1675
        %v1725 = vpop.xlane.xlu0 %1724
        %1726 = vmax.xlane.f32.xlu0 %v1680
        %v1727 = vpop.xlane.xlu0 %1726
        %1728 = vmax.xlane.f32.xlu0 %v1683
        %v1729 = vpop.xlane.xlu0 %1728
        %1730 = vmax.xlane.f32.xlu0 %v1688
        %v1731 = vpop.xlane.xlu0 %1730
        %1732 = vmax.xlane.f32.xlu0 %v1691
        %v1733 = vpop.xlane.xlu0 %1732
        %1734 = vmax.xlane.f32.xlu0 %v1696
        %v1735 = vpop.xlane.xlu0 %1734
        %1736 = vmax.xlane.f32.xlu0 %v1699
        %v1737 = vpop.xlane.xlu0 %1736
        %1738 = vmax.xlane.f32.xlu0 %v1704
        %v1739 = vpop.xlane.xlu0 %1738
        %1740 = vmax.xlane.f32.xlu0 %v1707
        %v1741 = vpop.xlane.xlu0 %1740
        %v1742 = vsub.f32 %v1648, %v1711
        %v1743 = vsub.f32 %v1651, %v1713
        %v1744 = vsub.f32 %v1656, %v1715
        %v1745 = vsub.f32 %v1659, %v1717
        %v1746 = vsub.f32 %v1664, %v1719
        %v1747 = vsub.f32 %v1667, %v1721
        %v1748 = vsub.f32 %v1672, %v1723
        %v1749 = vsub.f32 %v1675, %v1725
        %v1750 = vsub.f32 %v1680, %v1727
        %v1751 = vsub.f32 %v1683, %v1729
        %v1752 = vsub.f32 %v1688, %v1731
        %v1753 = vsub.f32 %v1691, %v1733
        %v1754 = vsub.f32 %v1696, %v1735
        %v1755 = vsub.f32 %v1699, %v1737
        %v1756 = vsub.f32 %v1704, %v1739
        %v1757 = vsub.f32 %v1707, %v1741
        %v1758 = vmul.f32 %v1742, 1.442695
        %v1759 = vpow.pop %v1758
        %v1760 = vmul.f32 %v1743, 1.442695
        %v1761 = vpow.pop %v1760
        %v1762 = vmul.f32 %v1744, 1.442695
        %v1763 = vpow.pop %v1762
        %v1764 = vmul.f32 %v1745, 1.442695
        %v1765 = vpow.pop %v1764
        %v1766 = vmul.f32 %v1746, 1.442695
        %v1767 = vpow.pop %v1766
        %v1768 = vmul.f32 %v1747, 1.442695
        %v1769 = vpow.pop %v1768
        %v1770 = vmul.f32 %v1748, 1.442695
        %v1771 = vpow.pop %v1770
        %v1772 = vmul.f32 %v1749, 1.442695
        %v1773 = vpow.pop %v1772
        %v1774 = vmul.f32 %v1750, 1.442695
        %v1775 = vpow.pop %v1774
        %v1776 = vmul.f32 %v1751, 1.442695
        %v1777 = vpow.pop %v1776
        %v1778 = vmul.f32 %v1752, 1.442695
        %v1779 = vpow.pop %v1778
        %v1780 = vmul.f32 %v1753, 1.442695
        %v1781 = vpow.pop %v1780
        %v1782 = vmul.f32 %v1754, 1.442695
        %v1783 = vpow.pop %v1782
        %v1784 = vmul.f32 %v1755, 1.442695
        %v1785 = vpow.pop %v1784
        %v1786 = vmul.f32 %v1756, 1.442695
        %v1787 = vpow.pop %v1786
        %v1788 = vmul.f32 %v1757, 1.442695
        %v1789 = vpow.pop %v1788
        %1790 = vadd.xlane.f32.xlu0 %v1759
        %v1791 = vpop.xlane.xlu0 %1790
        %1792 = vadd.xlane.f32.xlu0 %v1761
        %v1793 = vpop.xlane.xlu0 %1792
        %1794 = vadd.xlane.f32.xlu0 %v1763
        %v1795 = vpop.xlane.xlu0 %1794
        %1796 = vadd.xlane.f32.xlu0 %v1765
        %v1797 = vpop.xlane.xlu0 %1796
        %1798 = vadd.xlane.f32.xlu0 %v1767
        %v1799 = vpop.xlane.xlu0 %1798
        %1800 = vadd.xlane.f32.xlu0 %v1769
        %v1801 = vpop.xlane.xlu0 %1800
        %1802 = vadd.xlane.f32.xlu0 %v1771
        %v1803 = vpop.xlane.xlu0 %1802
        %1804 = vadd.xlane.f32.xlu0 %v1773
        %v1805 = vpop.xlane.xlu0 %1804
        %1806 = vadd.xlane.f32.xlu0 %v1775
        %v1807 = vpop.xlane.xlu0 %1806
        %1808 = vadd.xlane.f32.xlu0 %v1777
        %v1809 = vpop.xlane.xlu0 %1808
        %1810 = vadd.xlane.f32.xlu0 %v1779
        %v1811 = vpop.xlane.xlu0 %1810
        %1812 = vadd.xlane.f32.xlu0 %v1781
        %v1813 = vpop.xlane.xlu0 %1812
        %1814 = vadd.xlane.f32.xlu0 %v1783
        %v1815 = vpop.xlane.xlu0 %1814
        %1816 = vadd.xlane.f32.xlu0 %v1785
        %v1817 = vpop.xlane.xlu0 %1816
        %1818 = vadd.xlane.f32.xlu0 %v1787
        %v1819 = vpop.xlane.xlu0 %1818
        %1820 = vadd.xlane.f32.xlu0 %v1789
        %v1821 = vpop.xlane.xlu0 %1820
        %v1822 = vrcp.pop %v1791
        %v1823 = vrcp.pop %v1793
        %v1824 = vrcp.pop %v1795
        %v1825 = vrcp.pop %v1797
        %v1826 = vrcp.pop %v1799
        %v1827 = vrcp.pop %v1801
        %v1828 = vrcp.pop %v1803
        %v1829 = vrcp.pop %v1805
        %v1830 = vrcp.pop %v1807
        %v1831 = vrcp.pop %v1809
        %v1832 = vrcp.pop %v1811
        %v1833 = vrcp.pop %v1813
        %v1834 = vrcp.pop %v1815
        %v1835 = vrcp.pop %v1817
        %v1836 = vrcp.pop %v1819
        %v1837 = vrcp.pop %v1821
        %v1838 = vmul.f32 %v1759, %v1822
        %v1839 = vmul.f32 %v1761, %v1823
        %v1840 = vmul.f32 %v1763, %v1824
        %v1841 = vmul.f32 %v1765, %v1825
        %v1842 = vmul.f32 %v1767, %v1826
        %v1843 = vmul.f32 %v1769, %v1827
        %v1844 = vmul.f32 %v1771, %v1828
        %v1845 = vmul.f32 %v1773, %v1829
        %v1846 = vmul.f32 %v1775, %v1830
        %v1847 = vmul.f32 %v1777, %v1831
        %v1848 = vmul.f32 %v1779, %v1832
        %v1849 = vmul.f32 %v1781, %v1833
        %v1850 = vmul.f32 %v1783, %v1834
        %v1851 = vmul.f32 %v1785, %v1835
        %v1852 = vmul.f32 %v1787, %v1836
        %v1853 = vmul.f32 %v1789, %v1837
        %v1854 = vpack.c.bf16 %v1839, %v1838
        %v1855 = vpack.c.bf16 %v1841, %v1840
        %v1856 = vpack.c.bf16 %v1843, %v1842
        %v1857 = vpack.c.bf16 %v1845, %v1844
        %v1858 = vpack.c.bf16 %v1847, %v1846
        %v1859 = vpack.c.bf16 %v1849, %v1848
        %v1860 = vpack.c.bf16 %v1851, %v1850
        %v1861 = vpack.c.bf16 %v1853, %v1852
        %1862 = vmatprep.subr.bf16.mxu0 0
        %1863 = vmatpush1.bf16.msra.mxu0 %v1556
        %1864 = vmatprep.subr.bf16.mxu0 0
        %1865 = vmatpush1.bf16.msra.mxu0 %v1557
        %1866 = vmatprep.subr.bf16.mxu0 0
        %1867 = vmatpush1.bf16.msra.mxu0 %v1558
        %1868 = vmatprep.subr.bf16.mxu0 0
        %1869 = vmatpush1.bf16.msra.mxu0 %v1559
        %1870 = vmatprep.subr.bf16.mxu0 0
        %1871 = vmatpush1.bf16.msra.mxu0 %v1560
        %1872 = vmatprep.subr.bf16.mxu0 0
        %1873 = vmatpush1.bf16.msra.mxu0 %v1561
        %1874 = vmatprep.subr.bf16.mxu0 0
        %1875 = vmatpush1.bf16.msra.mxu0 %v1562
        %1876 = vmatprep.subr.bf16.mxu0 0
        %1877 = vmatpush1.bf16.msra.mxu0 %v1563
        %1878 = vmatprep.subr.bf16.mxu0 0
        %1879 = vmatpush1.bf16.msra.mxu0 0
        %1880 = vmatprep.subr.bf16.mxu0 0
        %1881 = vmatpush1.bf16.msra.mxu0 0
        %1882 = vmatprep.subr.bf16.mxu0 0
        %1883 = vmatpush1.bf16.msra.mxu0 0
        %1884 = vmatprep.subr.bf16.mxu0 0
        %1885 = vmatpush1.bf16.msra.mxu0 0
        %1886 = vmatprep.subr.bf16.mxu0 0
        %1887 = vmatpush1.bf16.msra.mxu0 0
        %1888 = vmatprep.subr.bf16.mxu0 0
        %1889 = vmatpush1.bf16.msra.mxu0 0
        %1890 = vmatprep.subr.bf16.mxu0 0
        %1891 = vmatpush1.bf16.msra.mxu0 0
        %1892 = vmatprep.subr.bf16.mxu0 0
        %1893 = vmatpush1.bf16.msra.mxu0 0
        %1894 = vmatprep.mubr.bf16.mxu0 0
        %1895 = vmatmul.mubr.bf16.gmra.mrb[0].mxu0 %v1854
        %v1896 = vpop.f32.mrb[0].mxu0
        %v1897 = vadd.f32 0.0, %v1896
        %v1898 = vpop.f32.mrb[0].mxu0
        %v1899 = vpop.f32.mrb[0].mxu0
        %v1900 = vadd.f32 0.0, %v1899
        %v1901 = vpop.f32.mrb[0].mxu0
        %1902 = vmatprep.mubr.bf16.mxu0 0
        %1903 = vmatmul.mubr.bf16.gmra.mrb[0].mxu0 %v1855
        %v1904 = vpop.f32.mrb[0].mxu0
        %v1905 = vadd.f32 0.0, %v1904
        %v1906 = vpop.f32.mrb[0].mxu0
        %v1907 = vpop.f32.mrb[0].mxu0
        %v1908 = vadd.f32 0.0, %v1907
        %v1909 = vpop.f32.mrb[0].mxu0
        %1910 = vmatprep.mubr.bf16.mxu0 0
        %1911 = vmatmul.mubr.bf16.gmra.mrb[0].mxu0 %v1856
        %v1912 = vpop.f32.mrb[0].mxu0
        %v1913 = vadd.f32 0.0, %v1912
        %v1914 = vpop.f32.mrb[0].mxu0
        %v1915 = vpop.f32.mrb[0].mxu0
        %v1916 = vadd.f32 0.0, %v1915
        %v1917 = vpop.f32.mrb[0].mxu0
        %1918 = vmatprep.mubr.bf16.mxu0 0
        %1919 = vmatmul.mubr.bf16.gmra.mrb[0].mxu0 %v1857
        %v1920 = vpop.f32.mrb[0].mxu0
        %v1921 = vadd.f32 0.0, %v1920
        %v1922 = vpop.f32.mrb[0].mxu0
        %v1923 = vpop.f32.mrb[0].mxu0
        %v1924 = vadd.f32 0.0, %v1923
        %v1925 = vpop.f32.mrb[0].mxu0
        %1926 = vmatprep.mubr.bf16.mxu0 0
        %1927 = vmatmul.mubr.bf16.gmra.mrb[0].mxu0 %v1858
        %v1928 = vpop.f32.mrb[0].mxu0
        %v1929 = vadd.f32 0.0, %v1928
        %v1930 = vpop.f32.mrb[0].mxu0
        %v1931 = vpop.f32.mrb[0].mxu0
        %v1932 = vadd.f32 0.0, %v1931
        %v1933 = vpop.f32.mrb[0].mxu0
        %1934 = vmatprep.mubr.bf16.mxu0 0
        %1935 = vmatmul.mubr.bf16.gmra.mrb[0].mxu0 %v1859
        %v1936 = vpop.f32.mrb[0].mxu0
        %v1937 = vadd.f32 0.0, %v1936
        %v1938 = vpop.f32.mrb[0].mxu0
        %v1939 = vpop.f32.mrb[0].mxu0
        %v1940 = vadd.f32 0.0, %v1939
        %v1941 = vpop.f32.mrb[0].mxu0
        %1942 = vmatprep.mubr.bf16.mxu0 0
        %1943 = vmatmul.mubr.bf16.gmra.mrb[0].mxu0 %v1860
        %v1944 = vpop.f32.mrb[0].mxu0
        %v1945 = vadd.f32 0.0, %v1944
        %v1946 = vpop.f32.mrb[0].mxu0
        %v1947 = vpop.f32.mrb[0].mxu0
        %v1948 = vadd.f32 0.0, %v1947
        %v1949 = vpop.f32.mrb[0].mxu0
        %1950 = vmatprep.mubr.bf16.mxu0 0
        %1951 = vmatmul.mubr.bf16.gmra.mrb[0].mxu0 %v1861
        %v1952 = vpop.f32.mrb[0].mxu0
        %v1953 = vadd.f32 0.0, %v1952
        %v1954 = vpop.f32.mrb[0].mxu0
        %v1955 = vpop.f32.mrb[0].mxu0
        %v1956 = vadd.f32 0.0, %v1955
        %v1957 = vpop.f32.mrb[0].mxu0
        %1958 = vdwg.mxu0
        %1967 = vrot.lane.b32.xlu0 %v1540, 64
        %v1968 = vpop.permute.xlu0 %1967
        %1969 = vrot.lane.b32.xlu0 %v1541, 64
        %v1970 = vpop.permute.xlu0 %1969
        %1971 = vrot.lane.b32.xlu0 %v1542, 64
        %v1972 = vpop.permute.xlu0 %1971
        %1973 = vrot.lane.b32.xlu0 %v1543, 64
        %v1974 = vpop.permute.xlu0 %1973
        %1975 = vrot.lane.b32.xlu0 %v1544, 64
        %v1976 = vpop.permute.xlu0 %1975
        %1977 = vrot.lane.b32.xlu0 %v1545, 64
        %v1978 = vpop.permute.xlu0 %1977
        %1979 = vrot.lane.b32.xlu0 %v1546, 64
        %v1980 = vpop.permute.xlu0 %1979
        %1981 = vrot.lane.b32.xlu0 %v1547, 64
        %v1982 = vpop.permute.xlu0 %1981
        %1991 = vrot.lane.b32.xlu0 %v1548, 64
        %v1992 = vpop.permute.xlu0 %1991
        %1993 = vrot.lane.b32.xlu0 %v1549, 64
        %v1994 = vpop.permute.xlu0 %1993
        %1995 = vrot.lane.b32.xlu0 %v1550, 64
        %v1996 = vpop.permute.xlu0 %1995
        %1997 = vrot.lane.b32.xlu0 %v1551, 64
        %v1998 = vpop.permute.xlu0 %1997
        %1999 = vrot.lane.b32.xlu0 %v1552, 64
        %v2000 = vpop.permute.xlu0 %1999
        %2001 = vrot.lane.b32.xlu0 %v1553, 64
        %v2002 = vpop.permute.xlu0 %2001
        %2003 = vrot.lane.b32.xlu0 %v1554, 64
        %v2004 = vpop.permute.xlu0 %2003
        %2005 = vrot.lane.b32.xlu0 %v1555, 64
        %v2006 = vpop.permute.xlu0 %2005
        %v2008 = vsel %vm1564, %v1968, 0
        %v2011 = vsel %vm1564, %v1970, 0
        %v2014 = vsel %vm1564, %v1972, 0
        %v2017 = vsel %vm1564, %v1974, 0
        %v2020 = vsel %vm1564, %v1976, 0
        %v2023 = vsel %vm1564, %v1978, 0
        %v2026 = vsel %vm1564, %v1980, 0
        %v2029 = vsel %vm1564, %v1982, 0
        %v2032 = vsel %vm1564, %v1992, 0
        %v2035 = vsel %vm1564, %v1994, 0
        %v2038 = vsel %vm1564, %v1996, 0
        %v2041 = vsel %vm1564, %v1998, 0
        %v2044 = vsel %vm1564, %v2000, 0
        %v2047 = vsel %vm1564, %v2002, 0
        %v2050 = vsel %vm1564, %v2004, 0
        %v2053 = vsel %vm1564, %v2006, 0
        %2055 = vmatprep.subr.bf16.mxu0 0
        %2056 = vmatpush1.bf16.xpose.msra.mxu0 %v2032
        %2057 = vmatprep.subr.bf16.mxu0 0
        %2058 = vmatpush1.bf16.xpose.msra.mxu0 %v2035
        %2059 = vmatprep.subr.bf16.mxu0 0
        %2060 = vmatpush1.bf16.xpose.msra.mxu0 %v2038
        %2061 = vmatprep.subr.bf16.mxu0 0
        %2062 = vmatpush1.bf16.xpose.msra.mxu0 %v2041
        %2063 = vmatprep.subr.bf16.mxu0 0
        %2064 = vmatpush1.bf16.xpose.msra.mxu0 %v2044
        %2065 = vmatprep.subr.bf16.mxu0 0
        %2066 = vmatpush1.bf16.xpose.msra.mxu0 %v2047
        %2067 = vmatprep.subr.bf16.mxu0 0
        %2068 = vmatpush1.bf16.xpose.msra.mxu0 %v2050
        %2069 = vmatprep.subr.bf16.mxu0 0
        %2070 = vmatpush1.bf16.xpose.msra.mxu0 %v2053
        %2071 = vmatprep.subr.bf16.mxu0 0
        %2072 = vmatpush1.bf16.xpose.msra.mxu0 0
        %2073 = vmatprep.subr.bf16.mxu0 0
        %2074 = vmatpush1.bf16.xpose.msra.mxu0 0
        %2075 = vmatprep.subr.bf16.mxu0 0
        %2076 = vmatpush1.bf16.xpose.msra.mxu0 0
        %2077 = vmatprep.subr.bf16.mxu0 0
        %2078 = vmatpush1.bf16.xpose.msra.mxu0 0
        %2079 = vmatprep.subr.bf16.mxu0 0
        %2080 = vmatpush1.bf16.xpose.msra.mxu0 0
        %2081 = vmatprep.subr.bf16.mxu0 0
        %2082 = vmatpush1.bf16.xpose.msra.mxu0 0
        %2083 = vmatprep.subr.bf16.mxu0 0
        %2084 = vmatpush1.bf16.xpose.msra.mxu0 0
        %2085 = vmatprep.subr.bf16.mxu0 0
        %2086 = vmatpush1.bf16.xpose.msra.mxu0 0
        %2087 = vmatprep.mubr.bf16.mxu0 0
        %2088 = vmatmul.mubr.bf16.gmra.mrb[0].mxu0 %v2008
        %v2089 = vpop.f32.mrb[0].mxu0
        %v2090 = vadd.f32 0.0, %v2089
        %v2091 = vpop.f32.mrb[0].mxu0
        %v2092 = vpop.f32.mrb[0].mxu0
        %v2093 = vadd.f32 0.0, %v2092
        %v2094 = vpop.f32.mrb[0].mxu0
        %2095 = vmatprep.mubr.bf16.mxu0 0
        %2096 = vmatmul.mubr.bf16.gmra.mrb[0].mxu0 %v2011
        %v2097 = vpop.f32.mrb[0].mxu0
        %v2098 = vadd.f32 0.0, %v2097
        %v2099 = vpop.f32.mrb[0].mxu0
        %v2100 = vpop.f32.mrb[0].mxu0
        %v2101 = vadd.f32 0.0, %v2100
        %v2102 = vpop.f32.mrb[0].mxu0
        %2103 = vmatprep.mubr.bf16.mxu0 0
        %2104 = vmatmul.mubr.bf16.gmra.mrb[0].mxu0 %v2014
        %v2105 = vpop.f32.mrb[0].mxu0
        %v2106 = vadd.f32 0.0, %v2105
        %v2107 = vpop.f32.mrb[0].mxu0
        %v2108 = vpop.f32.mrb[0].mxu0
        %v2109 = vadd.f32 0.0, %v2108
        %v2110 = vpop.f32.mrb[0].mxu0
        %2111 = vmatprep.mubr.bf16.mxu0 0
        %2112 = vmatmul.mubr.bf16.gmra.mrb[0].mxu0 %v2017
        %v2113 = vpop.f32.mrb[0].mxu0
        %v2114 = vadd.f32 0.0, %v2113
        %v2115 = vpop.f32.mrb[0].mxu0
        %v2116 = vpop.f32.mrb[0].mxu0
        %v2117 = vadd.f32 0.0, %v2116
        %v2118 = vpop.f32.mrb[0].mxu0
        %2119 = vmatprep.mubr.bf16.mxu0 0
        %2120 = vmatmul.mubr.bf16.gmra.mrb[0].mxu0 %v2020
        %v2121 = vpop.f32.mrb[0].mxu0
        %v2122 = vadd.f32 0.0, %v2121
        %v2123 = vpop.f32.mrb[0].mxu0
        %v2124 = vpop.f32.mrb[0].mxu0
        %v2125 = vadd.f32 0.0, %v2124
        %v2126 = vpop.f32.mrb[0].mxu0
        %2127 = vmatprep.mubr.bf16.mxu0 0
        %2128 = vmatmul.mubr.bf16.gmra.mrb[0].mxu0 %v2023
        %v2129 = vpop.f32.mrb[0].mxu0
        %v2130 = vadd.f32 0.0, %v2129
        %v2131 = vpop.f32.mrb[0].mxu0
        %v2132 = vpop.f32.mrb[0].mxu0
        %v2133 = vadd.f32 0.0, %v2132
        %v2134 = vpop.f32.mrb[0].mxu0
        %2135 = vmatprep.mubr.bf16.mxu0 0
        %2136 = vmatmul.mubr.bf16.gmra.mrb[0].mxu0 %v2026
        %v2137 = vpop.f32.mrb[0].mxu0
        %v2138 = vadd.f32 0.0, %v2137
        %v2139 = vpop.f32.mrb[0].mxu0
        %v2140 = vpop.f32.mrb[0].mxu0
        %v2141 = vadd.f32 0.0, %v2140
        %v2142 = vpop.f32.mrb[0].mxu0
        %2143 = vmatprep.mubr.bf16.mxu0 0
        %2144 = vmatmul.mubr.bf16.gmra.mrb[0].mxu0 %v2029
        %v2145 = vpop.f32.mrb[0].mxu0
        %v2146 = vadd.f32 0.0, %v2145
        %v2147 = vpop.f32.mrb[0].mxu0
        %v2148 = vpop.f32.mrb[0].mxu0
        %v2149 = vadd.f32 0.0, %v2148
        %v2150 = vpop.f32.mrb[0].mxu0
        %2151 = vdwg.mxu0
        %2152 = vmax.xlane.f32.xlu0 %v2090
        %v2153 = vpop.xlane.xlu0 %2152
        %2154 = vmax.xlane.f32.xlu0 %v2093
        %v2155 = vpop.xlane.xlu0 %2154
        %2156 = vmax.xlane.f32.xlu0 %v2098
        %v2157 = vpop.xlane.xlu0 %2156
        %2158 = vmax.xlane.f32.xlu0 %v2101
        %v2159 = vpop.xlane.xlu0 %2158
        %2160 = vmax.xlane.f32.xlu0 %v2106
        %v2161 = vpop.xlane.xlu0 %2160
        %2162 = vmax.xlane.f32.xlu0 %v2109
        %v2163 = vpop.xlane.xlu0 %2162
        %2164 = vmax.xlane.f32.xlu0 %v2114
        %v2165 = vpop.xlane.xlu0 %2164
        %2166 = vmax.xlane.f32.xlu0 %v2117
        %v2167 = vpop.xlane.xlu0 %2166
        %2168 = vmax.xlane.f32.xlu0 %v2122
        %v2169 = vpop.xlane.xlu0 %2168
        %2170 = vmax.xlane.f32.xlu0 %v2125
        %v2171 = vpop.xlane.xlu0 %2170
        %2172 = vmax.xlane.f32.xlu0 %v2130
        %v2173 = vpop.xlane.xlu0 %2172
        %2174 = vmax.xlane.f32.xlu0 %v2133
        %v2175 = vpop.xlane.xlu0 %2174
        %2176 = vmax.xlane.f32.xlu0 %v2138
        %v2177 = vpop.xlane.xlu0 %2176
        %2178 = vmax.xlane.f32.xlu0 %v2141
        %v2179 = vpop.xlane.xlu0 %2178
        %2180 = vmax.xlane.f32.xlu0 %v2146
        %v2181 = vpop.xlane.xlu0 %2180
        %2182 = vmax.xlane.f32.xlu0 %v2149
        %v2183 = vpop.xlane.xlu0 %2182
        %v2184 = vsub.f32 %v2090, %v2153
        %v2185 = vsub.f32 %v2093, %v2155
        %v2186 = vsub.f32 %v2098, %v2157
        %v2187 = vsub.f32 %v2101, %v2159
        %v2188 = vsub.f32 %v2106, %v2161
        %v2189 = vsub.f32 %v2109, %v2163
        %v2190 = vsub.f32 %v2114, %v2165
        %v2191 = vsub.f32 %v2117, %v2167
        %v2192 = vsub.f32 %v2122, %v2169
        %v2193 = vsub.f32 %v2125, %v2171
        %v2194 = vsub.f32 %v2130, %v2173
        %v2195 = vsub.f32 %v2133, %v2175
        %v2196 = vsub.f32 %v2138, %v2177
        %v2197 = vsub.f32 %v2141, %v2179
        %v2198 = vsub.f32 %v2146, %v2181
        %v2199 = vsub.f32 %v2149, %v2183
        %v2200 = vmul.f32 %v2184, 1.442695
        %v2201 = vpow.pop %v2200
        %v2202 = vmul.f32 %v2185, 1.442695
        %v2203 = vpow.pop %v2202
        %v2204 = vmul.f32 %v2186, 1.442695
        %v2205 = vpow.pop %v2204
        %v2206 = vmul.f32 %v2187, 1.442695
        %v2207 = vpow.pop %v2206
        %v2208 = vmul.f32 %v2188, 1.442695
        %v2209 = vpow.pop %v2208
        %v2210 = vmul.f32 %v2189, 1.442695
        %v2211 = vpow.pop %v2210
        %v2212 = vmul.f32 %v2190, 1.442695
        %v2213 = vpow.pop %v2212
        %v2214 = vmul.f32 %v2191, 1.442695
        %v2215 = vpow.pop %v2214
        %v2216 = vmul.f32 %v2192, 1.442695
        %v2217 = vpow.pop %v2216
        %v2218 = vmul.f32 %v2193, 1.442695
        %v2219 = vpow.pop %v2218
        %v2220 = vmul.f32 %v2194, 1.442695
        %v2221 = vpow.pop %v2220
        %v2222 = vmul.f32 %v2195, 1.442695
        %v2223 = vpow.pop %v2222
        %v2224 = vmul.f32 %v2196, 1.442695
        %v2225 = vpow.pop %v2224
        %v2226 = vmul.f32 %v2197, 1.442695
        %v2227 = vpow.pop %v2226
        %v2228 = vmul.f32 %v2198, 1.442695
        %v2229 = vpow.pop %v2228
        %v2230 = vmul.f32 %v2199, 1.442695
        %v2231 = vpow.pop %v2230
        %2232 = vadd.xlane.f32.xlu0 %v2201
        %v2233 = vpop.xlane.xlu0 %2232
        %2234 = vadd.xlane.f32.xlu0 %v2203
        %v2235 = vpop.xlane.xlu0 %2234
        %2236 = vadd.xlane.f32.xlu0 %v2205
        %v2237 = vpop.xlane.xlu0 %2236
        %2238 = vadd.xlane.f32.xlu0 %v2207
        %v2239 = vpop.xlane.xlu0 %2238
        %2240 = vadd.xlane.f32.xlu0 %v2209
        %v2241 = vpop.xlane.xlu0 %2240
        %2242 = vadd.xlane.f32.xlu0 %v2211
        %v2243 = vpop.xlane.xlu0 %2242
        %2244 = vadd.xlane.f32.xlu0 %v2213
        %v2245 = vpop.xlane.xlu0 %2244
        %2246 = vadd.xlane.f32.xlu0 %v2215
        %v2247 = vpop.xlane.xlu0 %2246
        %2248 = vadd.xlane.f32.xlu0 %v2217
        %v2249 = vpop.xlane.xlu0 %2248
        %2250 = vadd.xlane.f32.xlu0 %v2219
        %v2251 = vpop.xlane.xlu0 %2250
        %2252 = vadd.xlane.f32.xlu0 %v2221
        %v2253 = vpop.xlane.xlu0 %2252
        %2254 = vadd.xlane.f32.xlu0 %v2223
        %v2255 = vpop.xlane.xlu0 %2254
        %2256 = vadd.xlane.f32.xlu0 %v2225
        %v2257 = vpop.xlane.xlu0 %2256
        %2258 = vadd.xlane.f32.xlu0 %v2227
        %v2259 = vpop.xlane.xlu0 %2258
        %2260 = vadd.xlane.f32.xlu0 %v2229
        %v2261 = vpop.xlane.xlu0 %2260
        %2262 = vadd.xlane.f32.xlu0 %v2231
        %v2263 = vpop.xlane.xlu0 %2262
        %v2264 = vrcp.pop %v2233
        %v2265 = vrcp.pop %v2235
        %v2266 = vrcp.pop %v2237
        %v2267 = vrcp.pop %v2239
        %v2268 = vrcp.pop %v2241
        %v2269 = vrcp.pop %v2243
        %v2270 = vrcp.pop %v2245
        %v2271 = vrcp.pop %v2247
        %v2272 = vrcp.pop %v2249
        %v2273 = vrcp.pop %v2251
        %v2274 = vrcp.pop %v2253
        %v2275 = vrcp.pop %v2255
        %v2276 = vrcp.pop %v2257
        %v2277 = vrcp.pop %v2259
        %v2278 = vrcp.pop %v2261
        %v2279 = vrcp.pop %v2263
        %v2280 = vmul.f32 %v2201, %v2264
        %v2281 = vmul.f32 %v2203, %v2265
        %v2282 = vmul.f32 %v2205, %v2266
        %v2283 = vmul.f32 %v2207, %v2267
        %v2284 = vmul.f32 %v2209, %v2268
        %v2285 = vmul.f32 %v2211, %v2269
        %v2286 = vmul.f32 %v2213, %v2270
        %v2287 = vmul.f32 %v2215, %v2271
        %v2288 = vmul.f32 %v2217, %v2272
        %v2289 = vmul.f32 %v2219, %v2273
        %v2290 = vmul.f32 %v2221, %v2274
        %v2291 = vmul.f32 %v2223, %v2275
        %v2292 = vmul.f32 %v2225, %v2276
        %v2293 = vmul.f32 %v2227, %v2277
        %v2294 = vmul.f32 %v2229, %v2278
        %v2295 = vmul.f32 %v2231, %v2279
        %v2296 = vpack.c.bf16 %v2281, %v2280
        %v2297 = vpack.c.bf16 %v2283, %v2282
        %v2298 = vpack.c.bf16 %v2285, %v2284
        %v2299 = vpack.c.bf16 %v2287, %v2286
        %v2300 = vpack.c.bf16 %v2289, %v2288
        %v2301 = vpack.c.bf16 %v2291, %v2290
        %v2302 = vpack.c.bf16 %v2293, %v2292
        %v2303 = vpack.c.bf16 %v2295, %v2294
        %2312 = vrot.lane.b32.xlu0 %v1556, 64
        %v2313 = vpop.permute.xlu0 %2312
        %2314 = vrot.lane.b32.xlu0 %v1557, 64
        %v2315 = vpop.permute.xlu0 %2314
        %2316 = vrot.lane.b32.xlu0 %v1558, 64
        %v2317 = vpop.permute.xlu0 %2316
        %2318 = vrot.lane.b32.xlu0 %v1559, 64
        %v2319 = vpop.permute.xlu0 %2318
        %2320 = vrot.lane.b32.xlu0 %v1560, 64
        %v2321 = vpop.permute.xlu0 %2320
        %2322 = vrot.lane.b32.xlu0 %v1561, 64
        %v2323 = vpop.permute.xlu0 %2322
        %2324 = vrot.lane.b32.xlu0 %v1562, 64
        %v2325 = vpop.permute.xlu0 %2324
        %2326 = vrot.lane.b32.xlu0 %v1563, 64
        %v2327 = vpop.permute.xlu0 %2326
        %2336 = vmatprep.subr.bf16.mxu0 0
        %2337 = vmatpush1.bf16.msra.mxu0 %v2313
        %2338 = vmatprep.subr.bf16.mxu0 0
        %2339 = vmatpush1.bf16.msra.mxu0 %v2315
        %2340 = vmatprep.subr.bf16.mxu0 0
        %2341 = vmatpush1.bf16.msra.mxu0 %v2317
        %2342 = vmatprep.subr.bf16.mxu0 0
        %2343 = vmatpush1.bf16.msra.mxu0 %v2319
        %2344 = vmatprep.subr.bf16.mxu0 0
        %2345 = vmatpush1.bf16.msra.mxu0 %v2321
        %2346 = vmatprep.subr.bf16.mxu0 0
        %2347 = vmatpush1.bf16.msra.mxu0 %v2323
        %2348 = vmatprep.subr.bf16.mxu0 0
        %2349 = vmatpush1.bf16.msra.mxu0 %v2325
        %2350 = vmatprep.subr.bf16.mxu0 0
        %2351 = vmatpush1.bf16.msra.mxu0 %v2327
        %2352 = vmatprep.subr.bf16.mxu0 0
        %2353 = vmatpush1.bf16.msra.mxu0 0
        %2354 = vmatprep.subr.bf16.mxu0 0
        %2355 = vmatpush1.bf16.msra.mxu0 0
        %2356 = vmatprep.subr.bf16.mxu0 0
        %2357 = vmatpush1.bf16.msra.mxu0 0
        %2358 = vmatprep.subr.bf16.mxu0 0
        %2359 = vmatpush1.bf16.msra.mxu0 0
        %2360 = vmatprep.subr.bf16.mxu0 0
        %2361 = vmatpush1.bf16.msra.mxu0 0
        %2362 = vmatprep.subr.bf16.mxu0 0
        %2363 = vmatpush1.bf16.msra.mxu0 0
        %2364 = vmatprep.subr.bf16.mxu0 0
        %2365 = vmatpush1.bf16.msra.mxu0 0
        %2366 = vmatprep.subr.bf16.mxu0 0
        %2367 = vmatpush1.bf16.msra.mxu0 0
        %2368 = vmatprep.mubr.bf16.mxu0 0
        %2369 = vmatmul.mubr.bf16.gmra.mrb[0].mxu0 %v2296
        %v2370 = vpop.f32.mrb[0].mxu0
        %v2371 = vadd.f32 0.0, %v2370
        %v2372 = vpop.f32.mrb[0].mxu0
        %v2373 = vpop.f32.mrb[0].mxu0
        %v2374 = vadd.f32 0.0, %v2373
        %v2375 = vpop.f32.mrb[0].mxu0
        %2376 = vmatprep.mubr.bf16.mxu0 0
        %2377 = vmatmul.mubr.bf16.gmra.mrb[0].mxu0 %v2297
        %v2378 = vpop.f32.mrb[0].mxu0
        %v2379 = vadd.f32 0.0, %v2378
        %v2380 = vpop.f32.mrb[0].mxu0
        %v2381 = vpop.f32.mrb[0].mxu0
        %v2382 = vadd.f32 0.0, %v2381
        %v2383 = vpop.f32.mrb[0].mxu0
        %2384 = vmatprep.mubr.bf16.mxu0 0
        %2385 = vmatmul.mubr.bf16.gmra.mrb[0].mxu0 %v2298
        %v2386 = vpop.f32.mrb[0].mxu0
        %v2387 = vadd.f32 0.0, %v2386
        %v2388 = vpop.f32.mrb[0].mxu0
        %v2389 = vpop.f32.mrb[0].mxu0
        %v2390 = vadd.f32 0.0, %v2389
        %v2391 = vpop.f32.mrb[0].mxu0
        %2392 = vmatprep.mubr.bf16.mxu0 0
        %2393 = vmatmul.mubr.bf16.gmra.mrb[0].mxu0 %v2299
        %v2394 = vpop.f32.mrb[0].mxu0
        %v2395 = vadd.f32 0.0, %v2394
        %v2396 = vpop.f32.mrb[0].mxu0
        %v2397 = vpop.f32.mrb[0].mxu0
        %v2398 = vadd.f32 0.0, %v2397
        %v2399 = vpop.f32.mrb[0].mxu0
        %2400 = vmatprep.mubr.bf16.mxu0 0
        %2401 = vmatmul.mubr.bf16.gmra.mrb[0].mxu0 %v2300
        %v2402 = vpop.f32.mrb[0].mxu0
        %v2403 = vadd.f32 0.0, %v2402
        %v2404 = vpop.f32.mrb[0].mxu0
        %v2405 = vpop.f32.mrb[0].mxu0
        %v2406 = vadd.f32 0.0, %v2405
        %v2407 = vpop.f32.mrb[0].mxu0
        %2408 = vmatprep.mubr.bf16.mxu0 0
        %2409 = vmatmul.mubr.bf16.gmra.mrb[0].mxu0 %v2301
        %v2410 = vpop.f32.mrb[0].mxu0
        %v2411 = vadd.f32 0.0, %v2410
        %v2412 = vpop.f32.mrb[0].mxu0
        %v2413 = vpop.f32.mrb[0].mxu0
        %v2414 = vadd.f32 0.0, %v2413
        %v2415 = vpop.f32.mrb[0].mxu0
        %2416 = vmatprep.mubr.bf16.mxu0 0
        %2417 = vmatmul.mubr.bf16.gmra.mrb[0].mxu0 %v2302
        %v2418 = vpop.f32.mrb[0].mxu0
        %v2419 = vadd.f32 0.0, %v2418
        %v2420 = vpop.f32.mrb[0].mxu0
        %v2421 = vpop.f32.mrb[0].mxu0
        %v2422 = vadd.f32 0.0, %v2421
        %v2423 = vpop.f32.mrb[0].mxu0
        %2424 = vmatprep.mubr.bf16.mxu0 0
        %2425 = vmatmul.mubr.bf16.gmra.mrb[0].mxu0 %v2303
        %v2426 = vpop.f32.mrb[0].mxu0
        %v2427 = vadd.f32 0.0, %v2426
        %v2428 = vpop.f32.mrb[0].mxu0
        %v2429 = vpop.f32.mrb[0].mxu0
        %v2430 = vadd.f32 0.0, %v2429
        %v2431 = vpop.f32.mrb[0].mxu0
        %2432 = vdwg.mxu0
        %2449 = vrot.lane.b32.xlu0 %v2371, 64
        %v2450 = vpop.permute.xlu0 %2449
        %2451 = vrot.lane.b32.xlu0 %v2374, 64
        %v2452 = vpop.permute.xlu0 %2451
        %2453 = vrot.lane.b32.xlu0 %v2379, 64
        %v2454 = vpop.permute.xlu0 %2453
        %2455 = vrot.lane.b32.xlu0 %v2382, 64
        %v2456 = vpop.permute.xlu0 %2455
        %2457 = vrot.lane.b32.xlu0 %v2387, 64
        %v2458 = vpop.permute.xlu0 %2457
        %2459 = vrot.lane.b32.xlu0 %v2390, 64
        %v2460 = vpop.permute.xlu0 %2459
        %2461 = vrot.lane.b32.xlu0 %v2395, 64
        %v2462 = vpop.permute.xlu0 %2461
        %2463 = vrot.lane.b32.xlu0 %v2398, 64
        %v2464 = vpop.permute.xlu0 %2463
        %2465 = vrot.lane.b32.xlu0 %v2403, 64
        %v2466 = vpop.permute.xlu0 %2465
        %2467 = vrot.lane.b32.xlu0 %v2406, 64
        %v2468 = vpop.permute.xlu0 %2467
        %2469 = vrot.lane.b32.xlu0 %v2411, 64
        %v2470 = vpop.permute.xlu0 %2469
        %2471 = vrot.lane.b32.xlu0 %v2414, 64
        %v2472 = vpop.permute.xlu0 %2471
        %2473 = vrot.lane.b32.xlu0 %v2419, 64
        %v2474 = vpop.permute.xlu0 %2473
        %2475 = vrot.lane.b32.xlu0 %v2422, 64
        %v2476 = vpop.permute.xlu0 %2475
        %2477 = vrot.lane.b32.xlu0 %v2427, 64
        %v2478 = vpop.permute.xlu0 %2477
        %2479 = vrot.lane.b32.xlu0 %v2430, 64
        %v2480 = vpop.permute.xlu0 %2479
        %v2497 = vsel %vm1564, %v1897, %v2450
        %v2498 = vsel %vm1564, %v1900, %v2452
        %v2499 = vsel %vm1564, %v1905, %v2454
        %v2500 = vsel %vm1564, %v1908, %v2456
        %v2501 = vsel %vm1564, %v1913, %v2458
        %v2502 = vsel %vm1564, %v1916, %v2460
        %v2503 = vsel %vm1564, %v1921, %v2462
        %v2504 = vsel %vm1564, %v1924, %v2464
        %v2505 = vsel %vm1564, %v1929, %v2466
        %v2506 = vsel %vm1564, %v1932, %v2468
        %v2507 = vsel %vm1564, %v1937, %v2470
        %v2508 = vsel %vm1564, %v1940, %v2472
        %v2509 = vsel %vm1564, %v1945, %v2474
        %v2510 = vsel %vm1564, %v1948, %v2476
        %v2511 = vsel %vm1564, %v1953, %v2478
        %v2512 = vsel %vm1564, %v1956, %v2480
        %v2513 = vpack.c.bf16 %v2498, %v2497
        %v2514 = vpack.c.bf16 %v2500, %v2499
        %v2515 = vpack.c.bf16 %v2502, %v2501
        %v2516 = vpack.c.bf16 %v2504, %v2503
        %v2517 = vpack.c.bf16 %v2506, %v2505
        %v2518 = vpack.c.bf16 %v2508, %v2507
        %v2519 = vpack.c.bf16 %v2510, %v2509
        %v2520 = vpack.c.bf16 %v2512, %v2511
        %2521 = vst [vmem:[#allocation2] sm:$0xff] %v2513
        %2522 = vst [vmem:[#allocation2 + $0x20] sm:$0xff] %v2514
        %2523 = vst [vmem:[#allocation2 + $0x40] sm:$0xff] %v2515
        %2524 = vst [vmem:[#allocation2 + $0x60] sm:$0xff] %v2516
        %2525 = vst [vmem:[#allocation2 + $0x80] sm:$0xff] %v2517
        %2526 = vst [vmem:[#allocation2 + $0xa0] sm:$0xff] %v2518
        %2527 = vst [vmem:[#allocation2 + $0xc0] sm:$0xff] %v2519
        %2528 = vst [vmem:[#allocation2 + $0xe0] sm:$0xff] %v2520
        %v2529 = vmul.f32 %v883, 0.088388346
        %v2530 = vmul.f32 %v887, 0.088388346
        %v2531 = vmul.f32 %v893, 0.088388346
        %v2532 = vmul.f32 %v897, 0.088388346
        %v2533 = vmul.f32 %v903, 0.088388346
        %v2534 = vmul.f32 %v907, 0.088388346
        %v2535 = vmul.f32 %v913, 0.088388346
        %v2536 = vmul.f32 %v917, 0.088388346
        %v2537 = vmul.f32 %v923, 0.088388346
        %v2538 = vmul.f32 %v927, 0.088388346
        %v2539 = vmul.f32 %v933, 0.088388346
        %v2540 = vmul.f32 %v937, 0.088388346
        %v2541 = vmul.f32 %v943, 0.088388346
        %v2542 = vmul.f32 %v947, 0.088388346
        %v2543 = vmul.f32 %v953, 0.088388346
        %v2544 = vmul.f32 %v957, 0.088388346
        %v2545 = vpack.c.bf16 %v2530, %v2529
        %v2546 = vpack.c.bf16 %v2532, %v2531
        %v2547 = vpack.c.bf16 %v2534, %v2533
        %v2548 = vpack.c.bf16 %v2536, %v2535
        %v2549 = vpack.c.bf16 %v2538, %v2537
        %v2550 = vpack.c.bf16 %v2540, %v2539
        %v2551 = vpack.c.bf16 %v2542, %v2541
        %v2552 = vpack.c.bf16 %v2544, %v2543
        %v2553 = vpack.c.bf16 %v1113, %v1109
        %v2554 = vpack.c.bf16 %v1123, %v1119
        %v2555 = vpack.c.bf16 %v1133, %v1129
        %v2556 = vpack.c.bf16 %v1143, %v1139
        %v2557 = vpack.c.bf16 %v1153, %v1149
        %v2558 = vpack.c.bf16 %v1163, %v1159
        %v2559 = vpack.c.bf16 %v1173, %v1169
        %v2560 = vpack.c.bf16 %v1183, %v1179
        %v2561 = vpack.c.bf16 %v1339, %v1335
        %v2562 = vpack.c.bf16 %v1349, %v1345
        %v2563 = vpack.c.bf16 %v1359, %v1355
        %v2564 = vpack.c.bf16 %v1369, %v1365
        %v2565 = vpack.c.bf16 %v1379, %v1375
        %v2566 = vpack.c.bf16 %v1389, %v1385
        %v2567 = vpack.c.bf16 %v1399, %v1395
        %v2568 = vpack.c.bf16 %v1409, %v1405
        %v2570 = vsel %vm1564, %v2545, 0
        %v2573 = vsel %vm1564, %v2546, 0
        %v2576 = vsel %vm1564, %v2547, 0
        %v2579 = vsel %vm1564, %v2548, 0
        %v2582 = vsel %vm1564, %v2549, 0
        %v2585 = vsel %vm1564, %v2550, 0
        %v2588 = vsel %vm1564, %v2551, 0
        %v2591 = vsel %vm1564, %v2552, 0
        %v2594 = vsel %vm1564, %v2553, 0
        %v2597 = vsel %vm1564, %v2554, 0
        %v2600 = vsel %vm1564, %v2555, 0
        %v2603 = vsel %vm1564, %v2556, 0
        %v2606 = vsel %vm1564, %v2557, 0
        %v2609 = vsel %vm1564, %v2558, 0
        %v2612 = vsel %vm1564, %v2559, 0
        %v2615 = vsel %vm1564, %v2560, 0
        %2617 = vmatprep.subr.bf16.mxu0 0
        %2618 = vmatpush1.bf16.xpose.msra.mxu0 %v2594
        %2619 = vmatprep.subr.bf16.mxu0 0
        %2620 = vmatpush1.bf16.xpose.msra.mxu0 %v2597
        %2621 = vmatprep.subr.bf16.mxu0 0
        %2622 = vmatpush1.bf16.xpose.msra.mxu0 %v2600
        %2623 = vmatprep.subr.bf16.mxu0 0
        %2624 = vmatpush1.bf16.xpose.msra.mxu0 %v2603
        %2625 = vmatprep.subr.bf16.mxu0 0
        %2626 = vmatpush1.bf16.xpose.msra.mxu0 %v2606
        %2627 = vmatprep.subr.bf16.mxu0 0
        %2628 = vmatpush1.bf16.xpose.msra.mxu0 %v2609
        %2629 = vmatprep.subr.bf16.mxu0 0
        %2630 = vmatpush1.bf16.xpose.msra.mxu0 %v2612
        %2631 = vmatprep.subr.bf16.mxu0 0
        %2632 = vmatpush1.bf16.xpose.msra.mxu0 %v2615
        %2633 = vmatprep.subr.bf16.mxu0 0
        %2634 = vmatpush1.bf16.xpose.msra.mxu0 0
        %2635 = vmatprep.subr.bf16.mxu0 0
        %2636 = vmatpush1.bf16.xpose.msra.mxu0 0
        %2637 = vmatprep.subr.bf16.mxu0 0
        %2638 = vmatpush1.bf16.xpose.msra.mxu0 0
        %2639 = vmatprep.subr.bf16.mxu0 0
        %2640 = vmatpush1.bf16.xpose.msra.mxu0 0
        %2641 = vmatprep.subr.bf16.mxu0 0
        %2642 = vmatpush1.bf16.xpose.msra.mxu0 0
        %2643 = vmatprep.subr.bf16.mxu0 0
        %2644 = vmatpush1.bf16.xpose.msra.mxu0 0
        %2645 = vmatprep.subr.bf16.mxu0 0
        %2646 = vmatpush1.bf16.xpose.msra.mxu0 0
        %2647 = vmatprep.subr.bf16.mxu0 0
        %2648 = vmatpush1.bf16.xpose.msra.mxu0 0
        %2649 = vmatprep.mubr.bf16.mxu0 0
        %2650 = vmatmul.mubr.bf16.gmra.mrb[0].mxu0 %v2570
        %v2651 = vpop.f32.mrb[0].mxu0
        %v2652 = vadd.f32 0.0, %v2651
        %v2653 = vpop.f32.mrb[0].mxu0
        %v2654 = vpop.f32.mrb[0].mxu0
        %v2655 = vadd.f32 0.0, %v2654
        %v2656 = vpop.f32.mrb[0].mxu0
        %2657 = vmatprep.mubr.bf16.mxu0 0
        %2658 = vmatmul.mubr.bf16.gmra.mrb[0].mxu0 %v2573
        %v2659 = vpop.f32.mrb[0].mxu0
        %v2660 = vadd.f32 0.0, %v2659
        %v2661 = vpop.f32.mrb[0].mxu0
        %v2662 = vpop.f32.mrb[0].mxu0
        %v2663 = vadd.f32 0.0, %v2662
        %v2664 = vpop.f32.mrb[0].mxu0
        %2665 = vmatprep.mubr.bf16.mxu0 0
        %2666 = vmatmul.mubr.bf16.gmra.mrb[0].mxu0 %v2576
        %v2667 = vpop.f32.mrb[0].mxu0
        %v2668 = vadd.f32 0.0, %v2667
        %v2669 = vpop.f32.mrb[0].mxu0
        %v2670 = vpop.f32.mrb[0].mxu0
        %v2671 = vadd.f32 0.0, %v2670
        %v2672 = vpop.f32.mrb[0].mxu0
        %2673 = vmatprep.mubr.bf16.mxu0 0
        %2674 = vmatmul.mubr.bf16.gmra.mrb[0].mxu0 %v2579
        %v2675 = vpop.f32.mrb[0].mxu0
        %v2676 = vadd.f32 0.0, %v2675
        %v2677 = vpop.f32.mrb[0].mxu0
        %v2678 = vpop.f32.mrb[0].mxu0
        %v2679 = vadd.f32 0.0, %v2678
        %v2680 = vpop.f32.mrb[0].mxu0
        %2681 = vmatprep.mubr.bf16.mxu0 0
        %2682 = vmatmul.mubr.bf16.gmra.mrb[0].mxu0 %v2582
        %v2683 = vpop.f32.mrb[0].mxu0
        %v2684 = vadd.f32 0.0, %v2683
        %v2685 = vpop.f32.mrb[0].mxu0
        %v2686 = vpop.f32.mrb[0].mxu0
        %v2687 = vadd.f32 0.0, %v2686
        %v2688 = vpop.f32.mrb[0].mxu0
        %2689 = vmatprep.mubr.bf16.mxu0 0
        %2690 = vmatmul.mubr.bf16.gmra.mrb[0].mxu0 %v2585
        %v2691 = vpop.f32.mrb[0].mxu0
        %v2692 = vadd.f32 0.0, %v2691
        %v2693 = vpop.f32.mrb[0].mxu0
        %v2694 = vpop.f32.mrb[0].mxu0
        %v2695 = vadd.f32 0.0, %v2694
        %v2696 = vpop.f32.mrb[0].mxu0
        %2697 = vmatprep.mubr.bf16.mxu0 0
        %2698 = vmatmul.mubr.bf16.gmra.mrb[0].mxu0 %v2588
        %v2699 = vpop.f32.mrb[0].mxu0
        %v2700 = vadd.f32 0.0, %v2699
        %v2701 = vpop.f32.mrb[0].mxu0
        %v2702 = vpop.f32.mrb[0].mxu0
        %v2703 = vadd.f32 0.0, %v2702
        %v2704 = vpop.f32.mrb[0].mxu0
        %2705 = vmatprep.mubr.bf16.mxu0 0
        %2706 = vmatmul.mubr.bf16.gmra.mrb[0].mxu0 %v2591
        %v2707 = vpop.f32.mrb[0].mxu0
        %v2708 = vadd.f32 0.0, %v2707
        %v2709 = vpop.f32.mrb[0].mxu0
        %v2710 = vpop.f32.mrb[0].mxu0
        %v2711 = vadd.f32 0.0, %v2710
        %v2712 = vpop.f32.mrb[0].mxu0
        %2713 = vdwg.mxu0
        %2714 = vmax.xlane.f32.xlu0 %v2652
        %v2715 = vpop.xlane.xlu0 %2714
        %2716 = vmax.xlane.f32.xlu0 %v2655
        %v2717 = vpop.xlane.xlu0 %2716
        %2718 = vmax.xlane.f32.xlu0 %v2660
        %v2719 = vpop.xlane.xlu0 %2718
        %2720 = vmax.xlane.f32.xlu0 %v2663
        %v2721 = vpop.xlane.xlu0 %2720
        %2722 = vmax.xlane.f32.xlu0 %v2668
        %v2723 = vpop.xlane.xlu0 %2722
        %2724 = vmax.xlane.f32.xlu0 %v2671
        %v2725 = vpop.xlane.xlu0 %2724
        %2726 = vmax.xlane.f32.xlu0 %v2676
        %v2727 = vpop.xlane.xlu0 %2726
        %2728 = vmax.xlane.f32.xlu0 %v2679
        %v2729 = vpop.xlane.xlu0 %2728
        %2730 = vmax.xlane.f32.xlu0 %v2684
        %v2731 = vpop.xlane.xlu0 %2730
        %2732 = vmax.xlane.f32.xlu0 %v2687
        %v2733 = vpop.xlane.xlu0 %2732
        %2734 = vmax.xlane.f32.xlu0 %v2692
        %v2735 = vpop.xlane.xlu0 %2734
        %2736 = vmax.xlane.f32.xlu0 %v2695
        %v2737 = vpop.xlane.xlu0 %2736
        %2738 = vmax.xlane.f32.xlu0 %v2700
        %v2739 = vpop.xlane.xlu0 %2738
        %2740 = vmax.xlane.f32.xlu0 %v2703
        %v2741 = vpop.xlane.xlu0 %2740
        %2742 = vmax.xlane.f32.xlu0 %v2708
        %v2743 = vpop.xlane.xlu0 %2742
        %2744 = vmax.xlane.f32.xlu0 %v2711
        %v2745 = vpop.xlane.xlu0 %2744
        %v2746 = vsub.f32 %v2652, %v2715
        %v2747 = vsub.f32 %v2655, %v2717
        %v2748 = vsub.f32 %v2660, %v2719
        %v2749 = vsub.f32 %v2663, %v2721
        %v2750 = vsub.f32 %v2668, %v2723
        %v2751 = vsub.f32 %v2671, %v2725
        %v2752 = vsub.f32 %v2676, %v2727
        %v2753 = vsub.f32 %v2679, %v2729
        %v2754 = vsub.f32 %v2684, %v2731
        %v2755 = vsub.f32 %v2687, %v2733
        %v2756 = vsub.f32 %v2692, %v2735
        %v2757 = vsub.f32 %v2695, %v2737
        %v2758 = vsub.f32 %v2700, %v2739
        %v2759 = vsub.f32 %v2703, %v2741
        %v2760 = vsub.f32 %v2708, %v2743
        %v2761 = vsub.f32 %v2711, %v2745
        %v2762 = vmul.f32 %v2746, 1.442695
        %v2763 = vpow.pop %v2762
        %v2764 = vmul.f32 %v2747, 1.442695
        %v2765 = vpow.pop %v2764
        %v2766 = vmul.f32 %v2748, 1.442695
        %v2767 = vpow.pop %v2766
        %v2768 = vmul.f32 %v2749, 1.442695
        %v2769 = vpow.pop %v2768
        %v2770 = vmul.f32 %v2750, 1.442695
        %v2771 = vpow.pop %v2770
        %v2772 = vmul.f32 %v2751, 1.442695
        %v2773 = vpow.pop %v2772
        %v2774 = vmul.f32 %v2752, 1.442695
        %v2775 = vpow.pop %v2774
        %v2776 = vmul.f32 %v2753, 1.442695
        %v2777 = vpow.pop %v2776
        %v2778 = vmul.f32 %v2754, 1.442695
        %v2779 = vpow.pop %v2778
        %v2780 = vmul.f32 %v2755, 1.442695
        %v2781 = vpow.pop %v2780
        %v2782 = vmul.f32 %v2756, 1.442695
        %v2783 = vpow.pop %v2782
        %v2784 = vmul.f32 %v2757, 1.442695
        %v2785 = vpow.pop %v2784
        %v2786 = vmul.f32 %v2758, 1.442695
        %v2787 = vpow.pop %v2786
        %v2788 = vmul.f32 %v2759, 1.442695
        %v2789 = vpow.pop %v2788
        %v2790 = vmul.f32 %v2760, 1.442695
        %v2791 = vpow.pop %v2790
        %v2792 = vmul.f32 %v2761, 1.442695
        %v2793 = vpow.pop %v2792
        %2794 = vadd.xlane.f32.xlu0 %v2763
        %v2795 = vpop.xlane.xlu0 %2794
        %2796 = vadd.xlane.f32.xlu0 %v2765
        %v2797 = vpop.xlane.xlu0 %2796
        %2798 = vadd.xlane.f32.xlu0 %v2767
        %v2799 = vpop.xlane.xlu0 %2798
        %2800 = vadd.xlane.f32.xlu0 %v2769
        %v2801 = vpop.xlane.xlu0 %2800
        %2802 = vadd.xlane.f32.xlu0 %v2771
        %v2803 = vpop.xlane.xlu0 %2802
        %2804 = vadd.xlane.f32.xlu0 %v2773
        %v2805 = vpop.xlane.xlu0 %2804
        %2806 = vadd.xlane.f32.xlu0 %v2775
        %v2807 = vpop.xlane.xlu0 %2806
        %2808 = vadd.xlane.f32.xlu0 %v2777
        %v2809 = vpop.xlane.xlu0 %2808
        %2810 = vadd.xlane.f32.xlu0 %v2779
        %v2811 = vpop.xlane.xlu0 %2810
        %2812 = vadd.xlane.f32.xlu0 %v2781
        %v2813 = vpop.xlane.xlu0 %2812
        %2814 = vadd.xlane.f32.xlu0 %v2783
        %v2815 = vpop.xlane.xlu0 %2814
        %2816 = vadd.xlane.f32.xlu0 %v2785
        %v2817 = vpop.xlane.xlu0 %2816
        %2818 = vadd.xlane.f32.xlu0 %v2787
        %v2819 = vpop.xlane.xlu0 %2818
        %2820 = vadd.xlane.f32.xlu0 %v2789
        %v2821 = vpop.xlane.xlu0 %2820
        %2822 = vadd.xlane.f32.xlu0 %v2791
        %v2823 = vpop.xlane.xlu0 %2822
        %2824 = vadd.xlane.f32.xlu0 %v2793
        %v2825 = vpop.xlane.xlu0 %2824
        %v2826 = vrcp.pop %v2795
        %v2827 = vrcp.pop %v2797
        %v2828 = vrcp.pop %v2799
        %v2829 = vrcp.pop %v2801
        %v2830 = vrcp.pop %v2803
        %v2831 = vrcp.pop %v2805
        %v2832 = vrcp.pop %v2807
        %v2833 = vrcp.pop %v2809
        %v2834 = vrcp.pop %v2811
        %v2835 = vrcp.pop %v2813
        %v2836 = vrcp.pop %v2815
        %v2837 = vrcp.pop %v2817
        %v2838 = vrcp.pop %v2819
        %v2839 = vrcp.pop %v2821
        %v2840 = vrcp.pop %v2823
        %v2841 = vrcp.pop %v2825
        %v2842 = vmul.f32 %v2763, %v2826
        %v2843 = vmul.f32 %v2765, %v2827
        %v2844 = vmul.f32 %v2767, %v2828
        %v2845 = vmul.f32 %v2769, %v2829
        %v2846 = vmul.f32 %v2771, %v2830
        %v2847 = vmul.f32 %v2773, %v2831
        %v2848 = vmul.f32 %v2775, %v2832
        %v2849 = vmul.f32 %v2777, %v2833
        %v2850 = vmul.f32 %v2779, %v2834
        %v2851 = vmul.f32 %v2781, %v2835
        %v2852 = vmul.f32 %v2783, %v2836
        %v2853 = vmul.f32 %v2785, %v2837
        %v2854 = vmul.f32 %v2787, %v2838
        %v2855 = vmul.f32 %v2789, %v2839
        %v2856 = vmul.f32 %v2791, %v2840
        %v2857 = vmul.f32 %v2793, %v2841
        %v2858 = vpack.c.bf16 %v2843, %v2842
        %v2859 = vpack.c.bf16 %v2845, %v2844
        %v2860 = vpack.c.bf16 %v2847, %v2846
        %v2861 = vpack.c.bf16 %v2849, %v2848
        %v2862 = vpack.c.bf16 %v2851, %v2850
        %v2863 = vpack.c.bf16 %v2853, %v2852
        %v2864 = vpack.c.bf16 %v2855, %v2854
        %v2865 = vpack.c.bf16 %v2857, %v2856
        %2866 = vmatprep.subr.bf16.mxu0 0
        %2867 = vmatpush1.bf16.msra.mxu0 %v2561
        %2868 = vmatprep.subr.bf16.mxu0 0
        %2869 = vmatpush1.bf16.msra.mxu0 %v2562
        %2870 = vmatprep.subr.bf16.mxu0 0
        %2871 = vmatpush1.bf16.msra.mxu0 %v2563
        %2872 = vmatprep.subr.bf16.mxu0 0
        %2873 = vmatpush1.bf16.msra.mxu0 %v2564
        %2874 = vmatprep.subr.bf16.mxu0 0
        %2875 = vmatpush1.bf16.msra.mxu0 %v2565
        %2876 = vmatprep.subr.bf16.mxu0 0
        %2877 = vmatpush1.bf16.msra.mxu0 %v2566
        %2878 = vmatprep.subr.bf16.mxu0 0
        %2879 = vmatpush1.bf16.msra.mxu0 %v2567
        %2880 = vmatprep.subr.bf16.mxu0 0
        %2881 = vmatpush1.bf16.msra.mxu0 %v2568
        %2882 = vmatprep.subr.bf16.mxu0 0
        %2883 = vmatpush1.bf16.msra.mxu0 0
        %2884 = vmatprep.subr.bf16.mxu0 0
        %2885 = vmatpush1.bf16.msra.mxu0 0
        %2886 = vmatprep.subr.bf16.mxu0 0
        %2887 = vmatpush1.bf16.msra.mxu0 0
        %2888 = vmatprep.subr.bf16.mxu0 0
        %2889 = vmatpush1.bf16.msra.mxu0 0
        %2890 = vmatprep.subr.bf16.mxu0 0
        %2891 = vmatpush1.bf16.msra.mxu0 0
        %2892 = vmatprep.subr.bf16.mxu0 0
        %2893 = vmatpush1.bf16.msra.mxu0 0
        %2894 = vmatprep.subr.bf16.mxu0 0
        %2895 = vmatpush1.bf16.msra.mxu0 0
        %2896 = vmatprep.subr.bf16.mxu0 0
        %2897 = vmatpush1.bf16.msra.mxu0 0
        %2898 = vmatprep.mubr.bf16.mxu0 0
        %2899 = vmatmul.mubr.bf16.gmra.mrb[0].mxu0 %v2858
        %v2900 = vpop.f32.mrb[0].mxu0
        %v2901 = vadd.f32 0.0, %v2900
        %v2902 = vpop.f32.mrb[0].mxu0
        %v2903 = vpop.f32.mrb[0].mxu0
        %v2904 = vadd.f32 0.0, %v2903
        %v2905 = vpop.f32.mrb[0].mxu0
        %2906 = vmatprep.mubr.bf16.mxu0 0
        %2907 = vmatmul.mubr.bf16.gmra.mrb[0].mxu0 %v2859
        %v2908 = vpop.f32.mrb[0].mxu0
        %v2909 = vadd.f32 0.0, %v2908
        %v2910 = vpop.f32.mrb[0].mxu0
        %v2911 = vpop.f32.mrb[0].mxu0
        %v2912 = vadd.f32 0.0, %v2911
        %v2913 = vpop.f32.mrb[0].mxu0
        %2914 = vmatprep.mubr.bf16.mxu0 0
        %2915 = vmatmul.mubr.bf16.gmra.mrb[0].mxu0 %v2860
        %v2916 = vpop.f32.mrb[0].mxu0
        %v2917 = vadd.f32 0.0, %v2916
        %v2918 = vpop.f32.mrb[0].mxu0
        %v2919 = vpop.f32.mrb[0].mxu0
        %v2920 = vadd.f32 0.0, %v2919
        %v2921 = vpop.f32.mrb[0].mxu0
        %2922 = vmatprep.mubr.bf16.mxu0 0
        %2923 = vmatmul.mubr.bf16.gmra.mrb[0].mxu0 %v2861
        %v2924 = vpop.f32.mrb[0].mxu0
        %v2925 = vadd.f32 0.0, %v2924
        %v2926 = vpop.f32.mrb[0].mxu0
        %v2927 = vpop.f32.mrb[0].mxu0
        %v2928 = vadd.f32 0.0, %v2927
        %v2929 = vpop.f32.mrb[0].mxu0
        %2930 = vmatprep.mubr.bf16.mxu0 0
        %2931 = vmatmul.mubr.bf16.gmra.mrb[0].mxu0 %v2862
        %v2932 = vpop.f32.mrb[0].mxu0
        %v2933 = vadd.f32 0.0, %v2932
        %v2934 = vpop.f32.mrb[0].mxu0
        %v2935 = vpop.f32.mrb[0].mxu0
        %v2936 = vadd.f32 0.0, %v2935
        %v2937 = vpop.f32.mrb[0].mxu0
        %2938 = vmatprep.mubr.bf16.mxu0 0
        %2939 = vmatmul.mubr.bf16.gmra.mrb[0].mxu0 %v2863
        %v2940 = vpop.f32.mrb[0].mxu0
        %v2941 = vadd.f32 0.0, %v2940
        %v2942 = vpop.f32.mrb[0].mxu0
        %v2943 = vpop.f32.mrb[0].mxu0
        %v2944 = vadd.f32 0.0, %v2943
        %v2945 = vpop.f32.mrb[0].mxu0
        %2946 = vmatprep.mubr.bf16.mxu0 0
        %2947 = vmatmul.mubr.bf16.gmra.mrb[0].mxu0 %v2864
        %v2948 = vpop.f32.mrb[0].mxu0
        %v2949 = vadd.f32 0.0, %v2948
        %v2950 = vpop.f32.mrb[0].mxu0
        %v2951 = vpop.f32.mrb[0].mxu0
        %v2952 = vadd.f32 0.0, %v2951
        %v2953 = vpop.f32.mrb[0].mxu0
        %2954 = vmatprep.mubr.bf16.mxu0 0
        %2955 = vmatmul.mubr.bf16.gmra.mrb[0].mxu0 %v2865
        %v2956 = vpop.f32.mrb[0].mxu0
        %v2957 = vadd.f32 0.0, %v2956
        %v2958 = vpop.f32.mrb[0].mxu0
        %v2959 = vpop.f32.mrb[0].mxu0
        %v2960 = vadd.f32 0.0, %v2959
        %v2961 = vpop.f32.mrb[0].mxu0
        %2962 = vdwg.mxu0
        %2971 = vrot.lane.b32.xlu0 %v2545, 64
        %v2972 = vpop.permute.xlu0 %2971
        %2973 = vrot.lane.b32.xlu0 %v2546, 64
        %v2974 = vpop.permute.xlu0 %2973
        %2975 = vrot.lane.b32.xlu0 %v2547, 64
        %v2976 = vpop.permute.xlu0 %2975
        %2977 = vrot.lane.b32.xlu0 %v2548, 64
        %v2978 = vpop.permute.xlu0 %2977
        %2979 = vrot.lane.b32.xlu0 %v2549, 64
        %v2980 = vpop.permute.xlu0 %2979
        %2981 = vrot.lane.b32.xlu0 %v2550, 64
        %v2982 = vpop.permute.xlu0 %2981
        %2983 = vrot.lane.b32.xlu0 %v2551, 64
        %v2984 = vpop.permute.xlu0 %2983
        %2985 = vrot.lane.b32.xlu0 %v2552, 64
        %v2986 = vpop.permute.xlu0 %2985
        %2995 = vrot.lane.b32.xlu0 %v2553, 64
        %v2996 = vpop.permute.xlu0 %2995
        %2997 = vrot.lane.b32.xlu0 %v2554, 64
        %v2998 = vpop.permute.xlu0 %2997
        %2999 = vrot.lane.b32.xlu0 %v2555, 64
        %v3000 = vpop.permute.xlu0 %2999
        %3001 = vrot.lane.b32.xlu0 %v2556, 64
        %v3002 = vpop.permute.xlu0 %3001
        %3003 = vrot.lane.b32.xlu0 %v2557, 64
        %v3004 = vpop.permute.xlu0 %3003
        %3005 = vrot.lane.b32.xlu0 %v2558, 64
        %v3006 = vpop.permute.xlu0 %3005
        %3007 = vrot.lane.b32.xlu0 %v2559, 64
        %v3008 = vpop.permute.xlu0 %3007
        %3009 = vrot.lane.b32.xlu0 %v2560, 64
        %v3010 = vpop.permute.xlu0 %3009
        %v3012 = vsel %vm1564, %v2972, 0
        %v3015 = vsel %vm1564, %v2974, 0
        %v3018 = vsel %vm1564, %v2976, 0
        %v3021 = vsel %vm1564, %v2978, 0
        %v3024 = vsel %vm1564, %v2980, 0
        %v3027 = vsel %vm1564, %v2982, 0
        %v3030 = vsel %vm1564, %v2984, 0
        %v3033 = vsel %vm1564, %v2986, 0
        %v3036 = vsel %vm1564, %v2996, 0
        %v3039 = vsel %vm1564, %v2998, 0
        %v3042 = vsel %vm1564, %v3000, 0
        %v3045 = vsel %vm1564, %v3002, 0
        %v3048 = vsel %vm1564, %v3004, 0
        %v3051 = vsel %vm1564, %v3006, 0
        %v3054 = vsel %vm1564, %v3008, 0
        %v3057 = vsel %vm1564, %v3010, 0
        %3059 = vmatprep.subr.bf16.mxu0 0
        %3060 = vmatpush1.bf16.xpose.msra.mxu0 %v3036
        %3061 = vmatprep.subr.bf16.mxu0 0
        %3062 = vmatpush1.bf16.xpose.msra.mxu0 %v3039
        %3063 = vmatprep.subr.bf16.mxu0 0
        %3064 = vmatpush1.bf16.xpose.msra.mxu0 %v3042
        %3065 = vmatprep.subr.bf16.mxu0 0
        %3066 = vmatpush1.bf16.xpose.msra.mxu0 %v3045
        %3067 = vmatprep.subr.bf16.mxu0 0
        %3068 = vmatpush1.bf16.xpose.msra.mxu0 %v3048
        %3069 = vmatprep.subr.bf16.mxu0 0
        %3070 = vmatpush1.bf16.xpose.msra.mxu0 %v3051
        %3071 = vmatprep.subr.bf16.mxu0 0
        %3072 = vmatpush1.bf16.xpose.msra.mxu0 %v3054
        %3073 = vmatprep.subr.bf16.mxu0 0
        %3074 = vmatpush1.bf16.xpose.msra.mxu0 %v3057
        %3075 = vmatprep.subr.bf16.mxu0 0
        %3076 = vmatpush1.bf16.xpose.msra.mxu0 0
        %3077 = vmatprep.subr.bf16.mxu0 0
        %3078 = vmatpush1.bf16.xpose.msra.mxu0 0
        %3079 = vmatprep.subr.bf16.mxu0 0
        %3080 = vmatpush1.bf16.xpose.msra.mxu0 0
        %3081 = vmatprep.subr.bf16.mxu0 0
        %3082 = vmatpush1.bf16.xpose.msra.mxu0 0
        %3083 = vmatprep.subr.bf16.mxu0 0
        %3084 = vmatpush1.bf16.xpose.msra.mxu0 0
        %3085 = vmatprep.subr.bf16.mxu0 0
        %3086 = vmatpush1.bf16.xpose.msra.mxu0 0
        %3087 = vmatprep.subr.bf16.mxu0 0
        %3088 = vmatpush1.bf16.xpose.msra.mxu0 0
        %3089 = vmatprep.subr.bf16.mxu0 0
        %3090 = vmatpush1.bf16.xpose.msra.mxu0 0
        %3091 = vmatprep.mubr.bf16.mxu0 0
        %3092 = vmatmul.mubr.bf16.gmra.mrb[0].mxu0 %v3012
        %v3093 = vpop.f32.mrb[0].mxu0
        %v3094 = vadd.f32 0.0, %v3093
        %v3095 = vpop.f32.mrb[0].mxu0
        %v3096 = vpop.f32.mrb[0].mxu0
        %v3097 = vadd.f32 0.0, %v3096
        %v3098 = vpop.f32.mrb[0].mxu0
        %3099 = vmatprep.mubr.bf16.mxu0 0
        %3100 = vmatmul.mubr.bf16.gmra.mrb[0].mxu0 %v3015
        %v3101 = vpop.f32.mrb[0].mxu0
        %v3102 = vadd.f32 0.0, %v3101
        %v3103 = vpop.f32.mrb[0].mxu0
        %v3104 = vpop.f32.mrb[0].mxu0
        %v3105 = vadd.f32 0.0, %v3104
        %v3106 = vpop.f32.mrb[0].mxu0
        %3107 = vmatprep.mubr.bf16.mxu0 0
        %3108 = vmatmul.mubr.bf16.gmra.mrb[0].mxu0 %v3018
        %v3109 = vpop.f32.mrb[0].mxu0
        %v3110 = vadd.f32 0.0, %v3109
        %v3111 = vpop.f32.mrb[0].mxu0
        %v3112 = vpop.f32.mrb[0].mxu0
        %v3113 = vadd.f32 0.0, %v3112
        %v3114 = vpop.f32.mrb[0].mxu0
        %3115 = vmatprep.mubr.bf16.mxu0 0
        %3116 = vmatmul.mubr.bf16.gmra.mrb[0].mxu0 %v3021
        %v3117 = vpop.f32.mrb[0].mxu0
        %v3118 = vadd.f32 0.0, %v3117
        %v3119 = vpop.f32.mrb[0].mxu0
        %v3120 = vpop.f32.mrb[0].mxu0
        %v3121 = vadd.f32 0.0, %v3120
        %v3122 = vpop.f32.mrb[0].mxu0
        %3123 = vmatprep.mubr.bf16.mxu0 0
        %3124 = vmatmul.mubr.bf16.gmra.mrb[0].mxu0 %v3024
        %v3125 = vpop.f32.mrb[0].mxu0
        %v3126 = vadd.f32 0.0, %v3125
        %v3127 = vpop.f32.mrb[0].mxu0
        %v3128 = vpop.f32.mrb[0].mxu0
        %v3129 = vadd.f32 0.0, %v3128
        %v3130 = vpop.f32.mrb[0].mxu0
        %3131 = vmatprep.mubr.bf16.mxu0 0
        %3132 = vmatmul.mubr.bf16.gmra.mrb[0].mxu0 %v3027
        %v3133 = vpop.f32.mrb[0].mxu0
        %v3134 = vadd.f32 0.0, %v3133
        %v3135 = vpop.f32.mrb[0].mxu0
        %v3136 = vpop.f32.mrb[0].mxu0
        %v3137 = vadd.f32 0.0, %v3136
        %v3138 = vpop.f32.mrb[0].mxu0
        %3139 = vmatprep.mubr.bf16.mxu0 0
        %3140 = vmatmul.mubr.bf16.gmra.mrb[0].mxu0 %v3030
        %v3141 = vpop.f32.mrb[0].mxu0
        %v3142 = vadd.f32 0.0, %v3141
        %v3143 = vpop.f32.mrb[0].mxu0
        %v3144 = vpop.f32.mrb[0].mxu0
        %v3145 = vadd.f32 0.0, %v3144
        %v3146 = vpop.f32.mrb[0].mxu0
        %3147 = vmatprep.mubr.bf16.mxu0 0
        %3148 = vmatmul.mubr.bf16.gmra.mrb[0].mxu0 %v3033
        %v3149 = vpop.f32.mrb[0].mxu0
        %v3150 = vadd.f32 0.0, %v3149
        %v3151 = vpop.f32.mrb[0].mxu0
        %v3152 = vpop.f32.mrb[0].mxu0
        %v3153 = vadd.f32 0.0, %v3152
        %v3154 = vpop.f32.mrb[0].mxu0
        %3155 = vdwg.mxu0
        %3156 = vmax.xlane.f32.xlu0 %v3094
        %v3157 = vpop.xlane.xlu0 %3156
        %3158 = vmax.xlane.f32.xlu0 %v3097
        %v3159 = vpop.xlane.xlu0 %3158
        %3160 = vmax.xlane.f32.xlu0 %v3102
        %v3161 = vpop.xlane.xlu0 %3160
        %3162 = vmax.xlane.f32.xlu0 %v3105
        %v3163 = vpop.xlane.xlu0 %3162
        %3164 = vmax.xlane.f32.xlu0 %v3110
        %v3165 = vpop.xlane.xlu0 %3164
        %3166 = vmax.xlane.f32.xlu0 %v3113
        %v3167 = vpop.xlane.xlu0 %3166
        %3168 = vmax.xlane.f32.xlu0 %v3118
        %v3169 = vpop.xlane.xlu0 %3168
        %3170 = vmax.xlane.f32.xlu0 %v3121
        %v3171 = vpop.xlane.xlu0 %3170
        %3172 = vmax.xlane.f32.xlu0 %v3126
        %v3173 = vpop.xlane.xlu0 %3172
        %3174 = vmax.xlane.f32.xlu0 %v3129
        %v3175 = vpop.xlane.xlu0 %3174
        %3176 = vmax.xlane.f32.xlu0 %v3134
        %v3177 = vpop.xlane.xlu0 %3176
        %3178 = vmax.xlane.f32.xlu0 %v3137
        %v3179 = vpop.xlane.xlu0 %3178
        %3180 = vmax.xlane.f32.xlu0 %v3142
        %v3181 = vpop.xlane.xlu0 %3180
        %3182 = vmax.xlane.f32.xlu0 %v3145
        %v3183 = vpop.xlane.xlu0 %3182
        %3184 = vmax.xlane.f32.xlu0 %v3150
        %v3185 = vpop.xlane.xlu0 %3184
        %3186 = vmax.xlane.f32.xlu0 %v3153
        %v3187 = vpop.xlane.xlu0 %3186
        %v3188 = vsub.f32 %v3094, %v3157
        %v3189 = vsub.f32 %v3097, %v3159
        %v3190 = vsub.f32 %v3102, %v3161
        %v3191 = vsub.f32 %v3105, %v3163
        %v3192 = vsub.f32 %v3110, %v3165
        %v3193 = vsub.f32 %v3113, %v3167
        %v3194 = vsub.f32 %v3118, %v3169
        %v3195 = vsub.f32 %v3121, %v3171
        %v3196 = vsub.f32 %v3126, %v3173
        %v3197 = vsub.f32 %v3129, %v3175
        %v3198 = vsub.f32 %v3134, %v3177
        %v3199 = vsub.f32 %v3137, %v3179
        %v3200 = vsub.f32 %v3142, %v3181
        %v3201 = vsub.f32 %v3145, %v3183
        %v3202 = vsub.f32 %v3150, %v3185
        %v3203 = vsub.f32 %v3153, %v3187
        %v3204 = vmul.f32 %v3188, 1.442695
        %v3205 = vpow.pop %v3204
        %v3206 = vmul.f32 %v3189, 1.442695
        %v3207 = vpow.pop %v3206
        %v3208 = vmul.f32 %v3190, 1.442695
        %v3209 = vpow.pop %v3208
        %v3210 = vmul.f32 %v3191, 1.442695
        %v3211 = vpow.pop %v3210
        %v3212 = vmul.f32 %v3192, 1.442695
        %v3213 = vpow.pop %v3212
        %v3214 = vmul.f32 %v3193, 1.442695
        %v3215 = vpow.pop %v3214
        %v3216 = vmul.f32 %v3194, 1.442695
        %v3217 = vpow.pop %v3216
        %v3218 = vmul.f32 %v3195, 1.442695
        %v3219 = vpow.pop %v3218
        %v3220 = vmul.f32 %v3196, 1.442695
        %v3221 = vpow.pop %v3220
        %v3222 = vmul.f32 %v3197, 1.442695
        %v3223 = vpow.pop %v3222
        %v3224 = vmul.f32 %v3198, 1.442695
        %v3225 = vpow.pop %v3224
        %v3226 = vmul.f32 %v3199, 1.442695
        %v3227 = vpow.pop %v3226
        %v3228 = vmul.f32 %v3200, 1.442695
        %v3229 = vpow.pop %v3228
        %v3230 = vmul.f32 %v3201, 1.442695
        %v3231 = vpow.pop %v3230
        %v3232 = vmul.f32 %v3202, 1.442695
        %v3233 = vpow.pop %v3232
        %v3234 = vmul.f32 %v3203, 1.442695
        %v3235 = vpow.pop %v3234
        %3236 = vadd.xlane.f32.xlu0 %v3205
        %v3237 = vpop.xlane.xlu0 %3236
        %3238 = vadd.xlane.f32.xlu0 %v3207
        %v3239 = vpop.xlane.xlu0 %3238
        %3240 = vadd.xlane.f32.xlu0 %v3209
        %v3241 = vpop.xlane.xlu0 %3240
        %3242 = vadd.xlane.f32.xlu0 %v3211
        %v3243 = vpop.xlane.xlu0 %3242
        %3244 = vadd.xlane.f32.xlu0 %v3213
        %v3245 = vpop.xlane.xlu0 %3244
        %3246 = vadd.xlane.f32.xlu0 %v3215
        %v3247 = vpop.xlane.xlu0 %3246
        %3248 = vadd.xlane.f32.xlu0 %v3217
        %v3249 = vpop.xlane.xlu0 %3248
        %3250 = vadd.xlane.f32.xlu0 %v3219
        %v3251 = vpop.xlane.xlu0 %3250
        %3252 = vadd.xlane.f32.xlu0 %v3221
        %v3253 = vpop.xlane.xlu0 %3252
        %3254 = vadd.xlane.f32.xlu0 %v3223
        %v3255 = vpop.xlane.xlu0 %3254
        %3256 = vadd.xlane.f32.xlu0 %v3225
        %v3257 = vpop.xlane.xlu0 %3256
        %3258 = vadd.xlane.f32.xlu0 %v3227
        %v3259 = vpop.xlane.xlu0 %3258
        %3260 = vadd.xlane.f32.xlu0 %v3229
        %v3261 = vpop.xlane.xlu0 %3260
        %3262 = vadd.xlane.f32.xlu0 %v3231
        %v3263 = vpop.xlane.xlu0 %3262
        %3264 = vadd.xlane.f32.xlu0 %v3233
        %v3265 = vpop.xlane.xlu0 %3264
        %3266 = vadd.xlane.f32.xlu0 %v3235
        %v3267 = vpop.xlane.xlu0 %3266
        %v3268 = vrcp.pop %v3237
        %v3269 = vrcp.pop %v3239
        %v3270 = vrcp.pop %v3241
        %v3271 = vrcp.pop %v3243
        %v3272 = vrcp.pop %v3245
        %v3273 = vrcp.pop %v3247
        %v3274 = vrcp.pop %v3249
        %v3275 = vrcp.pop %v3251
        %v3276 = vrcp.pop %v3253
        %v3277 = vrcp.pop %v3255
        %v3278 = vrcp.pop %v3257
        %v3279 = vrcp.pop %v3259
        %v3280 = vrcp.pop %v3261
        %v3281 = vrcp.pop %v3263
        %v3282 = vrcp.pop %v3265
        %v3283 = vrcp.pop %v3267
        %v3284 = vmul.f32 %v3205, %v3268
        %v3285 = vmul.f32 %v3207, %v3269
        %v3286 = vmul.f32 %v3209, %v3270
        %v3287 = vmul.f32 %v3211, %v3271
        %v3288 = vmul.f32 %v3213, %v3272
        %v3289 = vmul.f32 %v3215, %v3273
        %v3290 = vmul.f32 %v3217, %v3274
        %v3291 = vmul.f32 %v3219, %v3275
        %v3292 = vmul.f32 %v3221, %v3276
        %v3293 = vmul.f32 %v3223, %v3277
        %v3294 = vmul.f32 %v3225, %v3278
        %v3295 = vmul.f32 %v3227, %v3279
        %v3296 = vmul.f32 %v3229, %v3280
        %v3297 = vmul.f32 %v3231, %v3281
        %v3298 = vmul.f32 %v3233, %v3282
        %v3299 = vmul.f32 %v3235, %v3283
        %v3300 = vpack.c.bf16 %v3285, %v3284
        %v3301 = vpack.c.bf16 %v3287, %v3286
        %v3302 = vpack.c.bf16 %v3289, %v3288
        %v3303 = vpack.c.bf16 %v3291, %v3290
        %v3304 = vpack.c.bf16 %v3293, %v3292
        %v3305 = vpack.c.bf16 %v3295, %v3294
        %v3306 = vpack.c.bf16 %v3297, %v3296
        %v3307 = vpack.c.bf16 %v3299, %v3298
        %3316 = vrot.lane.b32.xlu0 %v2561, 64
        %v3317 = vpop.permute.xlu0 %3316
        %3318 = vrot.lane.b32.xlu0 %v2562, 64
        %v3319 = vpop.permute.xlu0 %3318
        %3320 = vrot.lane.b32.xlu0 %v2563, 64
        %v3321 = vpop.permute.xlu0 %3320
        %3322 = vrot.lane.b32.xlu0 %v2564, 64
        %v3323 = vpop.permute.xlu0 %3322
        %3324 = vrot.lane.b32.xlu0 %v2565, 64
        %v3325 = vpop.permute.xlu0 %3324
        %3326 = vrot.lane.b32.xlu0 %v2566, 64
        %v3327 = vpop.permute.xlu0 %3326
        %3328 = vrot.lane.b32.xlu0 %v2567, 64
        %v3329 = vpop.permute.xlu0 %3328
        %3330 = vrot.lane.b32.xlu0 %v2568, 64
        %v3331 = vpop.permute.xlu0 %3330
        %3340 = vmatprep.subr.bf16.mxu0 0
        %3341 = vmatpush1.bf16.msra.mxu0 %v3317
        %3342 = vmatprep.subr.bf16.mxu0 0
        %3343 = vmatpush1.bf16.msra.mxu0 %v3319
        %3344 = vmatprep.subr.bf16.mxu0 0
        %3345 = vmatpush1.bf16.msra.mxu0 %v3321
        %3346 = vmatprep.subr.bf16.mxu0 0
        %3347 = vmatpush1.bf16.msra.mxu0 %v3323
        %3348 = vmatprep.subr.bf16.mxu0 0
        %3349 = vmatpush1.bf16.msra.mxu0 %v3325
        %3350 = vmatprep.subr.bf16.mxu0 0
        %3351 = vmatpush1.bf16.msra.mxu0 %v3327
        %3352 = vmatprep.subr.bf16.mxu0 0
        %3353 = vmatpush1.bf16.msra.mxu0 %v3329
        %3354 = vmatprep.subr.bf16.mxu0 0
        %3355 = vmatpush1.bf16.msra.mxu0 %v3331
        %3356 = vmatprep.subr.bf16.mxu0 0
        %3357 = vmatpush1.bf16.msra.mxu0 0
        %3358 = vmatprep.subr.bf16.mxu0 0
        %3359 = vmatpush1.bf16.msra.mxu0 0
        %3360 = vmatprep.subr.bf16.mxu0 0
        %3361 = vmatpush1.bf16.msra.mxu0 0
        %3362 = vmatprep.subr.bf16.mxu0 0
        %3363 = vmatpush1.bf16.msra.mxu0 0
        %3364 = vmatprep.subr.bf16.mxu0 0
        %3365 = vmatpush1.bf16.msra.mxu0 0
        %3366 = vmatprep.subr.bf16.mxu0 0
        %3367 = vmatpush1.bf16.msra.mxu0 0
        %3368 = vmatprep.subr.bf16.mxu0 0
        %3369 = vmatpush1.bf16.msra.mxu0 0
        %3370 = vmatprep.subr.bf16.mxu0 0
        %3371 = vmatpush1.bf16.msra.mxu0 0
        %3372 = vmatprep.mubr.bf16.mxu0 0
        %3373 = vmatmul.mubr.bf16.gmra.mrb[0].mxu0 %v3300
        %v3374 = vpop.f32.mrb[0].mxu0
        %v3375 = vadd.f32 0.0, %v3374
        %v3376 = vpop.f32.mrb[0].mxu0
        %v3377 = vpop.f32.mrb[0].mxu0
        %v3378 = vadd.f32 0.0, %v3377
        %v3379 = vpop.f32.mrb[0].mxu0
        %3380 = vmatprep.mubr.bf16.mxu0 0
        %3381 = vmatmul.mubr.bf16.gmra.mrb[0].mxu0 %v3301
        %v3382 = vpop.f32.mrb[0].mxu0
        %v3383 = vadd.f32 0.0, %v3382
        %v3384 = vpop.f32.mrb[0].mxu0
        %v3385 = vpop.f32.mrb[0].mxu0
        %v3386 = vadd.f32 0.0, %v3385
        %v3387 = vpop.f32.mrb[0].mxu0
        %3388 = vmatprep.mubr.bf16.mxu0 0
        %3389 = vmatmul.mubr.bf16.gmra.mrb[0].mxu0 %v3302
        %v3390 = vpop.f32.mrb[0].mxu0
        %v3391 = vadd.f32 0.0, %v3390
        %v3392 = vpop.f32.mrb[0].mxu0
        %v3393 = vpop.f32.mrb[0].mxu0
        %v3394 = vadd.f32 0.0, %v3393
        %v3395 = vpop.f32.mrb[0].mxu0
        %3396 = vmatprep.mubr.bf16.mxu0 0
        %3397 = vmatmul.mubr.bf16.gmra.mrb[0].mxu0 %v3303
        %v3398 = vpop.f32.mrb[0].mxu0
        %v3399 = vadd.f32 0.0, %v3398
        %v3400 = vpop.f32.mrb[0].mxu0
        %v3401 = vpop.f32.mrb[0].mxu0
        %v3402 = vadd.f32 0.0, %v3401
        %v3403 = vpop.f32.mrb[0].mxu0
        %3404 = vmatprep.mubr.bf16.mxu0 0
        %3405 = vmatmul.mubr.bf16.gmra.mrb[0].mxu0 %v3304
        %v3406 = vpop.f32.mrb[0].mxu0
        %v3407 = vadd.f32 0.0, %v3406
        %v3408 = vpop.f32.mrb[0].mxu0
        %v3409 = vpop.f32.mrb[0].mxu0
        %v3410 = vadd.f32 0.0, %v3409
        %v3411 = vpop.f32.mrb[0].mxu0
        %3412 = vmatprep.mubr.bf16.mxu0 0
        %3413 = vmatmul.mubr.bf16.gmra.mrb[0].mxu0 %v3305
        %v3414 = vpop.f32.mrb[0].mxu0
        %v3415 = vadd.f32 0.0, %v3414
        %v3416 = vpop.f32.mrb[0].mxu0
        %v3417 = vpop.f32.mrb[0].mxu0
        %v3418 = vadd.f32 0.0, %v3417
        %v3419 = vpop.f32.mrb[0].mxu0
        %3420 = vmatprep.mubr.bf16.mxu0 0
        %3421 = vmatmul.mubr.bf16.gmra.mrb[0].mxu0 %v3306
        %v3422 = vpop.f32.mrb[0].mxu0
        %v3423 = vadd.f32 0.0, %v3422
        %v3424 = vpop.f32.mrb[0].mxu0
        %v3425 = vpop.f32.mrb[0].mxu0
        %v3426 = vadd.f32 0.0, %v3425
        %v3427 = vpop.f32.mrb[0].mxu0
        %3428 = vmatprep.mubr.bf16.mxu0 0
        %3429 = vmatmul.mubr.bf16.gmra.mrb[0].mxu0 %v3307
        %v3430 = vpop.f32.mrb[0].mxu0
        %v3431 = vadd.f32 0.0, %v3430
        %v3432 = vpop.f32.mrb[0].mxu0
        %v3433 = vpop.f32.mrb[0].mxu0
        %v3434 = vadd.f32 0.0, %v3433
        %v3435 = vpop.f32.mrb[0].mxu0
        %3436 = vdwg.mxu0
        %3453 = vrot.lane.b32.xlu0 %v3375, 64
        %v3454 = vpop.permute.xlu0 %3453
        %3455 = vrot.lane.b32.xlu0 %v3378, 64
        %v3456 = vpop.permute.xlu0 %3455
        %3457 = vrot.lane.b32.xlu0 %v3383, 64
        %v3458 = vpop.permute.xlu0 %3457
        %3459 = vrot.lane.b32.xlu0 %v3386, 64
        %v3460 = vpop.permute.xlu0 %3459
        %3461 = vrot.lane.b32.xlu0 %v3391, 64
        %v3462 = vpop.permute.xlu0 %3461
        %3463 = vrot.lane.b32.xlu0 %v3394, 64
        %v3464 = vpop.permute.xlu0 %3463
        %3465 = vrot.lane.b32.xlu0 %v3399, 64
        %v3466 = vpop.permute.xlu0 %3465
        %3467 = vrot.lane.b32.xlu0 %v3402, 64
        %v3468 = vpop.permute.xlu0 %3467
        %3469 = vrot.lane.b32.xlu0 %v3407, 64
        %v3470 = vpop.permute.xlu0 %3469
        %3471 = vrot.lane.b32.xlu0 %v3410, 64
        %v3472 = vpop.permute.xlu0 %3471
        %3473 = vrot.lane.b32.xlu0 %v3415, 64
        %v3474 = vpop.permute.xlu0 %3473
        %3475 = vrot.lane.b32.xlu0 %v3418, 64
        %v3476 = vpop.permute.xlu0 %3475
        %3477 = vrot.lane.b32.xlu0 %v3423, 64
        %v3478 = vpop.permute.xlu0 %3477
        %3479 = vrot.lane.b32.xlu0 %v3426, 64
        %v3480 = vpop.permute.xlu0 %3479
        %3481 = vrot.lane.b32.xlu0 %v3431, 64
        %v3482 = vpop.permute.xlu0 %3481
        %3483 = vrot.lane.b32.xlu0 %v3434, 64
        %v3484 = vpop.permute.xlu0 %3483
        %v3501 = vsel %vm1564, %v2901, %v3454
        %v3502 = vsel %vm1564, %v2904, %v3456
        %v3503 = vsel %vm1564, %v2909, %v3458
        %v3504 = vsel %vm1564, %v2912, %v3460
        %v3505 = vsel %vm1564, %v2917, %v3462
        %v3506 = vsel %vm1564, %v2920, %v3464
        %v3507 = vsel %vm1564, %v2925, %v3466
        %v3508 = vsel %vm1564, %v2928, %v3468
        %v3509 = vsel %vm1564, %v2933, %v3470
        %v3510 = vsel %vm1564, %v2936, %v3472
        %v3511 = vsel %vm1564, %v2941, %v3474
        %v3512 = vsel %vm1564, %v2944, %v3476
        %v3513 = vsel %vm1564, %v2949, %v3478
        %v3514 = vsel %vm1564, %v2952, %v3480
        %v3515 = vsel %vm1564, %v2957, %v3482
        %v3516 = vsel %vm1564, %v2960, %v3484
        %v3517 = vpack.c.bf16 %v3502, %v3501
        %v3518 = vpack.c.bf16 %v3504, %v3503
        %v3519 = vpack.c.bf16 %v3506, %v3505
        %v3520 = vpack.c.bf16 %v3508, %v3507
        %v3521 = vpack.c.bf16 %v3510, %v3509
        %v3522 = vpack.c.bf16 %v3512, %v3511
        %v3523 = vpack.c.bf16 %v3514, %v3513
        %v3524 = vpack.c.bf16 %v3516, %v3515
        %3525 = vst [vmem:[#allocation2 + $0x8] sm:$0xff] %v3517
        %3526 = vst [vmem:[#allocation2 + $0x28] sm:$0xff] %v3518
        %3527 = vst [vmem:[#allocation2 + $0x48] sm:$0xff] %v3519
        %3528 = vst [vmem:[#allocation2 + $0x68] sm:$0xff] %v3520
        %3529 = vst [vmem:[#allocation2 + $0x88] sm:$0xff] %v3521
        %3530 = vst [vmem:[#allocation2 + $0xa8] sm:$0xff] %v3522
        %3531 = vst [vmem:[#allocation2 + $0xc8] sm:$0xff] %v3523
        %3532 = vst [vmem:[#allocation2 + $0xe8] sm:$0xff] %v3524
        %v3533 = vmul.f32 %v994, 0.088388346
        %v3534 = vmul.f32 %v998, 0.088388346
        %v3535 = vmul.f32 %v1004, 0.088388346
        %v3536 = vmul.f32 %v1008, 0.088388346
        %v3537 = vmul.f32 %v1014, 0.088388346
        %v3538 = vmul.f32 %v1018, 0.088388346
        %v3539 = vmul.f32 %v1024, 0.088388346
        %v3540 = vmul.f32 %v1028, 0.088388346
        %v3541 = vmul.f32 %v1034, 0.088388346
        %v3542 = vmul.f32 %v1038, 0.088388346
        %v3543 = vmul.f32 %v1044, 0.088388346
        %v3544 = vmul.f32 %v1048, 0.088388346
        %v3545 = vmul.f32 %v1054, 0.088388346
        %v3546 = vmul.f32 %v1058, 0.088388346
        %v3547 = vmul.f32 %v1064, 0.088388346
        %v3548 = vmul.f32 %v1068, 0.088388346
        %v3549 = vpack.c.bf16 %v3534, %v3533
        %v3550 = vpack.c.bf16 %v3536, %v3535
        %v3551 = vpack.c.bf16 %v3538, %v3537
        %v3552 = vpack.c.bf16 %v3540, %v3539
        %v3553 = vpack.c.bf16 %v3542, %v3541
        %v3554 = vpack.c.bf16 %v3544, %v3543
        %v3555 = vpack.c.bf16 %v3546, %v3545
        %v3556 = vpack.c.bf16 %v3548, %v3547
        %v3557 = vpack.c.bf16 %v1224, %v1220
        %v3558 = vpack.c.bf16 %v1234, %v1230
        %v3559 = vpack.c.bf16 %v1244, %v1240
        %v3560 = vpack.c.bf16 %v1254, %v1250
        %v3561 = vpack.c.bf16 %v1264, %v1260
        %v3562 = vpack.c.bf16 %v1274, %v1270
        %v3563 = vpack.c.bf16 %v1284, %v1280
        %v3564 = vpack.c.bf16 %v1294, %v1290
        %v3565 = vpack.c.bf16 %v1450, %v1446
        %v3566 = vpack.c.bf16 %v1460, %v1456
        %v3567 = vpack.c.bf16 %v1470, %v1466
        %v3568 = vpack.c.bf16 %v1480, %v1476
        %v3569 = vpack.c.bf16 %v1490, %v1486
        %v3570 = vpack.c.bf16 %v1500, %v1496
        %v3571 = vpack.c.bf16 %v1510, %v1506
        %v3572 = vpack.c.bf16 %v1520, %v1516
        %v3574 = vsel %vm1564, %v3549, 0
        %v3577 = vsel %vm1564, %v3550, 0
        %v3580 = vsel %vm1564, %v3551, 0
        %v3583 = vsel %vm1564, %v3552, 0
        %v3586 = vsel %vm1564, %v3553, 0
        %v3589 = vsel %vm1564, %v3554, 0
        %v3592 = vsel %vm1564, %v3555, 0
        %v3595 = vsel %vm1564, %v3556, 0
        %v3598 = vsel %vm1564, %v3557, 0
        %v3601 = vsel %vm1564, %v3558, 0
        %v3604 = vsel %vm1564, %v3559, 0
        %v3607 = vsel %vm1564, %v3560, 0
        %v3610 = vsel %vm1564, %v3561, 0
        %v3613 = vsel %vm1564, %v3562, 0
        %v3616 = vsel %vm1564, %v3563, 0
        %v3619 = vsel %vm1564, %v3564, 0
        %3621 = vmatprep.subr.bf16.mxu0 0
        %3622 = vmatpush1.bf16.xpose.msra.mxu0 %v3598
        %3623 = vmatprep.subr.bf16.mxu0 0
        %3624 = vmatpush1.bf16.xpose.msra.mxu0 %v3601
        %3625 = vmatprep.subr.bf16.mxu0 0
        %3626 = vmatpush1.bf16.xpose.msra.mxu0 %v3604
        %3627 = vmatprep.subr.bf16.mxu0 0
        %3628 = vmatpush1.bf16.xpose.msra.mxu0 %v3607
        %3629 = vmatprep.subr.bf16.mxu0 0
        %3630 = vmatpush1.bf16.xpose.msra.mxu0 %v3610
        %3631 = vmatprep.subr.bf16.mxu0 0
        %3632 = vmatpush1.bf16.xpose.msra.mxu0 %v3613
        %3633 = vmatprep.subr.bf16.mxu0 0
        %3634 = vmatpush1.bf16.xpose.msra.mxu0 %v3616
        %3635 = vmatprep.subr.bf16.mxu0 0
        %3636 = vmatpush1.bf16.xpose.msra.mxu0 %v3619
        %3637 = vmatprep.subr.bf16.mxu0 0
        %3638 = vmatpush1.bf16.xpose.msra.mxu0 0
        %3639 = vmatprep.subr.bf16.mxu0 0
        %3640 = vmatpush1.bf16.xpose.msra.mxu0 0
        %3641 = vmatprep.subr.bf16.mxu0 0
        %3642 = vmatpush1.bf16.xpose.msra.mxu0 0
        %3643 = vmatprep.subr.bf16.mxu0 0
        %3644 = vmatpush1.bf16.xpose.msra.mxu0 0
        %3645 = vmatprep.subr.bf16.mxu0 0
        %3646 = vmatpush1.bf16.xpose.msra.mxu0 0
        %3647 = vmatprep.subr.bf16.mxu0 0
        %3648 = vmatpush1.bf16.xpose.msra.mxu0 0
        %3649 = vmatprep.subr.bf16.mxu0 0
        %3650 = vmatpush1.bf16.xpose.msra.mxu0 0
        %3651 = vmatprep.subr.bf16.mxu0 0
        %3652 = vmatpush1.bf16.xpose.msra.mxu0 0
        %3653 = vmatprep.mubr.bf16.mxu0 0
        %3654 = vmatmul.mubr.bf16.gmra.mrb[0].mxu0 %v3574
        %v3655 = vpop.f32.mrb[0].mxu0
        %v3656 = vadd.f32 0.0, %v3655
        %v3657 = vpop.f32.mrb[0].mxu0
        %v3658 = vpop.f32.mrb[0].mxu0
        %v3659 = vadd.f32 0.0, %v3658
        %v3660 = vpop.f32.mrb[0].mxu0
        %3661 = vmatprep.mubr.bf16.mxu0 0
        %3662 = vmatmul.mubr.bf16.gmra.mrb[0].mxu0 %v3577
        %v3663 = vpop.f32.mrb[0].mxu0
        %v3664 = vadd.f32 0.0, %v3663
        %v3665 = vpop.f32.mrb[0].mxu0
        %v3666 = vpop.f32.mrb[0].mxu0
        %v3667 = vadd.f32 0.0, %v3666
        %v3668 = vpop.f32.mrb[0].mxu0
        %3669 = vmatprep.mubr.bf16.mxu0 0
        %3670 = vmatmul.mubr.bf16.gmra.mrb[0].mxu0 %v3580
        %v3671 = vpop.f32.mrb[0].mxu0
        %v3672 = vadd.f32 0.0, %v3671
        %v3673 = vpop.f32.mrb[0].mxu0
        %v3674 = vpop.f32.mrb[0].mxu0
        %v3675 = vadd.f32 0.0, %v3674
        %v3676 = vpop.f32.mrb[0].mxu0
        %3677 = vmatprep.mubr.bf16.mxu0 0
        %3678 = vmatmul.mubr.bf16.gmra.mrb[0].mxu0 %v3583
        %v3679 = vpop.f32.mrb[0].mxu0
        %v3680 = vadd.f32 0.0, %v3679
        %v3681 = vpop.f32.mrb[0].mxu0
        %v3682 = vpop.f32.mrb[0].mxu0
        %v3683 = vadd.f32 0.0, %v3682
        %v3684 = vpop.f32.mrb[0].mxu0
        %3685 = vmatprep.mubr.bf16.mxu0 0
        %3686 = vmatmul.mubr.bf16.gmra.mrb[0].mxu0 %v3586
        %v3687 = vpop.f32.mrb[0].mxu0
        %v3688 = vadd.f32 0.0, %v3687
        %v3689 = vpop.f32.mrb[0].mxu0
        %v3690 = vpop.f32.mrb[0].mxu0
        %v3691 = vadd.f32 0.0, %v3690
        %v3692 = vpop.f32.mrb[0].mxu0
        %3693 = vmatprep.mubr.bf16.mxu0 0
        %3694 = vmatmul.mubr.bf16.gmra.mrb[0].mxu0 %v3589
        %v3695 = vpop.f32.mrb[0].mxu0
        %v3696 = vadd.f32 0.0, %v3695
        %v3697 = vpop.f32.mrb[0].mxu0
        %v3698 = vpop.f32.mrb[0].mxu0
        %v3699 = vadd.f32 0.0, %v3698
        %v3700 = vpop.f32.mrb[0].mxu0
        %3701 = vmatprep.mubr.bf16.mxu0 0
        %3702 = vmatmul.mubr.bf16.gmra.mrb[0].mxu0 %v3592
        %v3703 = vpop.f32.mrb[0].mxu0
        %v3704 = vadd.f32 0.0, %v3703
        %v3705 = vpop.f32.mrb[0].mxu0
        %v3706 = vpop.f32.mrb[0].mxu0
        %v3707 = vadd.f32 0.0, %v3706
        %v3708 = vpop.f32.mrb[0].mxu0
        %3709 = vmatprep.mubr.bf16.mxu0 0
        %3710 = vmatmul.mubr.bf16.gmra.mrb[0].mxu0 %v3595
        %v3711 = vpop.f32.mrb[0].mxu0
        %v3712 = vadd.f32 0.0, %v3711
        %v3713 = vpop.f32.mrb[0].mxu0
        %v3714 = vpop.f32.mrb[0].mxu0
        %v3715 = vadd.f32 0.0, %v3714
        %v3716 = vpop.f32.mrb[0].mxu0
        %3717 = vdwg.mxu0
        %3718 = vmax.xlane.f32.xlu0 %v3656
        %v3719 = vpop.xlane.xlu0 %3718
        %3720 = vmax.xlane.f32.xlu0 %v3659
        %v3721 = vpop.xlane.xlu0 %3720
        %3722 = vmax.xlane.f32.xlu0 %v3664
        %v3723 = vpop.xlane.xlu0 %3722
        %3724 = vmax.xlane.f32.xlu0 %v3667
        %v3725 = vpop.xlane.xlu0 %3724
        %3726 = vmax.xlane.f32.xlu0 %v3672
        %v3727 = vpop.xlane.xlu0 %3726
        %3728 = vmax.xlane.f32.xlu0 %v3675
        %v3729 = vpop.xlane.xlu0 %3728
        %3730 = vmax.xlane.f32.xlu0 %v3680
        %v3731 = vpop.xlane.xlu0 %3730
        %3732 = vmax.xlane.f32.xlu0 %v3683
        %v3733 = vpop.xlane.xlu0 %3732
        %3734 = vmax.xlane.f32.xlu0 %v3688
        %v3735 = vpop.xlane.xlu0 %3734
        %3736 = vmax.xlane.f32.xlu0 %v3691
        %v3737 = vpop.xlane.xlu0 %3736
        %3738 = vmax.xlane.f32.xlu0 %v3696
        %v3739 = vpop.xlane.xlu0 %3738
        %3740 = vmax.xlane.f32.xlu0 %v3699
        %v3741 = vpop.xlane.xlu0 %3740
        %3742 = vmax.xlane.f32.xlu0 %v3704
        %v3743 = vpop.xlane.xlu0 %3742
        %3744 = vmax.xlane.f32.xlu0 %v3707
        %v3745 = vpop.xlane.xlu0 %3744
        %3746 = vmax.xlane.f32.xlu0 %v3712
        %v3747 = vpop.xlane.xlu0 %3746
        %3748 = vmax.xlane.f32.xlu0 %v3715
        %v3749 = vpop.xlane.xlu0 %3748
        %v3750 = vsub.f32 %v3656, %v3719
        %v3751 = vsub.f32 %v3659, %v3721
        %v3752 = vsub.f32 %v3664, %v3723
        %v3753 = vsub.f32 %v3667, %v3725
        %v3754 = vsub.f32 %v3672, %v3727
        %v3755 = vsub.f32 %v3675, %v3729
        %v3756 = vsub.f32 %v3680, %v3731
        %v3757 = vsub.f32 %v3683, %v3733
        %v3758 = vsub.f32 %v3688, %v3735
        %v3759 = vsub.f32 %v3691, %v3737
        %v3760 = vsub.f32 %v3696, %v3739
        %v3761 = vsub.f32 %v3699, %v3741
        %v3762 = vsub.f32 %v3704, %v3743
        %v3763 = vsub.f32 %v3707, %v3745
        %v3764 = vsub.f32 %v3712, %v3747
        %v3765 = vsub.f32 %v3715, %v3749
        %v3766 = vmul.f32 %v3750, 1.442695
        %v3767 = vpow.pop %v3766
        %v3768 = vmul.f32 %v3751, 1.442695
        %v3769 = vpow.pop %v3768
        %v3770 = vmul.f32 %v3752, 1.442695
        %v3771 = vpow.pop %v3770
        %v3772 = vmul.f32 %v3753, 1.442695
        %v3773 = vpow.pop %v3772
        %v3774 = vmul.f32 %v3754, 1.442695
        %v3775 = vpow.pop %v3774
        %v3776 = vmul.f32 %v3755, 1.442695
        %v3777 = vpow.pop %v3776
        %v3778 = vmul.f32 %v3756, 1.442695
        %v3779 = vpow.pop %v3778
        %v3780 = vmul.f32 %v3757, 1.442695
        %v3781 = vpow.pop %v3780
        %v3782 = vmul.f32 %v3758, 1.442695
        %v3783 = vpow.pop %v3782
        %v3784 = vmul.f32 %v3759, 1.442695
        %v3785 = vpow.pop %v3784
        %v3786 = vmul.f32 %v3760, 1.442695
        %v3787 = vpow.pop %v3786
        %v3788 = vmul.f32 %v3761, 1.442695
        %v3789 = vpow.pop %v3788
        %v3790 = vmul.f32 %v3762, 1.442695
        %v3791 = vpow.pop %v3790
        %v3792 = vmul.f32 %v3763, 1.442695
        %v3793 = vpow.pop %v3792
        %v3794 = vmul.f32 %v3764, 1.442695
        %v3795 = vpow.pop %v3794
        %v3796 = vmul.f32 %v3765, 1.442695
        %v3797 = vpow.pop %v3796
        %3798 = vadd.xlane.f32.xlu0 %v3767
        %v3799 = vpop.xlane.xlu0 %3798
        %3800 = vadd.xlane.f32.xlu0 %v3769
        %v3801 = vpop.xlane.xlu0 %3800
        %3802 = vadd.xlane.f32.xlu0 %v3771
        %v3803 = vpop.xlane.xlu0 %3802
        %3804 = vadd.xlane.f32.xlu0 %v3773
        %v3805 = vpop.xlane.xlu0 %3804
        %3806 = vadd.xlane.f32.xlu0 %v3775
        %v3807 = vpop.xlane.xlu0 %3806
        %3808 = vadd.xlane.f32.xlu0 %v3777
        %v3809 = vpop.xlane.xlu0 %3808
        %3810 = vadd.xlane.f32.xlu0 %v3779
        %v3811 = vpop.xlane.xlu0 %3810
        %3812 = vadd.xlane.f32.xlu0 %v3781
        %v3813 = vpop.xlane.xlu0 %3812
        %3814 = vadd.xlane.f32.xlu0 %v3783
        %v3815 = vpop.xlane.xlu0 %3814
        %3816 = vadd.xlane.f32.xlu0 %v3785
        %v3817 = vpop.xlane.xlu0 %3816
        %3818 = vadd.xlane.f32.xlu0 %v3787
        %v3819 = vpop.xlane.xlu0 %3818
        %3820 = vadd.xlane.f32.xlu0 %v3789
        %v3821 = vpop.xlane.xlu0 %3820
        %3822 = vadd.xlane.f32.xlu0 %v3791
        %v3823 = vpop.xlane.xlu0 %3822
        %3824 = vadd.xlane.f32.xlu0 %v3793
        %v3825 = vpop.xlane.xlu0 %3824
        %3826 = vadd.xlane.f32.xlu0 %v3795
        %v3827 = vpop.xlane.xlu0 %3826
        %3828 = vadd.xlane.f32.xlu0 %v3797
        %v3829 = vpop.xlane.xlu0 %3828
        %v3830 = vrcp.pop %v3799
        %v3831 = vrcp.pop %v3801
        %v3832 = vrcp.pop %v3803
        %v3833 = vrcp.pop %v3805
        %v3834 = vrcp.pop %v3807
        %v3835 = vrcp.pop %v3809
        %v3836 = vrcp.pop %v3811
        %v3837 = vrcp.pop %v3813
        %v3838 = vrcp.pop %v3815
        %v3839 = vrcp.pop %v3817
        %v3840 = vrcp.pop %v3819
        %v3841 = vrcp.pop %v3821
        %v3842 = vrcp.pop %v3823
        %v3843 = vrcp.pop %v3825
        %v3844 = vrcp.pop %v3827
        %v3845 = vrcp.pop %v3829
        %v3846 = vmul.f32 %v3767, %v3830
        %v3847 = vmul.f32 %v3769, %v3831
        %v3848 = vmul.f32 %v3771, %v3832
        %v3849 = vmul.f32 %v3773, %v3833
        %v3850 = vmul.f32 %v3775, %v3834
        %v3851 = vmul.f32 %v3777, %v3835
        %v3852 = vmul.f32 %v3779, %v3836
        %v3853 = vmul.f32 %v3781, %v3837
        %v3854 = vmul.f32 %v3783, %v3838
        %v3855 = vmul.f32 %v3785, %v3839
        %v3856 = vmul.f32 %v3787, %v3840
        %v3857 = vmul.f32 %v3789, %v3841
        %v3858 = vmul.f32 %v3791, %v3842
        %v3859 = vmul.f32 %v3793, %v3843
        %v3860 = vmul.f32 %v3795, %v3844
        %v3861 = vmul.f32 %v3797, %v3845
        %v3862 = vpack.c.bf16 %v3847, %v3846
        %v3863 = vpack.c.bf16 %v3849, %v3848
        %v3864 = vpack.c.bf16 %v3851, %v3850
        %v3865 = vpack.c.bf16 %v3853, %v3852
        %v3866 = vpack.c.bf16 %v3855, %v3854
        %v3867 = vpack.c.bf16 %v3857, %v3856
        %v3868 = vpack.c.bf16 %v3859, %v3858
        %v3869 = vpack.c.bf16 %v3861, %v3860
        %3870 = vmatprep.subr.bf16.mxu0 0
        %3871 = vmatpush1.bf16.msra.mxu0 %v3565
        %3872 = vmatprep.subr.bf16.mxu0 0
        %3873 = vmatpush1.bf16.msra.mxu0 %v3566
        %3874 = vmatprep.subr.bf16.mxu0 0
        %3875 = vmatpush1.bf16.msra.mxu0 %v3567
        %3876 = vmatprep.subr.bf16.mxu0 0
        %3877 = vmatpush1.bf16.msra.mxu0 %v3568
        %3878 = vmatprep.subr.bf16.mxu0 0
        %3879 = vmatpush1.bf16.msra.mxu0 %v3569
        %3880 = vmatprep.subr.bf16.mxu0 0
        %3881 = vmatpush1.bf16.msra.mxu0 %v3570
        %3882 = vmatprep.subr.bf16.mxu0 0
        %3883 = vmatpush1.bf16.msra.mxu0 %v3571
        %3884 = vmatprep.subr.bf16.mxu0 0
        %3885 = vmatpush1.bf16.msra.mxu0 %v3572
        %3886 = vmatprep.subr.bf16.mxu0 0
        %3887 = vmatpush1.bf16.msra.mxu0 0
        %3888 = vmatprep.subr.bf16.mxu0 0
        %3889 = vmatpush1.bf16.msra.mxu0 0
        %3890 = vmatprep.subr.bf16.mxu0 0
        %3891 = vmatpush1.bf16.msra.mxu0 0
        %3892 = vmatprep.subr.bf16.mxu0 0
        %3893 = vmatpush1.bf16.msra.mxu0 0
        %3894 = vmatprep.subr.bf16.mxu0 0
        %3895 = vmatpush1.bf16.msra.mxu0 0
        %3896 = vmatprep.subr.bf16.mxu0 0
        %3897 = vmatpush1.bf16.msra.mxu0 0
        %3898 = vmatprep.subr.bf16.mxu0 0
        %3899 = vmatpush1.bf16.msra.mxu0 0
        %3900 = vmatprep.subr.bf16.mxu0 0
        %3901 = vmatpush1.bf16.msra.mxu0 0
        %3902 = vmatprep.mubr.bf16.mxu0 0
        %3903 = vmatmul.mubr.bf16.gmra.mrb[0].mxu0 %v3862
        %v3904 = vpop.f32.mrb[0].mxu0
        %v3905 = vadd.f32 0.0, %v3904
        %v3906 = vpop.f32.mrb[0].mxu0
        %v3907 = vpop.f32.mrb[0].mxu0
        %v3908 = vadd.f32 0.0, %v3907
        %v3909 = vpop.f32.mrb[0].mxu0
        %3910 = vmatprep.mubr.bf16.mxu0 0
        %3911 = vmatmul.mubr.bf16.gmra.mrb[0].mxu0 %v3863
        %v3912 = vpop.f32.mrb[0].mxu0
        %v3913 = vadd.f32 0.0, %v3912
        %v3914 = vpop.f32.mrb[0].mxu0
        %v3915 = vpop.f32.mrb[0].mxu0
        %v3916 = vadd.f32 0.0, %v3915
        %v3917 = vpop.f32.mrb[0].mxu0
        %3918 = vmatprep.mubr.bf16.mxu0 0
        %3919 = vmatmul.mubr.bf16.gmra.mrb[0].mxu0 %v3864
        %v3920 = vpop.f32.mrb[0].mxu0
        %v3921 = vadd.f32 0.0, %v3920
        %v3922 = vpop.f32.mrb[0].mxu0
        %v3923 = vpop.f32.mrb[0].mxu0
        %v3924 = vadd.f32 0.0, %v3923
        %v3925 = vpop.f32.mrb[0].mxu0
        %3926 = vmatprep.mubr.bf16.mxu0 0
        %3927 = vmatmul.mubr.bf16.gmra.mrb[0].mxu0 %v3865
        %v3928 = vpop.f32.mrb[0].mxu0
        %v3929 = vadd.f32 0.0, %v3928
        %v3930 = vpop.f32.mrb[0].mxu0
        %v3931 = vpop.f32.mrb[0].mxu0
        %v3932 = vadd.f32 0.0, %v3931
        %v3933 = vpop.f32.mrb[0].mxu0
        %3934 = vmatprep.mubr.bf16.mxu0 0
        %3935 = vmatmul.mubr.bf16.gmra.mrb[0].mxu0 %v3866
        %v3936 = vpop.f32.mrb[0].mxu0
        %v3937 = vadd.f32 0.0, %v3936
        %v3938 = vpop.f32.mrb[0].mxu0
        %v3939 = vpop.f32.mrb[0].mxu0
        %v3940 = vadd.f32 0.0, %v3939
        %v3941 = vpop.f32.mrb[0].mxu0
        %3942 = vmatprep.mubr.bf16.mxu0 0
        %3943 = vmatmul.mubr.bf16.gmra.mrb[0].mxu0 %v3867
        %v3944 = vpop.f32.mrb[0].mxu0
        %v3945 = vadd.f32 0.0, %v3944
        %v3946 = vpop.f32.mrb[0].mxu0
        %v3947 = vpop.f32.mrb[0].mxu0
        %v3948 = vadd.f32 0.0, %v3947
        %v3949 = vpop.f32.mrb[0].mxu0
        %3950 = vmatprep.mubr.bf16.mxu0 0
        %3951 = vmatmul.mubr.bf16.gmra.mrb[0].mxu0 %v3868
        %v3952 = vpop.f32.mrb[0].mxu0
        %v3953 = vadd.f32 0.0, %v3952
        %v3954 = vpop.f32.mrb[0].mxu0
        %v3955 = vpop.f32.mrb[0].mxu0
        %v3956 = vadd.f32 0.0, %v3955
        %v3957 = vpop.f32.mrb[0].mxu0
        %3958 = vmatprep.mubr.bf16.mxu0 0
        %3959 = vmatmul.mubr.bf16.gmra.mrb[0].mxu0 %v3869
        %v3960 = vpop.f32.mrb[0].mxu0
        %v3961 = vadd.f32 0.0, %v3960
        %v3962 = vpop.f32.mrb[0].mxu0
        %v3963 = vpop.f32.mrb[0].mxu0
        %v3964 = vadd.f32 0.0, %v3963
        %v3965 = vpop.f32.mrb[0].mxu0
        %3966 = vdwg.mxu0
        %3975 = vrot.lane.b32.xlu0 %v3549, 64
        %v3976 = vpop.permute.xlu0 %3975
        %3977 = vrot.lane.b32.xlu0 %v3550, 64
        %v3978 = vpop.permute.xlu0 %3977
        %3979 = vrot.lane.b32.xlu0 %v3551, 64
        %v3980 = vpop.permute.xlu0 %3979
        %3981 = vrot.lane.b32.xlu0 %v3552, 64
        %v3982 = vpop.permute.xlu0 %3981
        %3983 = vrot.lane.b32.xlu0 %v3553, 64
        %v3984 = vpop.permute.xlu0 %3983
        %3985 = vrot.lane.b32.xlu0 %v3554, 64
        %v3986 = vpop.permute.xlu0 %3985
        %3987 = vrot.lane.b32.xlu0 %v3555, 64
        %v3988 = vpop.permute.xlu0 %3987
        %3989 = vrot.lane.b32.xlu0 %v3556, 64
        %v3990 = vpop.permute.xlu0 %3989
        %3999 = vrot.lane.b32.xlu0 %v3557, 64
        %v4000 = vpop.permute.xlu0 %3999
        %4001 = vrot.lane.b32.xlu0 %v3558, 64
        %v4002 = vpop.permute.xlu0 %4001
        %4003 = vrot.lane.b32.xlu0 %v3559, 64
        %v4004 = vpop.permute.xlu0 %4003
        %4005 = vrot.lane.b32.xlu0 %v3560, 64
        %v4006 = vpop.permute.xlu0 %4005
        %4007 = vrot.lane.b32.xlu0 %v3561, 64
        %v4008 = vpop.permute.xlu0 %4007
        %4009 = vrot.lane.b32.xlu0 %v3562, 64
        %v4010 = vpop.permute.xlu0 %4009
        %4011 = vrot.lane.b32.xlu0 %v3563, 64
        %v4012 = vpop.permute.xlu0 %4011
        %4013 = vrot.lane.b32.xlu0 %v3564, 64
        %v4014 = vpop.permute.xlu0 %4013
        %v4016 = vsel %vm1564, %v3976, 0
        %v4019 = vsel %vm1564, %v3978, 0
        %v4022 = vsel %vm1564, %v3980, 0
        %v4025 = vsel %vm1564, %v3982, 0
        %v4028 = vsel %vm1564, %v3984, 0
        %v4031 = vsel %vm1564, %v3986, 0
        %v4034 = vsel %vm1564, %v3988, 0
        %v4037 = vsel %vm1564, %v3990, 0
        %v4040 = vsel %vm1564, %v4000, 0
        %v4043 = vsel %vm1564, %v4002, 0
        %v4046 = vsel %vm1564, %v4004, 0
        %v4049 = vsel %vm1564, %v4006, 0
        %v4052 = vsel %vm1564, %v4008, 0
        %v4055 = vsel %vm1564, %v4010, 0
        %v4058 = vsel %vm1564, %v4012, 0
        %v4061 = vsel %vm1564, %v4014, 0
        %4063 = vmatprep.subr.bf16.mxu0 0
        %4064 = vmatpush1.bf16.xpose.msra.mxu0 %v4040
        %4065 = vmatprep.subr.bf16.mxu0 0
        %4066 = vmatpush1.bf16.xpose.msra.mxu0 %v4043
        %4067 = vmatprep.subr.bf16.mxu0 0
        %4068 = vmatpush1.bf16.xpose.msra.mxu0 %v4046
        %4069 = vmatprep.subr.bf16.mxu0 0
        %4070 = vmatpush1.bf16.xpose.msra.mxu0 %v4049
        %4071 = vmatprep.subr.bf16.mxu0 0
        %4072 = vmatpush1.bf16.xpose.msra.mxu0 %v4052
        %4073 = vmatprep.subr.bf16.mxu0 0
        %4074 = vmatpush1.bf16.xpose.msra.mxu0 %v4055
        %4075 = vmatprep.subr.bf16.mxu0 0
        %4076 = vmatpush1.bf16.xpose.msra.mxu0 %v4058
        %4077 = vmatprep.subr.bf16.mxu0 0
        %4078 = vmatpush1.bf16.xpose.msra.mxu0 %v4061
        %4079 = vmatprep.subr.bf16.mxu0 0
        %4080 = vmatpush1.bf16.xpose.msra.mxu0 0
        %4081 = vmatprep.subr.bf16.mxu0 0
        %4082 = vmatpush1.bf16.xpose.msra.mxu0 0
        %4083 = vmatprep.subr.bf16.mxu0 0
        %4084 = vmatpush1.bf16.xpose.msra.mxu0 0
        %4085 = vmatprep.subr.bf16.mxu0 0
        %4086 = vmatpush1.bf16.xpose.msra.mxu0 0
        %4087 = vmatprep.subr.bf16.mxu0 0
        %4088 = vmatpush1.bf16.xpose.msra.mxu0 0
        %4089 = vmatprep.subr.bf16.mxu0 0
        %4090 = vmatpush1.bf16.xpose.msra.mxu0 0
        %4091 = vmatprep.subr.bf16.mxu0 0
        %4092 = vmatpush1.bf16.xpose.msra.mxu0 0
        %4093 = vmatprep.subr.bf16.mxu0 0
        %4094 = vmatpush1.bf16.xpose.msra.mxu0 0
        %4095 = vmatprep.mubr.bf16.mxu0 0
        %4096 = vmatmul.mubr.bf16.gmra.mrb[0].mxu0 %v4016
        %v4097 = vpop.f32.mrb[0].mxu0
        %v4098 = vadd.f32 0.0, %v4097
        %v4099 = vpop.f32.mrb[0].mxu0
        %v4100 = vpop.f32.mrb[0].mxu0
        %v4101 = vadd.f32 0.0, %v4100
        %v4102 = vpop.f32.mrb[0].mxu0
        %4103 = vmatprep.mubr.bf16.mxu0 0
        %4104 = vmatmul.mubr.bf16.gmra.mrb[0].mxu0 %v4019
        %v4105 = vpop.f32.mrb[0].mxu0
        %v4106 = vadd.f32 0.0, %v4105
        %v4107 = vpop.f32.mrb[0].mxu0
        %v4108 = vpop.f32.mrb[0].mxu0
        %v4109 = vadd.f32 0.0, %v4108
        %v4110 = vpop.f32.mrb[0].mxu0
        %4111 = vmatprep.mubr.bf16.mxu0 0
        %4112 = vmatmul.mubr.bf16.gmra.mrb[0].mxu0 %v4022
        %v4113 = vpop.f32.mrb[0].mxu0
        %v4114 = vadd.f32 0.0, %v4113
        %v4115 = vpop.f32.mrb[0].mxu0
        %v4116 = vpop.f32.mrb[0].mxu0
        %v4117 = vadd.f32 0.0, %v4116
        %v4118 = vpop.f32.mrb[0].mxu0
        %4119 = vmatprep.mubr.bf16.mxu0 0
        %4120 = vmatmul.mubr.bf16.gmra.mrb[0].mxu0 %v4025
        %v4121 = vpop.f32.mrb[0].mxu0
        %v4122 = vadd.f32 0.0, %v4121
        %v4123 = vpop.f32.mrb[0].mxu0
        %v4124 = vpop.f32.mrb[0].mxu0
        %v4125 = vadd.f32 0.0, %v4124
        %v4126 = vpop.f32.mrb[0].mxu0
        %4127 = vmatprep.mubr.bf16.mxu0 0
        %4128 = vmatmul.mubr.bf16.gmra.mrb[0].mxu0 %v4028
        %v4129 = vpop.f32.mrb[0].mxu0
        %v4130 = vadd.f32 0.0, %v4129
        %v4131 = vpop.f32.mrb[0].mxu0
        %v4132 = vpop.f32.mrb[0].mxu0
        %v4133 = vadd.f32 0.0, %v4132
        %v4134 = vpop.f32.mrb[0].mxu0
        %4135 = vmatprep.mubr.bf16.mxu0 0
        %4136 = vmatmul.mubr.bf16.gmra.mrb[0].mxu0 %v4031
        %v4137 = vpop.f32.mrb[0].mxu0
        %v4138 = vadd.f32 0.0, %v4137
        %v4139 = vpop.f32.mrb[0].mxu0
        %v4140 = vpop.f32.mrb[0].mxu0
        %v4141 = vadd.f32 0.0, %v4140
        %v4142 = vpop.f32.mrb[0].mxu0
        %4143 = vmatprep.mubr.bf16.mxu0 0
        %4144 = vmatmul.mubr.bf16.gmra.mrb[0].mxu0 %v4034
        %v4145 = vpop.f32.mrb[0].mxu0
        %v4146 = vadd.f32 0.0, %v4145
        %v4147 = vpop.f32.mrb[0].mxu0
        %v4148 = vpop.f32.mrb[0].mxu0
        %v4149 = vadd.f32 0.0, %v4148
        %v4150 = vpop.f32.mrb[0].mxu0
        %4151 = vmatprep.mubr.bf16.mxu0 0
        %4152 = vmatmul.mubr.bf16.gmra.mrb[0].mxu0 %v4037
        %v4153 = vpop.f32.mrb[0].mxu0
        %v4154 = vadd.f32 0.0, %v4153
        %v4155 = vpop.f32.mrb[0].mxu0
        %v4156 = vpop.f32.mrb[0].mxu0
        %v4157 = vadd.f32 0.0, %v4156
        %v4158 = vpop.f32.mrb[0].mxu0
        %4159 = vdwg.mxu0
        %4160 = vmax.xlane.f32.xlu0 %v4098
        %v4161 = vpop.xlane.xlu0 %4160
        %4162 = vmax.xlane.f32.xlu0 %v4101
        %v4163 = vpop.xlane.xlu0 %4162
        %4164 = vmax.xlane.f32.xlu0 %v4106
        %v4165 = vpop.xlane.xlu0 %4164
        %4166 = vmax.xlane.f32.xlu0 %v4109
        %v4167 = vpop.xlane.xlu0 %4166
        %4168 = vmax.xlane.f32.xlu0 %v4114
        %v4169 = vpop.xlane.xlu0 %4168
        %4170 = vmax.xlane.f32.xlu0 %v4117
        %v4171 = vpop.xlane.xlu0 %4170
        %4172 = vmax.xlane.f32.xlu0 %v4122
        %v4173 = vpop.xlane.xlu0 %4172
        %4174 = vmax.xlane.f32.xlu0 %v4125
        %v4175 = vpop.xlane.xlu0 %4174
        %4176 = vmax.xlane.f32.xlu0 %v4130
        %v4177 = vpop.xlane.xlu0 %4176
        %4178 = vmax.xlane.f32.xlu0 %v4133
        %v4179 = vpop.xlane.xlu0 %4178
        %4180 = vmax.xlane.f32.xlu0 %v4138
        %v4181 = vpop.xlane.xlu0 %4180
        %4182 = vmax.xlane.f32.xlu0 %v4141
        %v4183 = vpop.xlane.xlu0 %4182
        %4184 = vmax.xlane.f32.xlu0 %v4146
        %v4185 = vpop.xlane.xlu0 %4184
        %4186 = vmax.xlane.f32.xlu0 %v4149
        %v4187 = vpop.xlane.xlu0 %4186
        %4188 = vmax.xlane.f32.xlu0 %v4154
        %v4189 = vpop.xlane.xlu0 %4188
        %4190 = vmax.xlane.f32.xlu0 %v4157
        %v4191 = vpop.xlane.xlu0 %4190
        %v4192 = vsub.f32 %v4098, %v4161
        %v4193 = vsub.f32 %v4101, %v4163
        %v4194 = vsub.f32 %v4106, %v4165
        %v4195 = vsub.f32 %v4109, %v4167
        %v4196 = vsub.f32 %v4114, %v4169
        %v4197 = vsub.f32 %v4117, %v4171
        %v4198 = vsub.f32 %v4122, %v4173
        %v4199 = vsub.f32 %v4125, %v4175
        %v4200 = vsub.f32 %v4130, %v4177
        %v4201 = vsub.f32 %v4133, %v4179
        %v4202 = vsub.f32 %v4138, %v4181
        %v4203 = vsub.f32 %v4141, %v4183
        %v4204 = vsub.f32 %v4146, %v4185
        %v4205 = vsub.f32 %v4149, %v4187
        %v4206 = vsub.f32 %v4154, %v4189
        %v4207 = vsub.f32 %v4157, %v4191
        %v4208 = vmul.f32 %v4192, 1.442695
        %v4209 = vpow.pop %v4208
        %v4210 = vmul.f32 %v4193, 1.442695
        %v4211 = vpow.pop %v4210
        %v4212 = vmul.f32 %v4194, 1.442695
        %v4213 = vpow.pop %v4212
        %v4214 = vmul.f32 %v4195, 1.442695
        %v4215 = vpow.pop %v4214
        %v4216 = vmul.f32 %v4196, 1.442695
        %v4217 = vpow.pop %v4216
        %v4218 = vmul.f32 %v4197, 1.442695
        %v4219 = vpow.pop %v4218
        %v4220 = vmul.f32 %v4198, 1.442695
        %v4221 = vpow.pop %v4220
        %v4222 = vmul.f32 %v4199, 1.442695
        %v4223 = vpow.pop %v4222
        %v4224 = vmul.f32 %v4200, 1.442695
        %v4225 = vpow.pop %v4224
        %v4226 = vmul.f32 %v4201, 1.442695
        %v4227 = vpow.pop %v4226
        %v4228 = vmul.f32 %v4202, 1.442695
        %v4229 = vpow.pop %v4228
        %v4230 = vmul.f32 %v4203, 1.442695
        %v4231 = vpow.pop %v4230
        %v4232 = vmul.f32 %v4204, 1.442695
        %v4233 = vpow.pop %v4232
        %v4234 = vmul.f32 %v4205, 1.442695
        %v4235 = vpow.pop %v4234
        %v4236 = vmul.f32 %v4206, 1.442695
        %v4237 = vpow.pop %v4236
        %v4238 = vmul.f32 %v4207, 1.442695
        %v4239 = vpow.pop %v4238
        %4240 = vadd.xlane.f32.xlu0 %v4209
        %v4241 = vpop.xlane.xlu0 %4240
        %4242 = vadd.xlane.f32.xlu0 %v4211
        %v4243 = vpop.xlane.xlu0 %4242
        %4244 = vadd.xlane.f32.xlu0 %v4213
        %v4245 = vpop.xlane.xlu0 %4244
        %4246 = vadd.xlane.f32.xlu0 %v4215
        %v4247 = vpop.xlane.xlu0 %4246
        %4248 = vadd.xlane.f32.xlu0 %v4217
        %v4249 = vpop.xlane.xlu0 %4248
        %4250 = vadd.xlane.f32.xlu0 %v4219
        %v4251 = vpop.xlane.xlu0 %4250
        %4252 = vadd.xlane.f32.xlu0 %v4221
        %v4253 = vpop.xlane.xlu0 %4252
        %4254 = vadd.xlane.f32.xlu0 %v4223
        %v4255 = vpop.xlane.xlu0 %4254
        %4256 = vadd.xlane.f32.xlu0 %v4225
        %v4257 = vpop.xlane.xlu0 %4256
        %4258 = vadd.xlane.f32.xlu0 %v4227
        %v4259 = vpop.xlane.xlu0 %4258
        %4260 = vadd.xlane.f32.xlu0 %v4229
        %v4261 = vpop.xlane.xlu0 %4260
        %4262 = vadd.xlane.f32.xlu0 %v4231
        %v4263 = vpop.xlane.xlu0 %4262
        %4264 = vadd.xlane.f32.xlu0 %v4233
        %v4265 = vpop.xlane.xlu0 %4264
        %4266 = vadd.xlane.f32.xlu0 %v4235
        %v4267 = vpop.xlane.xlu0 %4266
        %4268 = vadd.xlane.f32.xlu0 %v4237
        %v4269 = vpop.xlane.xlu0 %4268
        %4270 = vadd.xlane.f32.xlu0 %v4239
        %v4271 = vpop.xlane.xlu0 %4270
        %v4272 = vrcp.pop %v4241
        %v4273 = vrcp.pop %v4243
        %v4274 = vrcp.pop %v4245
        %v4275 = vrcp.pop %v4247
        %v4276 = vrcp.pop %v4249
        %v4277 = vrcp.pop %v4251
        %v4278 = vrcp.pop %v4253
        %v4279 = vrcp.pop %v4255
        %v4280 = vrcp.pop %v4257
        %v4281 = vrcp.pop %v4259
        %v4282 = vrcp.pop %v4261
        %v4283 = vrcp.pop %v4263
        %v4284 = vrcp.pop %v4265
        %v4285 = vrcp.pop %v4267
        %v4286 = vrcp.pop %v4269
        %v4287 = vrcp.pop %v4271
        %v4288 = vmul.f32 %v4209, %v4272
        %v4289 = vmul.f32 %v4211, %v4273
        %v4290 = vmul.f32 %v4213, %v4274
        %v4291 = vmul.f32 %v4215, %v4275
        %v4292 = vmul.f32 %v4217, %v4276
        %v4293 = vmul.f32 %v4219, %v4277
        %v4294 = vmul.f32 %v4221, %v4278
        %v4295 = vmul.f32 %v4223, %v4279
        %v4296 = vmul.f32 %v4225, %v4280
        %v4297 = vmul.f32 %v4227, %v4281
        %v4298 = vmul.f32 %v4229, %v4282
        %v4299 = vmul.f32 %v4231, %v4283
        %v4300 = vmul.f32 %v4233, %v4284
        %v4301 = vmul.f32 %v4235, %v4285
        %v4302 = vmul.f32 %v4237, %v4286
        %v4303 = vmul.f32 %v4239, %v4287
        %v4304 = vpack.c.bf16 %v4289, %v4288
        %v4305 = vpack.c.bf16 %v4291, %v4290
        %v4306 = vpack.c.bf16 %v4293, %v4292
        %v4307 = vpack.c.bf16 %v4295, %v4294
        %v4308 = vpack.c.bf16 %v4297, %v4296
        %v4309 = vpack.c.bf16 %v4299, %v4298
        %v4310 = vpack.c.bf16 %v4301, %v4300
        %v4311 = vpack.c.bf16 %v4303, %v4302
        %4320 = vrot.lane.b32.xlu0 %v3565, 64
        %v4321 = vpop.permute.xlu0 %4320
        %4322 = vrot.lane.b32.xlu0 %v3566, 64
        %v4323 = vpop.permute.xlu0 %4322
        %4324 = vrot.lane.b32.xlu0 %v3567, 64
        %v4325 = vpop.permute.xlu0 %4324
        %4326 = vrot.lane.b32.xlu0 %v3568, 64
        %v4327 = vpop.permute.xlu0 %4326
        %4328 = vrot.lane.b32.xlu0 %v3569, 64
        %v4329 = vpop.permute.xlu0 %4328
        %4330 = vrot.lane.b32.xlu0 %v3570, 64
        %v4331 = vpop.permute.xlu0 %4330
        %4332 = vrot.lane.b32.xlu0 %v3571, 64
        %v4333 = vpop.permute.xlu0 %4332
        %4334 = vrot.lane.b32.xlu0 %v3572, 64
        %v4335 = vpop.permute.xlu0 %4334
        %4344 = vmatprep.subr.bf16.mxu0 0
        %4345 = vmatpush1.bf16.msra.mxu0 %v4321
        %4346 = vmatprep.subr.bf16.mxu0 0
        %4347 = vmatpush1.bf16.msra.mxu0 %v4323
        %4348 = vmatprep.subr.bf16.mxu0 0
        %4349 = vmatpush1.bf16.msra.mxu0 %v4325
        %4350 = vmatprep.subr.bf16.mxu0 0
        %4351 = vmatpush1.bf16.msra.mxu0 %v4327
        %4352 = vmatprep.subr.bf16.mxu0 0
        %4353 = vmatpush1.bf16.msra.mxu0 %v4329
        %4354 = vmatprep.subr.bf16.mxu0 0
        %4355 = vmatpush1.bf16.msra.mxu0 %v4331
        %4356 = vmatprep.subr.bf16.mxu0 0
        %4357 = vmatpush1.bf16.msra.mxu0 %v4333
        %4358 = vmatprep.subr.bf16.mxu0 0
        %4359 = vmatpush1.bf16.msra.mxu0 %v4335
        %4360 = vmatprep.subr.bf16.mxu0 0
        %4361 = vmatpush1.bf16.msra.mxu0 0
        %4362 = vmatprep.subr.bf16.mxu0 0
        %4363 = vmatpush1.bf16.msra.mxu0 0
        %4364 = vmatprep.subr.bf16.mxu0 0
        %4365 = vmatpush1.bf16.msra.mxu0 0
        %4366 = vmatprep.subr.bf16.mxu0 0
        %4367 = vmatpush1.bf16.msra.mxu0 0
        %4368 = vmatprep.subr.bf16.mxu0 0
        %4369 = vmatpush1.bf16.msra.mxu0 0
        %4370 = vmatprep.subr.bf16.mxu0 0
        %4371 = vmatpush1.bf16.msra.mxu0 0
        %4372 = vmatprep.subr.bf16.mxu0 0
        %4373 = vmatpush1.bf16.msra.mxu0 0
        %4374 = vmatprep.subr.bf16.mxu0 0
        %4375 = vmatpush1.bf16.msra.mxu0 0
        %4376 = vmatprep.mubr.bf16.mxu0 0
        %4377 = vmatmul.mubr.bf16.gmra.mrb[0].mxu0 %v4304
        %v4378 = vpop.f32.mrb[0].mxu0
        %v4379 = vadd.f32 0.0, %v4378
        %v4380 = vpop.f32.mrb[0].mxu0
        %v4381 = vpop.f32.mrb[0].mxu0
        %v4382 = vadd.f32 0.0, %v4381
        %v4383 = vpop.f32.mrb[0].mxu0
        %4384 = vmatprep.mubr.bf16.mxu0 0
        %4385 = vmatmul.mubr.bf16.gmra.mrb[0].mxu0 %v4305
        %v4386 = vpop.f32.mrb[0].mxu0
        %v4387 = vadd.f32 0.0, %v4386
        %v4388 = vpop.f32.mrb[0].mxu0
        %v4389 = vpop.f32.mrb[0].mxu0
        %v4390 = vadd.f32 0.0, %v4389
        %v4391 = vpop.f32.mrb[0].mxu0
        %4392 = vmatprep.mubr.bf16.mxu0 0
        %4393 = vmatmul.mubr.bf16.gmra.mrb[0].mxu0 %v4306
        %v4394 = vpop.f32.mrb[0].mxu0
        %v4395 = vadd.f32 0.0, %v4394
        %v4396 = vpop.f32.mrb[0].mxu0
        %v4397 = vpop.f32.mrb[0].mxu0
        %v4398 = vadd.f32 0.0, %v4397
        %v4399 = vpop.f32.mrb[0].mxu0
        %4400 = vmatprep.mubr.bf16.mxu0 0
        %4401 = vmatmul.mubr.bf16.gmra.mrb[0].mxu0 %v4307
        %v4402 = vpop.f32.mrb[0].mxu0
        %v4403 = vadd.f32 0.0, %v4402
        %v4404 = vpop.f32.mrb[0].mxu0
        %v4405 = vpop.f32.mrb[0].mxu0
        %v4406 = vadd.f32 0.0, %v4405
        %v4407 = vpop.f32.mrb[0].mxu0
        %4408 = vmatprep.mubr.bf16.mxu0 0
        %4409 = vmatmul.mubr.bf16.gmra.mrb[0].mxu0 %v4308
        %v4410 = vpop.f32.mrb[0].mxu0
        %v4411 = vadd.f32 0.0, %v4410
        %v4412 = vpop.f32.mrb[0].mxu0
        %v4413 = vpop.f32.mrb[0].mxu0
        %v4414 = vadd.f32 0.0, %v4413
        %v4415 = vpop.f32.mrb[0].mxu0
        %4416 = vmatprep.mubr.bf16.mxu0 0
        %4417 = vmatmul.mubr.bf16.gmra.mrb[0].mxu0 %v4309
        %v4418 = vpop.f32.mrb[0].mxu0
        %v4419 = vadd.f32 0.0, %v4418
        %v4420 = vpop.f32.mrb[0].mxu0
        %v4421 = vpop.f32.mrb[0].mxu0
        %v4422 = vadd.f32 0.0, %v4421
        %v4423 = vpop.f32.mrb[0].mxu0
        %4424 = vmatprep.mubr.bf16.mxu0 0
        %4425 = vmatmul.mubr.bf16.gmra.mrb[0].mxu0 %v4310
        %v4426 = vpop.f32.mrb[0].mxu0
        %v4427 = vadd.f32 0.0, %v4426
        %v4428 = vpop.f32.mrb[0].mxu0
        %v4429 = vpop.f32.mrb[0].mxu0
        %v4430 = vadd.f32 0.0, %v4429
        %v4431 = vpop.f32.mrb[0].mxu0
        %4432 = vmatprep.mubr.bf16.mxu0 0
        %4433 = vmatmul.mubr.bf16.gmra.mrb[0].mxu0 %v4311
        %v4434 = vpop.f32.mrb[0].mxu0
        %v4435 = vadd.f32 0.0, %v4434
        %v4436 = vpop.f32.mrb[0].mxu0
        %v4437 = vpop.f32.mrb[0].mxu0
        %v4438 = vadd.f32 0.0, %v4437
        %v4439 = vpop.f32.mrb[0].mxu0
        %4440 = vdwg.mxu0
        %4457 = vrot.lane.b32.xlu0 %v4379, 64
        %v4458 = vpop.permute.xlu0 %4457
        %4459 = vrot.lane.b32.xlu0 %v4382, 64
        %v4460 = vpop.permute.xlu0 %4459
        %4461 = vrot.lane.b32.xlu0 %v4387, 64
        %v4462 = vpop.permute.xlu0 %4461
        %4463 = vrot.lane.b32.xlu0 %v4390, 64
        %v4464 = vpop.permute.xlu0 %4463
        %4465 = vrot.lane.b32.xlu0 %v4395, 64
        %v4466 = vpop.permute.xlu0 %4465
        %4467 = vrot.lane.b32.xlu0 %v4398, 64
        %v4468 = vpop.permute.xlu0 %4467
        %4469 = vrot.lane.b32.xlu0 %v4403, 64
        %v4470 = vpop.permute.xlu0 %4469
        %4471 = vrot.lane.b32.xlu0 %v4406, 64
        %v4472 = vpop.permute.xlu0 %4471
        %4473 = vrot.lane.b32.xlu0 %v4411, 64
        %v4474 = vpop.permute.xlu0 %4473
        %4475 = vrot.lane.b32.xlu0 %v4414, 64
        %v4476 = vpop.permute.xlu0 %4475
        %4477 = vrot.lane.b32.xlu0 %v4419, 64
        %v4478 = vpop.permute.xlu0 %4477
        %4479 = vrot.lane.b32.xlu0 %v4422, 64
        %v4480 = vpop.permute.xlu0 %4479
        %4481 = vrot.lane.b32.xlu0 %v4427, 64
        %v4482 = vpop.permute.xlu0 %4481
        %4483 = vrot.lane.b32.xlu0 %v4430, 64
        %v4484 = vpop.permute.xlu0 %4483
        %4485 = vrot.lane.b32.xlu0 %v4435, 64
        %v4486 = vpop.permute.xlu0 %4485
        %4487 = vrot.lane.b32.xlu0 %v4438, 64
        %v4488 = vpop.permute.xlu0 %4487
        %v4505 = vsel %vm1564, %v3905, %v4458
        %v4506 = vsel %vm1564, %v3908, %v4460
        %v4507 = vsel %vm1564, %v3913, %v4462
        %v4508 = vsel %vm1564, %v3916, %v4464
        %v4509 = vsel %vm1564, %v3921, %v4466
        %v4510 = vsel %vm1564, %v3924, %v4468
        %v4511 = vsel %vm1564, %v3929, %v4470
        %v4512 = vsel %vm1564, %v3932, %v4472
        %v4513 = vsel %vm1564, %v3937, %v4474
        %v4514 = vsel %vm1564, %v3940, %v4476
        %v4515 = vsel %vm1564, %v3945, %v4478
        %v4516 = vsel %vm1564, %v3948, %v4480
        %v4517 = vsel %vm1564, %v3953, %v4482
        %v4518 = vsel %vm1564, %v3956, %v4484
        %v4519 = vsel %vm1564, %v3961, %v4486
        %v4520 = vsel %vm1564, %v3964, %v4488
        %v4521 = vpack.c.bf16 %v4506, %v4505
        %v4522 = vpack.c.bf16 %v4508, %v4507
        %v4523 = vpack.c.bf16 %v4510, %v4509
        %v4524 = vpack.c.bf16 %v4512, %v4511
        %v4525 = vpack.c.bf16 %v4514, %v4513
        %v4526 = vpack.c.bf16 %v4516, %v4515
        %v4527 = vpack.c.bf16 %v4518, %v4517
        %v4528 = vpack.c.bf16 %v4520, %v4519
        %4529 = vst [vmem:[#allocation2 + $0x10] sm:$0xff] %v4521
        %4530 = vst [vmem:[#allocation2 + $0x30] sm:$0xff] %v4522
        %4531 = vst [vmem:[#allocation2 + $0x50] sm:$0xff] %v4523
        %4532 = vst [vmem:[#allocation2 + $0x70] sm:$0xff] %v4524
        %4533 = vst [vmem:[#allocation2 + $0x90] sm:$0xff] %v4525
        %4534 = vst [vmem:[#allocation2 + $0xb0] sm:$0xff] %v4526
        %4535 = vst [vmem:[#allocation2 + $0xd0] sm:$0xff] %v4527
        %4536 = vst [vmem:[#allocation2 + $0xf0] sm:$0xff] %v4528
        %v4537 = vmul.f32 %v996, 0.088388346
        %v4538 = vmul.f32 %v1000, 0.088388346
        %v4539 = vmul.f32 %v1006, 0.088388346
        %v4540 = vmul.f32 %v1010, 0.088388346
        %v4541 = vmul.f32 %v1016, 0.088388346
        %v4542 = vmul.f32 %v1020, 0.088388346
        %v4543 = vmul.f32 %v1026, 0.088388346
        %v4544 = vmul.f32 %v1030, 0.088388346
        %v4545 = vmul.f32 %v1036, 0.088388346
        %v4546 = vmul.f32 %v1040, 0.088388346
        %v4547 = vmul.f32 %v1046, 0.088388346
        %v4548 = vmul.f32 %v1050, 0.088388346
        %v4549 = vmul.f32 %v1056, 0.088388346
        %v4550 = vmul.f32 %v1060, 0.088388346
        %v4551 = vmul.f32 %v1066, 0.088388346
        %v4552 = vmul.f32 %v1070, 0.088388346
        %v4553 = vpack.c.bf16 %v4538, %v4537
        %v4554 = vpack.c.bf16 %v4540, %v4539
        %v4555 = vpack.c.bf16 %v4542, %v4541
        %v4556 = vpack.c.bf16 %v4544, %v4543
        %v4557 = vpack.c.bf16 %v4546, %v4545
        %v4558 = vpack.c.bf16 %v4548, %v4547
        %v4559 = vpack.c.bf16 %v4550, %v4549
        %v4560 = vpack.c.bf16 %v4552, %v4551
        %v4561 = vpack.c.bf16 %v1226, %v1222
        %v4562 = vpack.c.bf16 %v1236, %v1232
        %v4563 = vpack.c.bf16 %v1246, %v1242
        %v4564 = vpack.c.bf16 %v1256, %v1252
        %v4565 = vpack.c.bf16 %v1266, %v1262
        %v4566 = vpack.c.bf16 %v1276, %v1272
        %v4567 = vpack.c.bf16 %v1286, %v1282
        %v4568 = vpack.c.bf16 %v1296, %v1292
        %v4569 = vpack.c.bf16 %v1452, %v1448
        %v4570 = vpack.c.bf16 %v1462, %v1458
        %v4571 = vpack.c.bf16 %v1472, %v1468
        %v4572 = vpack.c.bf16 %v1482, %v1478
        %v4573 = vpack.c.bf16 %v1492, %v1488
        %v4574 = vpack.c.bf16 %v1502, %v1498
        %v4575 = vpack.c.bf16 %v1512, %v1508
        %v4576 = vpack.c.bf16 %v1522, %v1518
        %v4578 = vsel %vm1564, %v4553, 0
        %v4581 = vsel %vm1564, %v4554, 0
        %v4584 = vsel %vm1564, %v4555, 0
        %v4587 = vsel %vm1564, %v4556, 0
        %v4590 = vsel %vm1564, %v4557, 0
        %v4593 = vsel %vm1564, %v4558, 0
        %v4596 = vsel %vm1564, %v4559, 0
        %v4599 = vsel %vm1564, %v4560, 0
        %v4602 = vsel %vm1564, %v4561, 0
        %v4605 = vsel %vm1564, %v4562, 0
        %v4608 = vsel %vm1564, %v4563, 0
        %v4611 = vsel %vm1564, %v4564, 0
        %v4614 = vsel %vm1564, %v4565, 0
        %v4617 = vsel %vm1564, %v4566, 0
        %v4620 = vsel %vm1564, %v4567, 0
        %v4623 = vsel %vm1564, %v4568, 0
        %4625 = vmatprep.subr.bf16.mxu0 0
        %4626 = vmatpush1.bf16.xpose.msra.mxu0 %v4602
        %4627 = vmatprep.subr.bf16.mxu0 0
        %4628 = vmatpush1.bf16.xpose.msra.mxu0 %v4605
        %4629 = vmatprep.subr.bf16.mxu0 0
        %4630 = vmatpush1.bf16.xpose.msra.mxu0 %v4608
        %4631 = vmatprep.subr.bf16.mxu0 0
        %4632 = vmatpush1.bf16.xpose.msra.mxu0 %v4611
        %4633 = vmatprep.subr.bf16.mxu0 0
        %4634 = vmatpush1.bf16.xpose.msra.mxu0 %v4614
        %4635 = vmatprep.subr.bf16.mxu0 0
        %4636 = vmatpush1.bf16.xpose.msra.mxu0 %v4617
        %4637 = vmatprep.subr.bf16.mxu0 0
        %4638 = vmatpush1.bf16.xpose.msra.mxu0 %v4620
        %4639 = vmatprep.subr.bf16.mxu0 0
        %4640 = vmatpush1.bf16.xpose.msra.mxu0 %v4623
        %4641 = vmatprep.subr.bf16.mxu0 0
        %4642 = vmatpush1.bf16.xpose.msra.mxu0 0
        %4643 = vmatprep.subr.bf16.mxu0 0
        %4644 = vmatpush1.bf16.xpose.msra.mxu0 0
        %4645 = vmatprep.subr.bf16.mxu0 0
        %4646 = vmatpush1.bf16.xpose.msra.mxu0 0
        %4647 = vmatprep.subr.bf16.mxu0 0
        %4648 = vmatpush1.bf16.xpose.msra.mxu0 0
        %4649 = vmatprep.subr.bf16.mxu0 0
        %4650 = vmatpush1.bf16.xpose.msra.mxu0 0
        %4651 = vmatprep.subr.bf16.mxu0 0
        %4652 = vmatpush1.bf16.xpose.msra.mxu0 0
        %4653 = vmatprep.subr.bf16.mxu0 0
        %4654 = vmatpush1.bf16.xpose.msra.mxu0 0
        %4655 = vmatprep.subr.bf16.mxu0 0
        %4656 = vmatpush1.bf16.xpose.msra.mxu0 0
        %4657 = vmatprep.mubr.bf16.mxu0 0
        %4658 = vmatmul.mubr.bf16.gmra.mrb[0].mxu0 %v4578
        %v4659 = vpop.f32.mrb[0].mxu0
        %v4660 = vadd.f32 0.0, %v4659
        %v4661 = vpop.f32.mrb[0].mxu0
        %v4662 = vpop.f32.mrb[0].mxu0
        %v4663 = vadd.f32 0.0, %v4662
        %v4664 = vpop.f32.mrb[0].mxu0
        %4665 = vmatprep.mubr.bf16.mxu0 0
        %4666 = vmatmul.mubr.bf16.gmra.mrb[0].mxu0 %v4581
        %v4667 = vpop.f32.mrb[0].mxu0
        %v4668 = vadd.f32 0.0, %v4667
        %v4669 = vpop.f32.mrb[0].mxu0
        %v4670 = vpop.f32.mrb[0].mxu0
        %v4671 = vadd.f32 0.0, %v4670
        %v4672 = vpop.f32.mrb[0].mxu0
        %4673 = vmatprep.mubr.bf16.mxu0 0
        %4674 = vmatmul.mubr.bf16.gmra.mrb[0].mxu0 %v4584
        %v4675 = vpop.f32.mrb[0].mxu0
        %v4676 = vadd.f32 0.0, %v4675
        %v4677 = vpop.f32.mrb[0].mxu0
        %v4678 = vpop.f32.mrb[0].mxu0
        %v4679 = vadd.f32 0.0, %v4678
        %v4680 = vpop.f32.mrb[0].mxu0
        %4681 = vmatprep.mubr.bf16.mxu0 0
        %4682 = vmatmul.mubr.bf16.gmra.mrb[0].mxu0 %v4587
        %v4683 = vpop.f32.mrb[0].mxu0
        %v4684 = vadd.f32 0.0, %v4683
        %v4685 = vpop.f32.mrb[0].mxu0
        %v4686 = vpop.f32.mrb[0].mxu0
        %v4687 = vadd.f32 0.0, %v4686
        %v4688 = vpop.f32.mrb[0].mxu0
        %4689 = vmatprep.mubr.bf16.mxu0 0
        %4690 = vmatmul.mubr.bf16.gmra.mrb[0].mxu0 %v4590
        %v4691 = vpop.f32.mrb[0].mxu0
        %v4692 = vadd.f32 0.0, %v4691
        %v4693 = vpop.f32.mrb[0].mxu0
        %v4694 = vpop.f32.mrb[0].mxu0
        %v4695 = vadd.f32 0.0, %v4694
        %v4696 = vpop.f32.mrb[0].mxu0
        %4697 = vmatprep.mubr.bf16.mxu0 0
        %4698 = vmatmul.mubr.bf16.gmra.mrb[0].mxu0 %v4593
        %v4699 = vpop.f32.mrb[0].mxu0
        %v4700 = vadd.f32 0.0, %v4699
        %v4701 = vpop.f32.mrb[0].mxu0
        %v4702 = vpop.f32.mrb[0].mxu0
        %v4703 = vadd.f32 0.0, %v4702
        %v4704 = vpop.f32.mrb[0].mxu0
        %4705 = vmatprep.mubr.bf16.mxu0 0
        %4706 = vmatmul.mubr.bf16.gmra.mrb[0].mxu0 %v4596
        %v4707 = vpop.f32.mrb[0].mxu0
        %v4708 = vadd.f32 0.0, %v4707
        %v4709 = vpop.f32.mrb[0].mxu0
        %v4710 = vpop.f32.mrb[0].mxu0
        %v4711 = vadd.f32 0.0, %v4710
        %v4712 = vpop.f32.mrb[0].mxu0
        %4713 = vmatprep.mubr.bf16.mxu0 0
        %4714 = vmatmul.mubr.bf16.gmra.mrb[0].mxu0 %v4599
        %v4715 = vpop.f32.mrb[0].mxu0
        %v4716 = vadd.f32 0.0, %v4715
        %v4717 = vpop.f32.mrb[0].mxu0
        %v4718 = vpop.f32.mrb[0].mxu0
        %v4719 = vadd.f32 0.0, %v4718
        %v4720 = vpop.f32.mrb[0].mxu0
        %4721 = vdwg.mxu0
        %4722 = vmax.xlane.f32.xlu0 %v4660
        %v4723 = vpop.xlane.xlu0 %4722
        %4724 = vmax.xlane.f32.xlu0 %v4663
        %v4725 = vpop.xlane.xlu0 %4724
        %4726 = vmax.xlane.f32.xlu0 %v4668
        %v4727 = vpop.xlane.xlu0 %4726
        %4728 = vmax.xlane.f32.xlu0 %v4671
        %v4729 = vpop.xlane.xlu0 %4728
        %4730 = vmax.xlane.f32.xlu0 %v4676
        %v4731 = vpop.xlane.xlu0 %4730
        %4732 = vmax.xlane.f32.xlu0 %v4679
        %v4733 = vpop.xlane.xlu0 %4732
        %4734 = vmax.xlane.f32.xlu0 %v4684
        %v4735 = vpop.xlane.xlu0 %4734
        %4736 = vmax.xlane.f32.xlu0 %v4687
        %v4737 = vpop.xlane.xlu0 %4736
        %4738 = vmax.xlane.f32.xlu0 %v4692
        %v4739 = vpop.xlane.xlu0 %4738
        %4740 = vmax.xlane.f32.xlu0 %v4695
        %v4741 = vpop.xlane.xlu0 %4740
        %4742 = vmax.xlane.f32.xlu0 %v4700
        %v4743 = vpop.xlane.xlu0 %4742
        %4744 = vmax.xlane.f32.xlu0 %v4703
        %v4745 = vpop.xlane.xlu0 %4744
        %4746 = vmax.xlane.f32.xlu0 %v4708
        %v4747 = vpop.xlane.xlu0 %4746
        %4748 = vmax.xlane.f32.xlu0 %v4711
        %v4749 = vpop.xlane.xlu0 %4748
        %4750 = vmax.xlane.f32.xlu0 %v4716
        %v4751 = vpop.xlane.xlu0 %4750
        %4752 = vmax.xlane.f32.xlu0 %v4719
        %v4753 = vpop.xlane.xlu0 %4752
        %v4754 = vsub.f32 %v4660, %v4723
        %v4755 = vsub.f32 %v4663, %v4725
        %v4756 = vsub.f32 %v4668, %v4727
        %v4757 = vsub.f32 %v4671, %v4729
        %v4758 = vsub.f32 %v4676, %v4731
        %v4759 = vsub.f32 %v4679, %v4733
        %v4760 = vsub.f32 %v4684, %v4735
        %v4761 = vsub.f32 %v4687, %v4737
        %v4762 = vsub.f32 %v4692, %v4739
        %v4763 = vsub.f32 %v4695, %v4741
        %v4764 = vsub.f32 %v4700, %v4743
        %v4765 = vsub.f32 %v4703, %v4745
        %v4766 = vsub.f32 %v4708, %v4747
        %v4767 = vsub.f32 %v4711, %v4749
        %v4768 = vsub.f32 %v4716, %v4751
        %v4769 = vsub.f32 %v4719, %v4753
        %v4770 = vmul.f32 %v4754, 1.442695
        %v4771 = vpow.pop %v4770
        %v4772 = vmul.f32 %v4755, 1.442695
        %v4773 = vpow.pop %v4772
        %v4774 = vmul.f32 %v4756, 1.442695
        %v4775 = vpow.pop %v4774
        %v4776 = vmul.f32 %v4757, 1.442695
        %v4777 = vpow.pop %v4776
        %v4778 = vmul.f32 %v4758, 1.442695
        %v4779 = vpow.pop %v4778
        %v4780 = vmul.f32 %v4759, 1.442695
        %v4781 = vpow.pop %v4780
        %v4782 = vmul.f32 %v4760, 1.442695
        %v4783 = vpow.pop %v4782
        %v4784 = vmul.f32 %v4761, 1.442695
        %v4785 = vpow.pop %v4784
        %v4786 = vmul.f32 %v4762, 1.442695
        %v4787 = vpow.pop %v4786
        %v4788 = vmul.f32 %v4763, 1.442695
        %v4789 = vpow.pop %v4788
        %v4790 = vmul.f32 %v4764, 1.442695
        %v4791 = vpow.pop %v4790
        %v4792 = vmul.f32 %v4765, 1.442695
        %v4793 = vpow.pop %v4792
        %v4794 = vmul.f32 %v4766, 1.442695
        %v4795 = vpow.pop %v4794
        %v4796 = vmul.f32 %v4767, 1.442695
        %v4797 = vpow.pop %v4796
        %v4798 = vmul.f32 %v4768, 1.442695
        %v4799 = vpow.pop %v4798
        %v4800 = vmul.f32 %v4769, 1.442695
        %v4801 = vpow.pop %v4800
        %4802 = vadd.xlane.f32.xlu0 %v4771
        %v4803 = vpop.xlane.xlu0 %4802
        %4804 = vadd.xlane.f32.xlu0 %v4773
        %v4805 = vpop.xlane.xlu0 %4804
        %4806 = vadd.xlane.f32.xlu0 %v4775
        %v4807 = vpop.xlane.xlu0 %4806
        %4808 = vadd.xlane.f32.xlu0 %v4777
        %v4809 = vpop.xlane.xlu0 %4808
        %4810 = vadd.xlane.f32.xlu0 %v4779
        %v4811 = vpop.xlane.xlu0 %4810
        %4812 = vadd.xlane.f32.xlu0 %v4781
        %v4813 = vpop.xlane.xlu0 %4812
        %4814 = vadd.xlane.f32.xlu0 %v4783
        %v4815 = vpop.xlane.xlu0 %4814
        %4816 = vadd.xlane.f32.xlu0 %v4785
        %v4817 = vpop.xlane.xlu0 %4816
        %4818 = vadd.xlane.f32.xlu0 %v4787
        %v4819 = vpop.xlane.xlu0 %4818
        %4820 = vadd.xlane.f32.xlu0 %v4789
        %v4821 = vpop.xlane.xlu0 %4820
        %4822 = vadd.xlane.f32.xlu0 %v4791
        %v4823 = vpop.xlane.xlu0 %4822
        %4824 = vadd.xlane.f32.xlu0 %v4793
        %v4825 = vpop.xlane.xlu0 %4824
        %4826 = vadd.xlane.f32.xlu0 %v4795
        %v4827 = vpop.xlane.xlu0 %4826
        %4828 = vadd.xlane.f32.xlu0 %v4797
        %v4829 = vpop.xlane.xlu0 %4828
        %4830 = vadd.xlane.f32.xlu0 %v4799
        %v4831 = vpop.xlane.xlu0 %4830
        %4832 = vadd.xlane.f32.xlu0 %v4801
        %v4833 = vpop.xlane.xlu0 %4832
        %v4834 = vrcp.pop %v4803
        %v4835 = vrcp.pop %v4805
        %v4836 = vrcp.pop %v4807
        %v4837 = vrcp.pop %v4809
        %v4838 = vrcp.pop %v4811
        %v4839 = vrcp.pop %v4813
        %v4840 = vrcp.pop %v4815
        %v4841 = vrcp.pop %v4817
        %v4842 = vrcp.pop %v4819
        %v4843 = vrcp.pop %v4821
        %v4844 = vrcp.pop %v4823
        %v4845 = vrcp.pop %v4825
        %v4846 = vrcp.pop %v4827
        %v4847 = vrcp.pop %v4829
        %v4848 = vrcp.pop %v4831
        %v4849 = vrcp.pop %v4833
        %v4850 = vmul.f32 %v4771, %v4834
        %v4851 = vmul.f32 %v4773, %v4835
        %v4852 = vmul.f32 %v4775, %v4836
        %v4853 = vmul.f32 %v4777, %v4837
        %v4854 = vmul.f32 %v4779, %v4838
        %v4855 = vmul.f32 %v4781, %v4839
        %v4856 = vmul.f32 %v4783, %v4840
        %v4857 = vmul.f32 %v4785, %v4841
        %v4858 = vmul.f32 %v4787, %v4842
        %v4859 = vmul.f32 %v4789, %v4843
        %v4860 = vmul.f32 %v4791, %v4844
        %v4861 = vmul.f32 %v4793, %v4845
        %v4862 = vmul.f32 %v4795, %v4846
        %v4863 = vmul.f32 %v4797, %v4847
        %v4864 = vmul.f32 %v4799, %v4848
        %v4865 = vmul.f32 %v4801, %v4849
        %v4866 = vpack.c.bf16 %v4851, %v4850
        %v4867 = vpack.c.bf16 %v4853, %v4852
        %v4868 = vpack.c.bf16 %v4855, %v4854
        %v4869 = vpack.c.bf16 %v4857, %v4856
        %v4870 = vpack.c.bf16 %v4859, %v4858
        %v4871 = vpack.c.bf16 %v4861, %v4860
        %v4872 = vpack.c.bf16 %v4863, %v4862
        %v4873 = vpack.c.bf16 %v4865, %v4864
        %4874 = vmatprep.subr.bf16.mxu0 0
        %4875 = vmatpush1.bf16.msra.mxu0 %v4569
        %4876 = vmatprep.subr.bf16.mxu0 0
        %4877 = vmatpush1.bf16.msra.mxu0 %v4570
        %4878 = vmatprep.subr.bf16.mxu0 0
        %4879 = vmatpush1.bf16.msra.mxu0 %v4571
        %4880 = vmatprep.subr.bf16.mxu0 0
        %4881 = vmatpush1.bf16.msra.mxu0 %v4572
        %4882 = vmatprep.subr.bf16.mxu0 0
        %4883 = vmatpush1.bf16.msra.mxu0 %v4573
        %4884 = vmatprep.subr.bf16.mxu0 0
        %4885 = vmatpush1.bf16.msra.mxu0 %v4574
        %4886 = vmatprep.subr.bf16.mxu0 0
        %4887 = vmatpush1.bf16.msra.mxu0 %v4575
        %4888 = vmatprep.subr.bf16.mxu0 0
        %4889 = vmatpush1.bf16.msra.mxu0 %v4576
        %4890 = vmatprep.subr.bf16.mxu0 0
        %4891 = vmatpush1.bf16.msra.mxu0 0
        %4892 = vmatprep.subr.bf16.mxu0 0
        %4893 = vmatpush1.bf16.msra.mxu0 0
        %4894 = vmatprep.subr.bf16.mxu0 0
        %4895 = vmatpush1.bf16.msra.mxu0 0
        %4896 = vmatprep.subr.bf16.mxu0 0
        %4897 = vmatpush1.bf16.msra.mxu0 0
        %4898 = vmatprep.subr.bf16.mxu0 0
        %4899 = vmatpush1.bf16.msra.mxu0 0
        %4900 = vmatprep.subr.bf16.mxu0 0
        %4901 = vmatpush1.bf16.msra.mxu0 0
        %4902 = vmatprep.subr.bf16.mxu0 0
        %4903 = vmatpush1.bf16.msra.mxu0 0
        %4904 = vmatprep.subr.bf16.mxu0 0
        %4905 = vmatpush1.bf16.msra.mxu0 0
        %4906 = vmatprep.mubr.bf16.mxu0 0
        %4907 = vmatmul.mubr.bf16.gmra.mrb[0].mxu0 %v4866
        %v4908 = vpop.f32.mrb[0].mxu0
        %v4909 = vadd.f32 0.0, %v4908
        %v4910 = vpop.f32.mrb[0].mxu0
        %v4911 = vpop.f32.mrb[0].mxu0
        %v4912 = vadd.f32 0.0, %v4911
        %v4913 = vpop.f32.mrb[0].mxu0
        %4914 = vmatprep.mubr.bf16.mxu0 0
        %4915 = vmatmul.mubr.bf16.gmra.mrb[0].mxu0 %v4867
        %v4916 = vpop.f32.mrb[0].mxu0
        %v4917 = vadd.f32 0.0, %v4916
        %v4918 = vpop.f32.mrb[0].mxu0
        %v4919 = vpop.f32.mrb[0].mxu0
        %v4920 = vadd.f32 0.0, %v4919
        %v4921 = vpop.f32.mrb[0].mxu0
        %4922 = vmatprep.mubr.bf16.mxu0 0
        %4923 = vmatmul.mubr.bf16.gmra.mrb[0].mxu0 %v4868
        %v4924 = vpop.f32.mrb[0].mxu0
        %v4925 = vadd.f32 0.0, %v4924
        %v4926 = vpop.f32.mrb[0].mxu0
        %v4927 = vpop.f32.mrb[0].mxu0
        %v4928 = vadd.f32 0.0, %v4927
        %v4929 = vpop.f32.mrb[0].mxu0
        %4930 = vmatprep.mubr.bf16.mxu0 0
        %4931 = vmatmul.mubr.bf16.gmra.mrb[0].mxu0 %v4869
        %v4932 = vpop.f32.mrb[0].mxu0
        %v4933 = vadd.f32 0.0, %v4932
        %v4934 = vpop.f32.mrb[0].mxu0
        %v4935 = vpop.f32.mrb[0].mxu0
        %v4936 = vadd.f32 0.0, %v4935
        %v4937 = vpop.f32.mrb[0].mxu0
        %4938 = vmatprep.mubr.bf16.mxu0 0
        %4939 = vmatmul.mubr.bf16.gmra.mrb[0].mxu0 %v4870
        %v4940 = vpop.f32.mrb[0].mxu0
        %v4941 = vadd.f32 0.0, %v4940
        %v4942 = vpop.f32.mrb[0].mxu0
        %v4943 = vpop.f32.mrb[0].mxu0
        %v4944 = vadd.f32 0.0, %v4943
        %v4945 = vpop.f32.mrb[0].mxu0
        %4946 = vmatprep.mubr.bf16.mxu0 0
        %4947 = vmatmul.mubr.bf16.gmra.mrb[0].mxu0 %v4871
        %v4948 = vpop.f32.mrb[0].mxu0
        %v4949 = vadd.f32 0.0, %v4948
        %v4950 = vpop.f32.mrb[0].mxu0
        %v4951 = vpop.f32.mrb[0].mxu0
        %v4952 = vadd.f32 0.0, %v4951
        %v4953 = vpop.f32.mrb[0].mxu0
        %4954 = vmatprep.mubr.bf16.mxu0 0
        %4955 = vmatmul.mubr.bf16.gmra.mrb[0].mxu0 %v4872
        %v4956 = vpop.f32.mrb[0].mxu0
        %v4957 = vadd.f32 0.0, %v4956
        %v4958 = vpop.f32.mrb[0].mxu0
        %v4959 = vpop.f32.mrb[0].mxu0
        %v4960 = vadd.f32 0.0, %v4959
        %v4961 = vpop.f32.mrb[0].mxu0
        %4962 = vmatprep.mubr.bf16.mxu0 0
        %4963 = vmatmul.mubr.bf16.gmra.mrb[0].mxu0 %v4873
        %v4964 = vpop.f32.mrb[0].mxu0
        %v4965 = vadd.f32 0.0, %v4964
        %v4966 = vpop.f32.mrb[0].mxu0
        %v4967 = vpop.f32.mrb[0].mxu0
        %v4968 = vadd.f32 0.0, %v4967
        %v4969 = vpop.f32.mrb[0].mxu0
        %4970 = vdwg.mxu0
        %4979 = vrot.lane.b32.xlu0 %v4553, 64
        %v4980 = vpop.permute.xlu0 %4979
        %4981 = vrot.lane.b32.xlu0 %v4554, 64
        %v4982 = vpop.permute.xlu0 %4981
        %4983 = vrot.lane.b32.xlu0 %v4555, 64
        %v4984 = vpop.permute.xlu0 %4983
        %4985 = vrot.lane.b32.xlu0 %v4556, 64
        %v4986 = vpop.permute.xlu0 %4985
        %4987 = vrot.lane.b32.xlu0 %v4557, 64
        %v4988 = vpop.permute.xlu0 %4987
        %4989 = vrot.lane.b32.xlu0 %v4558, 64
        %v4990 = vpop.permute.xlu0 %4989
        %4991 = vrot.lane.b32.xlu0 %v4559, 64
        %v4992 = vpop.permute.xlu0 %4991
        %4993 = vrot.lane.b32.xlu0 %v4560, 64
        %v4994 = vpop.permute.xlu0 %4993
        %5003 = vrot.lane.b32.xlu0 %v4561, 64
        %v5004 = vpop.permute.xlu0 %5003
        %5005 = vrot.lane.b32.xlu0 %v4562, 64
        %v5006 = vpop.permute.xlu0 %5005
        %5007 = vrot.lane.b32.xlu0 %v4563, 64
        %v5008 = vpop.permute.xlu0 %5007
        %5009 = vrot.lane.b32.xlu0 %v4564, 64
        %v5010 = vpop.permute.xlu0 %5009
        %5011 = vrot.lane.b32.xlu0 %v4565, 64
        %v5012 = vpop.permute.xlu0 %5011
        %5013 = vrot.lane.b32.xlu0 %v4566, 64
        %v5014 = vpop.permute.xlu0 %5013
        %5015 = vrot.lane.b32.xlu0 %v4567, 64
        %v5016 = vpop.permute.xlu0 %5015
        %5017 = vrot.lane.b32.xlu0 %v4568, 64
        %v5018 = vpop.permute.xlu0 %5017
        %v5020 = vsel %vm1564, %v4980, 0
        %v5023 = vsel %vm1564, %v4982, 0
        %v5026 = vsel %vm1564, %v4984, 0
        %v5029 = vsel %vm1564, %v4986, 0
        %v5032 = vsel %vm1564, %v4988, 0
        %v5035 = vsel %vm1564, %v4990, 0
        %v5038 = vsel %vm1564, %v4992, 0
        %v5041 = vsel %vm1564, %v4994, 0
        %v5044 = vsel %vm1564, %v5004, 0
        %v5047 = vsel %vm1564, %v5006, 0
        %v5050 = vsel %vm1564, %v5008, 0
        %v5053 = vsel %vm1564, %v5010, 0
        %v5056 = vsel %vm1564, %v5012, 0
        %v5059 = vsel %vm1564, %v5014, 0
        %v5062 = vsel %vm1564, %v5016, 0
        %v5065 = vsel %vm1564, %v5018, 0
        %5067 = vmatprep.subr.bf16.mxu0 0
        %5068 = vmatpush1.bf16.xpose.msra.mxu0 %v5044
        %5069 = vmatprep.subr.bf16.mxu0 0
        %5070 = vmatpush1.bf16.xpose.msra.mxu0 %v5047
        %5071 = vmatprep.subr.bf16.mxu0 0
        %5072 = vmatpush1.bf16.xpose.msra.mxu0 %v5050
        %5073 = vmatprep.subr.bf16.mxu0 0
        %5074 = vmatpush1.bf16.xpose.msra.mxu0 %v5053
        %5075 = vmatprep.subr.bf16.mxu0 0
        %5076 = vmatpush1.bf16.xpose.msra.mxu0 %v5056
        %5077 = vmatprep.subr.bf16.mxu0 0
        %5078 = vmatpush1.bf16.xpose.msra.mxu0 %v5059
        %5079 = vmatprep.subr.bf16.mxu0 0
        %5080 = vmatpush1.bf16.xpose.msra.mxu0 %v5062
        %5081 = vmatprep.subr.bf16.mxu0 0
        %5082 = vmatpush1.bf16.xpose.msra.mxu0 %v5065
        %5083 = vmatprep.subr.bf16.mxu0 0
        %5084 = vmatpush1.bf16.xpose.msra.mxu0 0
        %5085 = vmatprep.subr.bf16.mxu0 0
        %5086 = vmatpush1.bf16.xpose.msra.mxu0 0
        %5087 = vmatprep.subr.bf16.mxu0 0
        %5088 = vmatpush1.bf16.xpose.msra.mxu0 0
        %5089 = vmatprep.subr.bf16.mxu0 0
        %5090 = vmatpush1.bf16.xpose.msra.mxu0 0
        %5091 = vmatprep.subr.bf16.mxu0 0
        %5092 = vmatpush1.bf16.xpose.msra.mxu0 0
        %5093 = vmatprep.subr.bf16.mxu0 0
        %5094 = vmatpush1.bf16.xpose.msra.mxu0 0
        %5095 = vmatprep.subr.bf16.mxu0 0
        %5096 = vmatpush1.bf16.xpose.msra.mxu0 0
        %5097 = vmatprep.subr.bf16.mxu0 0
        %5098 = vmatpush1.bf16.xpose.msra.mxu0 0
        %5099 = vmatprep.mubr.bf16.mxu0 0
        %5100 = vmatmul.mubr.bf16.gmra.mrb[0].mxu0 %v5020
        %v5101 = vpop.f32.mrb[0].mxu0
        %v5102 = vadd.f32 0.0, %v5101
        %v5103 = vpop.f32.mrb[0].mxu0
        %v5104 = vpop.f32.mrb[0].mxu0
        %v5105 = vadd.f32 0.0, %v5104
        %v5106 = vpop.f32.mrb[0].mxu0
        %5107 = vmatprep.mubr.bf16.mxu0 0
        %5108 = vmatmul.mubr.bf16.gmra.mrb[0].mxu0 %v5023
        %v5109 = vpop.f32.mrb[0].mxu0
        %v5110 = vadd.f32 0.0, %v5109
        %v5111 = vpop.f32.mrb[0].mxu0
        %v5112 = vpop.f32.mrb[0].mxu0
        %v5113 = vadd.f32 0.0, %v5112
        %v5114 = vpop.f32.mrb[0].mxu0
        %5115 = vmatprep.mubr.bf16.mxu0 0
        %5116 = vmatmul.mubr.bf16.gmra.mrb[0].mxu0 %v5026
        %v5117 = vpop.f32.mrb[0].mxu0
        %v5118 = vadd.f32 0.0, %v5117
        %v5119 = vpop.f32.mrb[0].mxu0
        %v5120 = vpop.f32.mrb[0].mxu0
        %v5121 = vadd.f32 0.0, %v5120
        %v5122 = vpop.f32.mrb[0].mxu0
        %5123 = vmatprep.mubr.bf16.mxu0 0
        %5124 = vmatmul.mubr.bf16.gmra.mrb[0].mxu0 %v5029
        %v5125 = vpop.f32.mrb[0].mxu0
        %v5126 = vadd.f32 0.0, %v5125
        %v5127 = vpop.f32.mrb[0].mxu0
        %v5128 = vpop.f32.mrb[0].mxu0
        %v5129 = vadd.f32 0.0, %v5128
        %v5130 = vpop.f32.mrb[0].mxu0
        %5131 = vmatprep.mubr.bf16.mxu0 0
        %5132 = vmatmul.mubr.bf16.gmra.mrb[0].mxu0 %v5032
        %v5133 = vpop.f32.mrb[0].mxu0
        %v5134 = vadd.f32 0.0, %v5133
        %v5135 = vpop.f32.mrb[0].mxu0
        %v5136 = vpop.f32.mrb[0].mxu0
        %v5137 = vadd.f32 0.0, %v5136
        %v5138 = vpop.f32.mrb[0].mxu0
        %5139 = vmatprep.mubr.bf16.mxu0 0
        %5140 = vmatmul.mubr.bf16.gmra.mrb[0].mxu0 %v5035
        %v5141 = vpop.f32.mrb[0].mxu0
        %v5142 = vadd.f32 0.0, %v5141
        %v5143 = vpop.f32.mrb[0].mxu0
        %v5144 = vpop.f32.mrb[0].mxu0
        %v5145 = vadd.f32 0.0, %v5144
        %v5146 = vpop.f32.mrb[0].mxu0
        %5147 = vmatprep.mubr.bf16.mxu0 0
        %5148 = vmatmul.mubr.bf16.gmra.mrb[0].mxu0 %v5038
        %v5149 = vpop.f32.mrb[0].mxu0
        %v5150 = vadd.f32 0.0, %v5149
        %v5151 = vpop.f32.mrb[0].mxu0
        %v5152 = vpop.f32.mrb[0].mxu0
        %v5153 = vadd.f32 0.0, %v5152
        %v5154 = vpop.f32.mrb[0].mxu0
        %5155 = vmatprep.mubr.bf16.mxu0 0
        %5156 = vmatmul.mubr.bf16.gmra.mrb[0].mxu0 %v5041
        %v5157 = vpop.f32.mrb[0].mxu0
        %v5158 = vadd.f32 0.0, %v5157
        %v5159 = vpop.f32.mrb[0].mxu0
        %v5160 = vpop.f32.mrb[0].mxu0
        %v5161 = vadd.f32 0.0, %v5160
        %v5162 = vpop.f32.mrb[0].mxu0
        %5163 = vdwg.mxu0
        %5164 = vmax.xlane.f32.xlu0 %v5102
        %v5165 = vpop.xlane.xlu0 %5164
        %5166 = vmax.xlane.f32.xlu0 %v5105
        %v5167 = vpop.xlane.xlu0 %5166
        %5168 = vmax.xlane.f32.xlu0 %v5110
        %v5169 = vpop.xlane.xlu0 %5168
        %5170 = vmax.xlane.f32.xlu0 %v5113
        %v5171 = vpop.xlane.xlu0 %5170
        %5172 = vmax.xlane.f32.xlu0 %v5118
        %v5173 = vpop.xlane.xlu0 %5172
        %5174 = vmax.xlane.f32.xlu0 %v5121
        %v5175 = vpop.xlane.xlu0 %5174
        %5176 = vmax.xlane.f32.xlu0 %v5126
        %v5177 = vpop.xlane.xlu0 %5176
        %5178 = vmax.xlane.f32.xlu0 %v5129
        %v5179 = vpop.xlane.xlu0 %5178
        %5180 = vmax.xlane.f32.xlu0 %v5134
        %v5181 = vpop.xlane.xlu0 %5180
        %5182 = vmax.xlane.f32.xlu0 %v5137
        %v5183 = vpop.xlane.xlu0 %5182
        %5184 = vmax.xlane.f32.xlu0 %v5142
        %v5185 = vpop.xlane.xlu0 %5184
        %5186 = vmax.xlane.f32.xlu0 %v5145
        %v5187 = vpop.xlane.xlu0 %5186
        %5188 = vmax.xlane.f32.xlu0 %v5150
        %v5189 = vpop.xlane.xlu0 %5188
        %5190 = vmax.xlane.f32.xlu0 %v5153
        %v5191 = vpop.xlane.xlu0 %5190
        %5192 = vmax.xlane.f32.xlu0 %v5158
        %v5193 = vpop.xlane.xlu0 %5192
        %5194 = vmax.xlane.f32.xlu0 %v5161
        %v5195 = vpop.xlane.xlu0 %5194
        %v5196 = vsub.f32 %v5102, %v5165
        %v5197 = vsub.f32 %v5105, %v5167
        %v5198 = vsub.f32 %v5110, %v5169
        %v5199 = vsub.f32 %v5113, %v5171
        %v5200 = vsub.f32 %v5118, %v5173
        %v5201 = vsub.f32 %v5121, %v5175
        %v5202 = vsub.f32 %v5126, %v5177
        %v5203 = vsub.f32 %v5129, %v5179
        %v5204 = vsub.f32 %v5134, %v5181
        %v5205 = vsub.f32 %v5137, %v5183
        %v5206 = vsub.f32 %v5142, %v5185
        %v5207 = vsub.f32 %v5145, %v5187
        %v5208 = vsub.f32 %v5150, %v5189
        %v5209 = vsub.f32 %v5153, %v5191
        %v5210 = vsub.f32 %v5158, %v5193
        %v5211 = vsub.f32 %v5161, %v5195
        %v5212 = vmul.f32 %v5196, 1.442695
        %v5213 = vpow.pop %v5212
        %v5214 = vmul.f32 %v5197, 1.442695
        %v5215 = vpow.pop %v5214
        %v5216 = vmul.f32 %v5198, 1.442695
        %v5217 = vpow.pop %v5216
        %v5218 = vmul.f32 %v5199, 1.442695
        %v5219 = vpow.pop %v5218
        %v5220 = vmul.f32 %v5200, 1.442695
        %v5221 = vpow.pop %v5220
        %v5222 = vmul.f32 %v5201, 1.442695
        %v5223 = vpow.pop %v5222
        %v5224 = vmul.f32 %v5202, 1.442695
        %v5225 = vpow.pop %v5224
        %v5226 = vmul.f32 %v5203, 1.442695
        %v5227 = vpow.pop %v5226
        %v5228 = vmul.f32 %v5204, 1.442695
        %v5229 = vpow.pop %v5228
        %v5230 = vmul.f32 %v5205, 1.442695
        %v5231 = vpow.pop %v5230
        %v5232 = vmul.f32 %v5206, 1.442695
        %v5233 = vpow.pop %v5232
        %v5234 = vmul.f32 %v5207, 1.442695
        %v5235 = vpow.pop %v5234
        %v5236 = vmul.f32 %v5208, 1.442695
        %v5237 = vpow.pop %v5236
        %v5238 = vmul.f32 %v5209, 1.442695
        %v5239 = vpow.pop %v5238
        %v5240 = vmul.f32 %v5210, 1.442695
        %v5241 = vpow.pop %v5240
        %v5242 = vmul.f32 %v5211, 1.442695
        %v5243 = vpow.pop %v5242
        %5244 = vadd.xlane.f32.xlu0 %v5213
        %v5245 = vpop.xlane.xlu0 %5244
        %5246 = vadd.xlane.f32.xlu0 %v5215
        %v5247 = vpop.xlane.xlu0 %5246
        %5248 = vadd.xlane.f32.xlu0 %v5217
        %v5249 = vpop.xlane.xlu0 %5248
        %5250 = vadd.xlane.f32.xlu0 %v5219
        %v5251 = vpop.xlane.xlu0 %5250
        %5252 = vadd.xlane.f32.xlu0 %v5221
        %v5253 = vpop.xlane.xlu0 %5252
        %5254 = vadd.xlane.f32.xlu0 %v5223
        %v5255 = vpop.xlane.xlu0 %5254
        %5256 = vadd.xlane.f32.xlu0 %v5225
        %v5257 = vpop.xlane.xlu0 %5256
        %5258 = vadd.xlane.f32.xlu0 %v5227
        %v5259 = vpop.xlane.xlu0 %5258
        %5260 = vadd.xlane.f32.xlu0 %v5229
        %v5261 = vpop.xlane.xlu0 %5260
        %5262 = vadd.xlane.f32.xlu0 %v5231
        %v5263 = vpop.xlane.xlu0 %5262
        %5264 = vadd.xlane.f32.xlu0 %v5233
        %v5265 = vpop.xlane.xlu0 %5264
        %5266 = vadd.xlane.f32.xlu0 %v5235
        %v5267 = vpop.xlane.xlu0 %5266
        %5268 = vadd.xlane.f32.xlu0 %v5237
        %v5269 = vpop.xlane.xlu0 %5268
        %5270 = vadd.xlane.f32.xlu0 %v5239
        %v5271 = vpop.xlane.xlu0 %5270
        %5272 = vadd.xlane.f32.xlu0 %v5241
        %v5273 = vpop.xlane.xlu0 %5272
        %5274 = vadd.xlane.f32.xlu0 %v5243
        %v5275 = vpop.xlane.xlu0 %5274
        %v5276 = vrcp.pop %v5245
        %v5277 = vrcp.pop %v5247
        %v5278 = vrcp.pop %v5249
        %v5279 = vrcp.pop %v5251
        %v5280 = vrcp.pop %v5253
        %v5281 = vrcp.pop %v5255
        %v5282 = vrcp.pop %v5257
        %v5283 = vrcp.pop %v5259
        %v5284 = vrcp.pop %v5261
        %v5285 = vrcp.pop %v5263
        %v5286 = vrcp.pop %v5265
        %v5287 = vrcp.pop %v5267
        %v5288 = vrcp.pop %v5269
        %v5289 = vrcp.pop %v5271
        %v5290 = vrcp.pop %v5273
        %v5291 = vrcp.pop %v5275
        %v5292 = vmul.f32 %v5213, %v5276
        %v5293 = vmul.f32 %v5215, %v5277
        %v5294 = vmul.f32 %v5217, %v5278
        %v5295 = vmul.f32 %v5219, %v5279
        %v5296 = vmul.f32 %v5221, %v5280
        %v5297 = vmul.f32 %v5223, %v5281
        %v5298 = vmul.f32 %v5225, %v5282
        %v5299 = vmul.f32 %v5227, %v5283
        %v5300 = vmul.f32 %v5229, %v5284
        %v5301 = vmul.f32 %v5231, %v5285
        %v5302 = vmul.f32 %v5233, %v5286
        %v5303 = vmul.f32 %v5235, %v5287
        %v5304 = vmul.f32 %v5237, %v5288
        %v5305 = vmul.f32 %v5239, %v5289
        %v5306 = vmul.f32 %v5241, %v5290
        %v5307 = vmul.f32 %v5243, %v5291
        %v5308 = vpack.c.bf16 %v5293, %v5292
        %v5309 = vpack.c.bf16 %v5295, %v5294
        %v5310 = vpack.c.bf16 %v5297, %v5296
        %v5311 = vpack.c.bf16 %v5299, %v5298
        %v5312 = vpack.c.bf16 %v5301, %v5300
        %v5313 = vpack.c.bf16 %v5303, %v5302
        %v5314 = vpack.c.bf16 %v5305, %v5304
        %v5315 = vpack.c.bf16 %v5307, %v5306
        %5324 = vrot.lane.b32.xlu0 %v4569, 64
        %v5325 = vpop.permute.xlu0 %5324
        %5326 = vrot.lane.b32.xlu0 %v4570, 64
        %v5327 = vpop.permute.xlu0 %5326
        %5328 = vrot.lane.b32.xlu0 %v4571, 64
        %v5329 = vpop.permute.xlu0 %5328
        %5330 = vrot.lane.b32.xlu0 %v4572, 64
        %v5331 = vpop.permute.xlu0 %5330
        %5332 = vrot.lane.b32.xlu0 %v4573, 64
        %v5333 = vpop.permute.xlu0 %5332
        %5334 = vrot.lane.b32.xlu0 %v4574, 64
        %v5335 = vpop.permute.xlu0 %5334
        %5336 = vrot.lane.b32.xlu0 %v4575, 64
        %v5337 = vpop.permute.xlu0 %5336
        %5338 = vrot.lane.b32.xlu0 %v4576, 64
        %v5339 = vpop.permute.xlu0 %5338
        %5348 = vmatprep.subr.bf16.mxu0 0
        %5349 = vmatpush1.bf16.msra.mxu0 %v5325
        %5350 = vmatprep.subr.bf16.mxu0 0
        %5351 = vmatpush1.bf16.msra.mxu0 %v5327
        %5352 = vmatprep.subr.bf16.mxu0 0
        %5353 = vmatpush1.bf16.msra.mxu0 %v5329
        %5354 = vmatprep.subr.bf16.mxu0 0
        %5355 = vmatpush1.bf16.msra.mxu0 %v5331
        %5356 = vmatprep.subr.bf16.mxu0 0
        %5357 = vmatpush1.bf16.msra.mxu0 %v5333
        %5358 = vmatprep.subr.bf16.mxu0 0
        %5359 = vmatpush1.bf16.msra.mxu0 %v5335
        %5360 = vmatprep.subr.bf16.mxu0 0
        %5361 = vmatpush1.bf16.msra.mxu0 %v5337
        %5362 = vmatprep.subr.bf16.mxu0 0
        %5363 = vmatpush1.bf16.msra.mxu0 %v5339
        %5364 = vmatprep.subr.bf16.mxu0 0
        %5365 = vmatpush1.bf16.msra.mxu0 0
        %5366 = vmatprep.subr.bf16.mxu0 0
        %5367 = vmatpush1.bf16.msra.mxu0 0
        %5368 = vmatprep.subr.bf16.mxu0 0
        %5369 = vmatpush1.bf16.msra.mxu0 0
        %5370 = vmatprep.subr.bf16.mxu0 0
        %5371 = vmatpush1.bf16.msra.mxu0 0
        %5372 = vmatprep.subr.bf16.mxu0 0
        %5373 = vmatpush1.bf16.msra.mxu0 0
        %5374 = vmatprep.subr.bf16.mxu0 0
        %5375 = vmatpush1.bf16.msra.mxu0 0
        %5376 = vmatprep.subr.bf16.mxu0 0
        %5377 = vmatpush1.bf16.msra.mxu0 0
        %5378 = vmatprep.subr.bf16.mxu0 0
        %5379 = vmatpush1.bf16.msra.mxu0 0
        %5380 = vmatprep.mubr.bf16.mxu0 0
        %5381 = vmatmul.mubr.bf16.gmra.mrb[0].mxu0 %v5308
        %v5382 = vpop.f32.mrb[0].mxu0
        %v5383 = vadd.f32 0.0, %v5382
        %v5384 = vpop.f32.mrb[0].mxu0
        %v5385 = vpop.f32.mrb[0].mxu0
        %v5386 = vadd.f32 0.0, %v5385
        %v5387 = vpop.f32.mrb[0].mxu0
        %5388 = vmatprep.mubr.bf16.mxu0 0
        %5389 = vmatmul.mubr.bf16.gmra.mrb[0].mxu0 %v5309
        %v5390 = vpop.f32.mrb[0].mxu0
        %v5391 = vadd.f32 0.0, %v5390
        %v5392 = vpop.f32.mrb[0].mxu0
        %v5393 = vpop.f32.mrb[0].mxu0
        %v5394 = vadd.f32 0.0, %v5393
        %v5395 = vpop.f32.mrb[0].mxu0
        %5396 = vmatprep.mubr.bf16.mxu0 0
        %5397 = vmatmul.mubr.bf16.gmra.mrb[0].mxu0 %v5310
        %v5398 = vpop.f32.mrb[0].mxu0
        %v5399 = vadd.f32 0.0, %v5398
        %v5400 = vpop.f32.mrb[0].mxu0
        %v5401 = vpop.f32.mrb[0].mxu0
        %v5402 = vadd.f32 0.0, %v5401
        %v5403 = vpop.f32.mrb[0].mxu0
        %5404 = vmatprep.mubr.bf16.mxu0 0
        %5405 = vmatmul.mubr.bf16.gmra.mrb[0].mxu0 %v5311
        %v5406 = vpop.f32.mrb[0].mxu0
        %v5407 = vadd.f32 0.0, %v5406
        %v5408 = vpop.f32.mrb[0].mxu0
        %v5409 = vpop.f32.mrb[0].mxu0
        %v5410 = vadd.f32 0.0, %v5409
        %v5411 = vpop.f32.mrb[0].mxu0
        %5412 = vmatprep.mubr.bf16.mxu0 0
        %5413 = vmatmul.mubr.bf16.gmra.mrb[0].mxu0 %v5312
        %v5414 = vpop.f32.mrb[0].mxu0
        %v5415 = vadd.f32 0.0, %v5414
        %v5416 = vpop.f32.mrb[0].mxu0
        %v5417 = vpop.f32.mrb[0].mxu0
        %v5418 = vadd.f32 0.0, %v5417
        %v5419 = vpop.f32.mrb[0].mxu0
        %5420 = vmatprep.mubr.bf16.mxu0 0
        %5421 = vmatmul.mubr.bf16.gmra.mrb[0].mxu0 %v5313
        %v5422 = vpop.f32.mrb[0].mxu0
        %v5423 = vadd.f32 0.0, %v5422
        %v5424 = vpop.f32.mrb[0].mxu0
        %v5425 = vpop.f32.mrb[0].mxu0
        %v5426 = vadd.f32 0.0, %v5425
        %v5427 = vpop.f32.mrb[0].mxu0
        %5428 = vmatprep.mubr.bf16.mxu0 0
        %5429 = vmatmul.mubr.bf16.gmra.mrb[0].mxu0 %v5314
        %v5430 = vpop.f32.mrb[0].mxu0
        %v5431 = vadd.f32 0.0, %v5430
        %v5432 = vpop.f32.mrb[0].mxu0
        %v5433 = vpop.f32.mrb[0].mxu0
        %v5434 = vadd.f32 0.0, %v5433
        %v5435 = vpop.f32.mrb[0].mxu0
        %5436 = vmatprep.mubr.bf16.mxu0 0
        %5437 = vmatmul.mubr.bf16.gmra.mrb[0].mxu0 %v5315
        %v5438 = vpop.f32.mrb[0].mxu0
        %v5439 = vadd.f32 0.0, %v5438
        %v5440 = vpop.f32.mrb[0].mxu0
        %v5441 = vpop.f32.mrb[0].mxu0
        %v5442 = vadd.f32 0.0, %v5441
        %v5443 = vpop.f32.mrb[0].mxu0
        %5444 = vdwg.mxu0
        %5461 = vrot.lane.b32.xlu0 %v5383, 64
        %v5462 = vpop.permute.xlu0 %5461
        %5463 = vrot.lane.b32.xlu0 %v5386, 64
        %v5464 = vpop.permute.xlu0 %5463
        %5465 = vrot.lane.b32.xlu0 %v5391, 64
        %v5466 = vpop.permute.xlu0 %5465
        %5467 = vrot.lane.b32.xlu0 %v5394, 64
        %v5468 = vpop.permute.xlu0 %5467
        %5469 = vrot.lane.b32.xlu0 %v5399, 64
        %v5470 = vpop.permute.xlu0 %5469
        %5471 = vrot.lane.b32.xlu0 %v5402, 64
        %v5472 = vpop.permute.xlu0 %5471
        %5473 = vrot.lane.b32.xlu0 %v5407, 64
        %v5474 = vpop.permute.xlu0 %5473
        %5475 = vrot.lane.b32.xlu0 %v5410, 64
        %v5476 = vpop.permute.xlu0 %5475
        %5477 = vrot.lane.b32.xlu0 %v5415, 64
        %v5478 = vpop.permute.xlu0 %5477
        %5479 = vrot.lane.b32.xlu0 %v5418, 64
        %v5480 = vpop.permute.xlu0 %5479
        %5481 = vrot.lane.b32.xlu0 %v5423, 64
        %v5482 = vpop.permute.xlu0 %5481
        %5483 = vrot.lane.b32.xlu0 %v5426, 64
        %v5484 = vpop.permute.xlu0 %5483
        %5485 = vrot.lane.b32.xlu0 %v5431, 64
        %v5486 = vpop.permute.xlu0 %5485
        %5487 = vrot.lane.b32.xlu0 %v5434, 64
        %v5488 = vpop.permute.xlu0 %5487
        %5489 = vrot.lane.b32.xlu0 %v5439, 64
        %v5490 = vpop.permute.xlu0 %5489
        %5491 = vrot.lane.b32.xlu0 %v5442, 64
        %v5492 = vpop.permute.xlu0 %5491
        %v5509 = vsel %vm1564, %v4909, %v5462
        %v5510 = vsel %vm1564, %v4912, %v5464
        %v5511 = vsel %vm1564, %v4917, %v5466
        %v5512 = vsel %vm1564, %v4920, %v5468
        %v5513 = vsel %vm1564, %v4925, %v5470
        %v5514 = vsel %vm1564, %v4928, %v5472
        %v5515 = vsel %vm1564, %v4933, %v5474
        %v5516 = vsel %vm1564, %v4936, %v5476
        %v5517 = vsel %vm1564, %v4941, %v5478
        %v5518 = vsel %vm1564, %v4944, %v5480
        %v5519 = vsel %vm1564, %v4949, %v5482
        %v5520 = vsel %vm1564, %v4952, %v5484
        %v5521 = vsel %vm1564, %v4957, %v5486
        %v5522 = vsel %vm1564, %v4960, %v5488
        %v5523 = vsel %vm1564, %v4965, %v5490
        %v5524 = vsel %vm1564, %v4968, %v5492
        %v5525 = vpack.c.bf16 %v5510, %v5509
        %v5526 = vpack.c.bf16 %v5512, %v5511
        %v5527 = vpack.c.bf16 %v5514, %v5513
        %v5528 = vpack.c.bf16 %v5516, %v5515
        %v5529 = vpack.c.bf16 %v5518, %v5517
        %v5530 = vpack.c.bf16 %v5520, %v5519
        %v5531 = vpack.c.bf16 %v5522, %v5521
        %v5532 = vpack.c.bf16 %v5524, %v5523
        %5533 = vst [vmem:[#allocation2 + $0x18] sm:$0xff] %v5525
        %5534 = vst [vmem:[#allocation2 + $0x38] sm:$0xff] %v5526
        %5535 = vst [vmem:[#allocation2 + $0x58] sm:$0xff] %v5527
        %5536 = vst [vmem:[#allocation2 + $0x78] sm:$0xff] %v5528
        %5537 = vst [vmem:[#allocation2 + $0x98] sm:$0xff] %v5529
        %5538 = vst [vmem:[#allocation2 + $0xb8] sm:$0xff] %v5530
        %5539 = vst [vmem:[#allocation2 + $0xd8] sm:$0xff] %v5531
        %5540 = vst [vmem:[#allocation2 + $0xf8] sm:$0xff] %v5532
        %v5541 = vld [vmem:[#allocation2] sm:$0xff]
        %v5542 = vld [vmem:[#allocation2 + $0x8] sm:$0xff]
        %v5543 = vld [vmem:[#allocation2 + $0x10] sm:$0xff]
        %v5544 = vld [vmem:[#allocation2 + $0x18] sm:$0xff]
        %v5545 = vld [vmem:[#allocation2 + $0x20] sm:$0xff]
        %v5546 = vld [vmem:[#allocation2 + $0x28] sm:$0xff]
        %v5547 = vld [vmem:[#allocation2 + $0x30] sm:$0xff]
        %v5548 = vld [vmem:[#allocation2 + $0x38] sm:$0xff]
        %v5549 = vld [vmem:[#allocation2 + $0x40] sm:$0xff]
        %v5550 = vld [vmem:[#allocation2 + $0x48] sm:$0xff]
        %v5551 = vld [vmem:[#allocation2 + $0x50] sm:$0xff]
        %v5552 = vld [vmem:[#allocation2 + $0x58] sm:$0xff]
        %v5553 = vld [vmem:[#allocation2 + $0x60] sm:$0xff]
        %v5554 = vld [vmem:[#allocation2 + $0x68] sm:$0xff]
        %v5555 = vld [vmem:[#allocation2 + $0x70] sm:$0xff]
        %v5556 = vld [vmem:[#allocation2 + $0x78] sm:$0xff]
        %v5557 = vld [vmem:[#allocation2 + $0x80] sm:$0xff]
        %v5558 = vld [vmem:[#allocation2 + $0x88] sm:$0xff]
        %v5559 = vld [vmem:[#allocation2 + $0x90] sm:$0xff]
        %v5560 = vld [vmem:[#allocation2 + $0x98] sm:$0xff]
        %v5561 = vld [vmem:[#allocation2 + $0xa0] sm:$0xff]
        %v5562 = vld [vmem:[#allocation2 + $0xa8] sm:$0xff]
        %v5563 = vld [vmem:[#allocation2 + $0xb0] sm:$0xff]
        %v5564 = vld [vmem:[#allocation2 + $0xb8] sm:$0xff]
        %v5565 = vld [vmem:[#allocation2 + $0xc0] sm:$0xff]
        %v5566 = vld [vmem:[#allocation2 + $0xc8] sm:$0xff]
        %v5567 = vld [vmem:[#allocation2 + $0xd0] sm:$0xff]
        %v5568 = vld [vmem:[#allocation2 + $0xd8] sm:$0xff]
        %v5569 = vld [vmem:[#allocation2 + $0xe0] sm:$0xff]
        %v5570 = vld [vmem:[#allocation2 + $0xe8] sm:$0xff]
        %v5571 = vld [vmem:[#allocation2 + $0xf0] sm:$0xff]
        %v5572 = vld [vmem:[#allocation2 + $0xf8] sm:$0xff]
        %v5573 = vld [vmem:[#allocation8] sm:$0xf]
        %v5574 = vld [vmem:[#allocation8 + $0x4] sm:$0xf]
        %v5575 = vld [vmem:[#allocation8 + $0x8] sm:$0xf]
        %v5576 = vld [vmem:[#allocation8 + $0xc] sm:$0xf]
        %v5577 = vld [vmem:[#allocation8 + $0x10] sm:$0xf]
        %v5578 = vld [vmem:[#allocation8 + $0x14] sm:$0xf]
        %v5579 = vld [vmem:[#allocation8 + $0x18] sm:$0xf]
        %v5580 = vld [vmem:[#allocation8 + $0x1c] sm:$0xf]
        %v5581 = vld [vmem:[#allocation8 + $0x20] sm:$0xf]
        %v5582 = vld [vmem:[#allocation8 + $0x24] sm:$0xf]
        %v5583 = vld [vmem:[#allocation8 + $0x28] sm:$0xf]
        %v5584 = vld [vmem:[#allocation8 + $0x2c] sm:$0xf]
        %v5585 = vld [vmem:[#allocation8 + $0x30] sm:$0xf]
        %v5586 = vld [vmem:[#allocation8 + $0x34] sm:$0xf]
        %v5587 = vld [vmem:[#allocation8 + $0x38] sm:$0xf]
        %v5588 = vld [vmem:[#allocation8 + $0x3c] sm:$0xf]
        %v5589 = vld [vmem:[#allocation8 + $0x40] sm:$0xf]
        %v5590 = vld [vmem:[#allocation8 + $0x44] sm:$0xf]
        %v5591 = vld [vmem:[#allocation8 + $0x48] sm:$0xf]
        %v5592 = vld [vmem:[#allocation8 + $0x4c] sm:$0xf]
        %v5593 = vld [vmem:[#allocation8 + $0x50] sm:$0xf]
        %v5594 = vld [vmem:[#allocation8 + $0x54] sm:$0xf]
        %v5595 = vld [vmem:[#allocation8 + $0x58] sm:$0xf]
        %v5596 = vld [vmem:[#allocation8 + $0x5c] sm:$0xf]
        %v5597 = vld [vmem:[#allocation8 + $0x60] sm:$0xf]
        %v5598 = vld [vmem:[#allocation8 + $0x64] sm:$0xf]
        %v5599 = vld [vmem:[#allocation8 + $0x68] sm:$0xf]
        %v5600 = vld [vmem:[#allocation8 + $0x6c] sm:$0xf]
        %v5601 = vld [vmem:[#allocation8 + $0x70] sm:$0xf]
        %v5602 = vld [vmem:[#allocation8 + $0x74] sm:$0xf]
        %v5603 = vld [vmem:[#allocation8 + $0x78] sm:$0xf]
        %v5604 = vld [vmem:[#allocation8 + $0x7c] sm:$0xf]
        %v5605 = vld [vmem:[#allocation8 + $0x80] sm:$0xf]
        %v5606 = vld [vmem:[#allocation8 + $0x84] sm:$0xf]
        %v5607 = vld [vmem:[#allocation8 + $0x88] sm:$0xf]
        %v5608 = vld [vmem:[#allocation8 + $0x8c] sm:$0xf]
        %v5609 = vld [vmem:[#allocation8 + $0x90] sm:$0xf]
        %v5610 = vld [vmem:[#allocation8 + $0x94] sm:$0xf]
        %v5611 = vld [vmem:[#allocation8 + $0x98] sm:$0xf]
        %v5612 = vld [vmem:[#allocation8 + $0x9c] sm:$0xf]
        %v5613 = vld [vmem:[#allocation8 + $0xa0] sm:$0xf]
        %v5614 = vld [vmem:[#allocation8 + $0xa4] sm:$0xf]
        %v5615 = vld [vmem:[#allocation8 + $0xa8] sm:$0xf]
        %v5616 = vld [vmem:[#allocation8 + $0xac] sm:$0xf]
        %v5617 = vld [vmem:[#allocation8 + $0xb0] sm:$0xf]
        %v5618 = vld [vmem:[#allocation8 + $0xb4] sm:$0xf]
        %v5619 = vld [vmem:[#allocation8 + $0xb8] sm:$0xf]
        %v5620 = vld [vmem:[#allocation8 + $0xbc] sm:$0xf]
        %v5621 = vld [vmem:[#allocation8 + $0xc0] sm:$0xf]
        %v5622 = vld [vmem:[#allocation8 + $0xc4] sm:$0xf]
        %v5623 = vld [vmem:[#allocation8 + $0xc8] sm:$0xf]
        %v5624 = vld [vmem:[#allocation8 + $0xcc] sm:$0xf]
        %v5625 = vld [vmem:[#allocation8 + $0xd0] sm:$0xf]
        %v5626 = vld [vmem:[#allocation8 + $0xd4] sm:$0xf]
        %v5627 = vld [vmem:[#allocation8 + $0xd8] sm:$0xf]
        %v5628 = vld [vmem:[#allocation8 + $0xdc] sm:$0xf]
        %v5629 = vld [vmem:[#allocation8 + $0xe0] sm:$0xf]
        %v5630 = vld [vmem:[#allocation8 + $0xe4] sm:$0xf]
        %v5631 = vld [vmem:[#allocation8 + $0xe8] sm:$0xf]
        %v5632 = vld [vmem:[#allocation8 + $0xec] sm:$0xf]
        %v5633 = vld [vmem:[#allocation8 + $0xf0] sm:$0xf]
        %v5634 = vld [vmem:[#allocation8 + $0xf4] sm:$0xf]
        %v5635 = vld [vmem:[#allocation8 + $0xf8] sm:$0xf]
        %v5636 = vld [vmem:[#allocation8 + $0xfc] sm:$0xf]
        %v5637 = vld [vmem:[%s3] sm:$0x1]
        %v5639 = vlaneseq
        %v5640 = vshrl.u32 %v5639, 7
        %v5641 = vsub.s32 0, %v5640
        %v5642 = vrot.slane %v5637, %v5641
        %v5708 = vunpack.c.l.b16 %v5573
        %v5709 = vunpack.c.l.b16 %v5574
        %v5710 = vunpack.c.l.b16 %v5575
        %v5711 = vunpack.c.l.b16 %v5576
        %v5712 = vunpack.c.l.b16 %v5577
        %v5713 = vunpack.c.l.b16 %v5578
        %v5714 = vunpack.c.l.b16 %v5579
        %v5715 = vunpack.c.l.b16 %v5580
        %v5716 = vunpack.c.l.b16 %v5581
        %v5717 = vunpack.c.l.b16 %v5582
        %v5718 = vunpack.c.l.b16 %v5583
        %v5719 = vunpack.c.l.b16 %v5584
        %v5720 = vunpack.c.l.b16 %v5585
        %v5721 = vunpack.c.l.b16 %v5586
        %v5722 = vunpack.c.l.b16 %v5587
        %v5723 = vunpack.c.l.b16 %v5588
        %v5724 = vunpack.c.l.b16 %v5589
        %v5725 = vunpack.c.l.b16 %v5590
        %v5726 = vunpack.c.l.b16 %v5591
        %v5727 = vunpack.c.l.b16 %v5592
        %v5728 = vunpack.c.l.b16 %v5593
        %v5729 = vunpack.c.l.b16 %v5594
        %v5730 = vunpack.c.l.b16 %v5595
        %v5731 = vunpack.c.l.b16 %v5596
        %v5732 = vunpack.c.l.b16 %v5597
        %v5733 = vunpack.c.l.b16 %v5598
        %v5734 = vunpack.c.l.b16 %v5599
        %v5735 = vunpack.c.l.b16 %v5600
        %v5736 = vunpack.c.l.b16 %v5601
        %v5737 = vunpack.c.l.b16 %v5602
        %v5738 = vunpack.c.l.b16 %v5603
        %v5739 = vunpack.c.l.b16 %v5604
        %v5740 = vunpack.c.l.b16 %v5605
        %v5741 = vunpack.c.l.b16 %v5606
        %v5742 = vunpack.c.l.b16 %v5607
        %v5743 = vunpack.c.l.b16 %v5608
        %v5744 = vunpack.c.l.b16 %v5609
        %v5745 = vunpack.c.l.b16 %v5610
        %v5746 = vunpack.c.l.b16 %v5611
        %v5747 = vunpack.c.l.b16 %v5612
        %v5748 = vunpack.c.l.b16 %v5613
        %v5749 = vunpack.c.l.b16 %v5614
        %v5750 = vunpack.c.l.b16 %v5615
        %v5751 = vunpack.c.l.b16 %v5616
        %v5752 = vunpack.c.l.b16 %v5617
        %v5753 = vunpack.c.l.b16 %v5618
        %v5754 = vunpack.c.l.b16 %v5619
        %v5755 = vunpack.c.l.b16 %v5620
        %v5756 = vunpack.c.l.b16 %v5621
        %v5757 = vunpack.c.l.b16 %v5622
        %v5758 = vunpack.c.l.b16 %v5623
        %v5759 = vunpack.c.l.b16 %v5624
        %v5760 = vunpack.c.l.b16 %v5625
        %v5761 = vunpack.c.l.b16 %v5626
        %v5762 = vunpack.c.l.b16 %v5627
        %v5763 = vunpack.c.l.b16 %v5628
        %v5764 = vunpack.c.l.b16 %v5629
        %v5765 = vunpack.c.l.b16 %v5630
        %v5766 = vunpack.c.l.b16 %v5631
        %v5767 = vunpack.c.l.b16 %v5632
        %v5768 = vunpack.c.l.b16 %v5633
        %v5769 = vunpack.c.l.b16 %v5634
        %v5770 = vunpack.c.l.b16 %v5635
        %v5771 = vunpack.c.l.b16 %v5636
        %v5772 = vpack.c.b16 %v5709, %v5708
        %v5773 = vpack.c.b16 %v5711, %v5710
        %v5774 = vpack.c.b16 %v5713, %v5712
        %v5775 = vpack.c.b16 %v5715, %v5714
        %v5776 = vpack.c.b16 %v5717, %v5716
        %v5777 = vpack.c.b16 %v5719, %v5718
        %v5778 = vpack.c.b16 %v5721, %v5720
        %v5779 = vpack.c.b16 %v5723, %v5722
        %v5780 = vpack.c.b16 %v5725, %v5724
        %v5781 = vpack.c.b16 %v5727, %v5726
        %v5782 = vpack.c.b16 %v5729, %v5728
        %v5783 = vpack.c.b16 %v5731, %v5730
        %v5784 = vpack.c.b16 %v5733, %v5732
        %v5785 = vpack.c.b16 %v5735, %v5734
        %v5786 = vpack.c.b16 %v5737, %v5736
        %v5787 = vpack.c.b16 %v5739, %v5738
        %v5788 = vpack.c.b16 %v5741, %v5740
        %v5789 = vpack.c.b16 %v5743, %v5742
        %v5790 = vpack.c.b16 %v5745, %v5744
        %v5791 = vpack.c.b16 %v5747, %v5746
        %v5792 = vpack.c.b16 %v5749, %v5748
        %v5793 = vpack.c.b16 %v5751, %v5750
        %v5794 = vpack.c.b16 %v5753, %v5752
        %v5795 = vpack.c.b16 %v5755, %v5754
        %v5796 = vpack.c.b16 %v5757, %v5756
        %v5797 = vpack.c.b16 %v5759, %v5758
        %v5798 = vpack.c.b16 %v5761, %v5760
        %v5799 = vpack.c.b16 %v5763, %v5762
        %v5800 = vpack.c.b16 %v5765, %v5764
        %v5801 = vpack.c.b16 %v5767, %v5766
        %v5802 = vpack.c.b16 %v5769, %v5768
        %v5803 = vpack.c.b16 %v5771, %v5770
        %5836 = vmatprep.subr.bf16.mxu0 0
        %5837 = vmatpush1.bf16.msra.mxu0 %v5772
        %5838 = vmatprep.subr.bf16.mxu0 0
        %5839 = vmatpush1.bf16.msra.mxu0 %v5773
        %5840 = vmatprep.subr.bf16.mxu0 0
        %5841 = vmatpush1.bf16.msra.mxu0 %v5774
        %5842 = vmatprep.subr.bf16.mxu0 0
        %5843 = vmatpush1.bf16.msra.mxu0 %v5775
        %5844 = vmatprep.subr.bf16.mxu0 0
        %5845 = vmatpush1.bf16.msra.mxu0 %v5776
        %5846 = vmatprep.subr.bf16.mxu0 0
        %5847 = vmatpush1.bf16.msra.mxu0 %v5777
        %5848 = vmatprep.subr.bf16.mxu0 0
        %5849 = vmatpush1.bf16.msra.mxu0 %v5778
        %5850 = vmatprep.subr.bf16.mxu0 0
        %5851 = vmatpush1.bf16.msra.mxu0 %v5779
        %5852 = vmatprep.subr.bf16.mxu0 0
        %5853 = vmatpush1.bf16.msra.mxu0 %v5780
        %5854 = vmatprep.subr.bf16.mxu0 0
        %5855 = vmatpush1.bf16.msra.mxu0 %v5781
        %5856 = vmatprep.subr.bf16.mxu0 0
        %5857 = vmatpush1.bf16.msra.mxu0 %v5782
        %5858 = vmatprep.subr.bf16.mxu0 0
        %5859 = vmatpush1.bf16.msra.mxu0 %v5783
        %5860 = vmatprep.subr.bf16.mxu0 0
        %5861 = vmatpush1.bf16.msra.mxu0 %v5784
        %5862 = vmatprep.subr.bf16.mxu0 0
        %5863 = vmatpush1.bf16.msra.mxu0 %v5785
        %5864 = vmatprep.subr.bf16.mxu0 0
        %5865 = vmatpush1.bf16.msra.mxu0 %v5786
        %5866 = vmatprep.subr.bf16.mxu0 0
        %5867 = vmatpush1.bf16.msra.mxu0 %v5787
        %5868 = vmatprep.mubr.bf16.mxu0 %v5542
        %5869 = vmatmul.mubr.bf16.gmra.mrb[0].mxu0 %v5541
        %v5870 = vpop.f32.mrb[0].mxu0
        %v5871 = vadd.f32 %v5642, %v5870
        %v5872 = vpop.f32.mrb[0].mxu0
        %v5873 = vpop.f32.mrb[0].mxu0
        %v5874 = vadd.f32 %v5642, %v5873
        %v5875 = vpop.f32.mrb[0].mxu0
        %5876 = vmatprep.mubr.bf16.mxu0 %v5546
        %5877 = vmatmul.mubr.bf16.gmra.mrb[0].mxu0 %v5545
        %v5878 = vpop.f32.mrb[0].mxu0
        %v5879 = vadd.f32 %v5642, %v5878
        %v5880 = vpop.f32.mrb[0].mxu0
        %v5881 = vpop.f32.mrb[0].mxu0
        %v5882 = vadd.f32 %v5642, %v5881
        %v5883 = vpop.f32.mrb[0].mxu0
        %5884 = vmatprep.mubr.bf16.mxu0 %v5550
        %5885 = vmatmul.mubr.bf16.gmra.mrb[0].mxu0 %v5549
        %v5886 = vpop.f32.mrb[0].mxu0
        %v5887 = vadd.f32 %v5642, %v5886
        %v5888 = vpop.f32.mrb[0].mxu0
        %v5889 = vpop.f32.mrb[0].mxu0
        %v5890 = vadd.f32 %v5642, %v5889
        %v5891 = vpop.f32.mrb[0].mxu0
        %5892 = vmatprep.mubr.bf16.mxu0 %v5554
        %5893 = vmatmul.mubr.bf16.gmra.mrb[0].mxu0 %v5553
        %v5894 = vpop.f32.mrb[0].mxu0
        %v5895 = vadd.f32 %v5642, %v5894
        %v5896 = vpop.f32.mrb[0].mxu0
        %v5897 = vpop.f32.mrb[0].mxu0
        %v5898 = vadd.f32 %v5642, %v5897
        %v5899 = vpop.f32.mrb[0].mxu0
        %5900 = vmatprep.mubr.bf16.mxu0 %v5558
        %5901 = vmatmul.mubr.bf16.gmra.mrb[0].mxu0 %v5557
        %v5902 = vpop.f32.mrb[0].mxu0
        %v5903 = vadd.f32 %v5642, %v5902
        %v5904 = vpop.f32.mrb[0].mxu0
        %v5905 = vpop.f32.mrb[0].mxu0
        %v5906 = vadd.f32 %v5642, %v5905
        %v5907 = vpop.f32.mrb[0].mxu0
        %5908 = vmatprep.mubr.bf16.mxu0 %v5562
        %5909 = vmatmul.mubr.bf16.gmra.mrb[0].mxu0 %v5561
        %v5910 = vpop.f32.mrb[0].mxu0
        %v5911 = vadd.f32 %v5642, %v5910
        %v5912 = vpop.f32.mrb[0].mxu0
        %v5913 = vpop.f32.mrb[0].mxu0
        %v5914 = vadd.f32 %v5642, %v5913
        %v5915 = vpop.f32.mrb[0].mxu0
        %5916 = vmatprep.mubr.bf16.mxu0 %v5566
        %5917 = vmatmul.mubr.bf16.gmra.mrb[0].mxu0 %v5565
        %v5918 = vpop.f32.mrb[0].mxu0
        %v5919 = vadd.f32 %v5642, %v5918
        %v5920 = vpop.f32.mrb[0].mxu0
        %v5921 = vpop.f32.mrb[0].mxu0
        %v5922 = vadd.f32 %v5642, %v5921
        %v5923 = vpop.f32.mrb[0].mxu0
        %5924 = vmatprep.mubr.bf16.mxu0 %v5570
        %5925 = vmatmul.mubr.bf16.gmra.mrb[0].mxu0 %v5569
        %v5926 = vpop.f32.mrb[0].mxu0
        %v5927 = vadd.f32 %v5642, %v5926
        %v5928 = vpop.f32.mrb[0].mxu0
        %v5929 = vpop.f32.mrb[0].mxu0
        %v5930 = vadd.f32 %v5642, %v5929
        %v5931 = vpop.f32.mrb[0].mxu0
        %5932 = vdwg.mxu0
        %5933 = vmatprep.subr.bf16.mxu0 0
        %5934 = vmatpush1.bf16.msra.mxu0 %v5788
        %5935 = vmatprep.subr.bf16.mxu0 0
        %5936 = vmatpush1.bf16.msra.mxu0 %v5789
        %5937 = vmatprep.subr.bf16.mxu0 0
        %5938 = vmatpush1.bf16.msra.mxu0 %v5790
        %5939 = vmatprep.subr.bf16.mxu0 0
        %5940 = vmatpush1.bf16.msra.mxu0 %v5791
        %5941 = vmatprep.subr.bf16.mxu0 0
        %5942 = vmatpush1.bf16.msra.mxu0 %v5792
        %5943 = vmatprep.subr.bf16.mxu0 0
        %5944 = vmatpush1.bf16.msra.mxu0 %v5793
        %5945 = vmatprep.subr.bf16.mxu0 0
        %5946 = vmatpush1.bf16.msra.mxu0 %v5794
        %5947 = vmatprep.subr.bf16.mxu0 0
        %5948 = vmatpush1.bf16.msra.mxu0 %v5795
        %5949 = vmatprep.subr.bf16.mxu0 0
        %5950 = vmatpush1.bf16.msra.mxu0 %v5796
        %5951 = vmatprep.subr.bf16.mxu0 0
        %5952 = vmatpush1.bf16.msra.mxu0 %v5797
        %5953 = vmatprep.subr.bf16.mxu0 0
        %5954 = vmatpush1.bf16.msra.mxu0 %v5798
        %5955 = vmatprep.subr.bf16.mxu0 0
        %5956 = vmatpush1.bf16.msra.mxu0 %v5799
        %5957 = vmatprep.subr.bf16.mxu0 0
        %5958 = vmatpush1.bf16.msra.mxu0 %v5800
        %5959 = vmatprep.subr.bf16.mxu0 0
        %5960 = vmatpush1.bf16.msra.mxu0 %v5801
        %5961 = vmatprep.subr.bf16.mxu0 0
        %5962 = vmatpush1.bf16.msra.mxu0 %v5802
        %5963 = vmatprep.subr.bf16.mxu0 0
        %5964 = vmatpush1.bf16.msra.mxu0 %v5803
        %5965 = vmatprep.mubr.bf16.mxu0 %v5544
        %5966 = vmatmul.mubr.bf16.gmra.mrb[0].mxu0 %v5543
        %v5967 = vpop.f32.mrb[0].mxu0
        %v5968 = vadd.f32 %v5871, %v5967
        %v5969 = vpop.f32.mrb[0].mxu0
        %v5970 = vpop.f32.mrb[0].mxu0
        %v5971 = vadd.f32 %v5874, %v5970
        %v5972 = vpop.f32.mrb[0].mxu0
        %5973 = vmatprep.mubr.bf16.mxu0 %v5548
        %5974 = vmatmul.mubr.bf16.gmra.mrb[0].mxu0 %v5547
        %v5975 = vpop.f32.mrb[0].mxu0
        %v5976 = vadd.f32 %v5879, %v5975
        %v5977 = vpop.f32.mrb[0].mxu0
        %v5978 = vpop.f32.mrb[0].mxu0
        %v5979 = vadd.f32 %v5882, %v5978
        %v5980 = vpop.f32.mrb[0].mxu0
        %5981 = vmatprep.mubr.bf16.mxu0 %v5552
        %5982 = vmatmul.mubr.bf16.gmra.mrb[0].mxu0 %v5551
        %v5983 = vpop.f32.mrb[0].mxu0
        %v5984 = vadd.f32 %v5887, %v5983
        %v5985 = vpop.f32.mrb[0].mxu0
        %v5986 = vpop.f32.mrb[0].mxu0
        %v5987 = vadd.f32 %v5890, %v5986
        %v5988 = vpop.f32.mrb[0].mxu0
        %5989 = vmatprep.mubr.bf16.mxu0 %v5556
        %5990 = vmatmul.mubr.bf16.gmra.mrb[0].mxu0 %v5555
        %v5991 = vpop.f32.mrb[0].mxu0
        %v5992 = vadd.f32 %v5895, %v5991
        %v5993 = vpop.f32.mrb[0].mxu0
        %v5994 = vpop.f32.mrb[0].mxu0
        %v5995 = vadd.f32 %v5898, %v5994
        %v5996 = vpop.f32.mrb[0].mxu0
        %5997 = vmatprep.mubr.bf16.mxu0 %v5560
        %5998 = vmatmul.mubr.bf16.gmra.mrb[0].mxu0 %v5559
        %v5999 = vpop.f32.mrb[0].mxu0
        %v6000 = vadd.f32 %v5903, %v5999
        %v6001 = vpop.f32.mrb[0].mxu0
        %v6002 = vpop.f32.mrb[0].mxu0
        %v6003 = vadd.f32 %v5906, %v6002
        %v6004 = vpop.f32.mrb[0].mxu0
        %6005 = vmatprep.mubr.bf16.mxu0 %v5564
        %6006 = vmatmul.mubr.bf16.gmra.mrb[0].mxu0 %v5563
        %v6007 = vpop.f32.mrb[0].mxu0
        %v6008 = vadd.f32 %v5911, %v6007
        %v6009 = vpop.f32.mrb[0].mxu0
        %v6010 = vpop.f32.mrb[0].mxu0
        %v6011 = vadd.f32 %v5914, %v6010
        %v6012 = vpop.f32.mrb[0].mxu0
        %6013 = vmatprep.mubr.bf16.mxu0 %v5568
        %6014 = vmatmul.mubr.bf16.gmra.mrb[0].mxu0 %v5567
        %v6015 = vpop.f32.mrb[0].mxu0
        %v6016 = vadd.f32 %v5919, %v6015
        %v6017 = vpop.f32.mrb[0].mxu0
        %v6018 = vpop.f32.mrb[0].mxu0
        %v6019 = vadd.f32 %v5922, %v6018
        %v6020 = vpop.f32.mrb[0].mxu0
        %6021 = vmatprep.mubr.bf16.mxu0 %v5572
        %6022 = vmatmul.mubr.bf16.gmra.mrb[0].mxu0 %v5571
        %v6023 = vpop.f32.mrb[0].mxu0
        %v6024 = vadd.f32 %v5927, %v6023
        %v6025 = vpop.f32.mrb[0].mxu0
        %v6026 = vpop.f32.mrb[0].mxu0
        %v6027 = vadd.f32 %v5930, %v6026
        %v6028 = vpop.f32.mrb[0].mxu0
        %6029 = vdwg.mxu0
        %6030 = vst [vmem:[%s244] sm:$0xff] %v5968
        %6031 = vst [vmem:[%s244 + $0x8] sm:$0xff] %v5971
        %6032 = vst [vmem:[%s244 + $0x10] sm:$0xff] %v5976
        %6033 = vst [vmem:[%s244 + $0x18] sm:$0xff] %v5979
        %6034 = vst [vmem:[%s244 + $0x20] sm:$0xff] %v5984
        %6035 = vst [vmem:[%s244 + $0x28] sm:$0xff] %v5987
        %6036 = vst [vmem:[%s244 + $0x30] sm:$0xff] %v5992
        %6037 = vst [vmem:[%s244 + $0x38] sm:$0xff] %v5995
        %6038 = vst [vmem:[%s244 + $0x40] sm:$0xff] %v6000
        %6039 = vst [vmem:[%s244 + $0x48] sm:$0xff] %v6003
        %6040 = vst [vmem:[%s244 + $0x50] sm:$0xff] %v6008
        %6041 = vst [vmem:[%s244 + $0x58] sm:$0xff] %v6011
        %6042 = vst [vmem:[%s244 + $0x60] sm:$0xff] %v6016
        %6043 = vst [vmem:[%s244 + $0x68] sm:$0xff] %v6019
        %6044 = vst [vmem:[%s244 + $0x70] sm:$0xff] %v6024
        %6045 = vst [vmem:[%s244 + $0x78] sm:$0xff] %v6027
        %s6046 = sand.u32 %s119, 1
        %s6047 = scalar_lea.sflag [#allocation5], %s6046
        %s6048 = sand.u32 %s119, 1
        %s6049 = smul.addr %s6048, 128
        %s6050 = scalar_lea.vmem [#allocation9], %s6049
        // Predicated region
        $region49: #{tpu_custom_call.1} parent=35 // pred_check
          %p6051 = pneg %p129
        $region50: #{tpu_custom_call.1} parent=35 // pred_check_branch
          %6053 = sbr.rel (%p6051) target = $region52
        $region51: #{tpu_custom_call.1} parent=35 // pred_region
          %s6055 = ssub.s32 2048, 2048
          %6056 = vsyncadd %s6047, %s6055
          %s6057 = smul.addr %s22, 16
          %s6058 = smul.addr %s6057, 128
          %s6059 = scalar_lea.hbm %s4, %s6058
          %s6060 = sshll.u32 %s6050, 4
          %s6061 = int_to_ptr.vmem [resolvable:$true] %s6060
          %6066 = dma.vmem_to_hbm [thread:$0]  %s6061, 2048, %s6059, %s6047, 128, 128, 8
        $region52: #{tpu_custom_call.1} parent=35 // pred_fallthru
          _
      $region36: #{tpu_custom_call.1} parent=5 // pred_fallthru
        _
      %p6067 = scmp.le.s32.totalorder 2, %s17
      // Predicated region
      $region53: #{tpu_custom_call.1} parent=5 // pred_check
        %p6068 = pneg %p6067
      $region54: #{tpu_custom_call.1} parent=5 // pred_check_branch
        %6070 = sbr.rel (%p6068) target = $region56
      $region55: #{tpu_custom_call.1} parent=5 // pred_region
        %s6071 = ssub.s32 %s17, 2
        // Predicated region
        $region57: #{tpu_custom_call.1} parent=55 // pred_check
          %p6072 = pneg %p135
        $region58: #{tpu_custom_call.1} parent=55 // pred_check_branch
          %6074 = sbr.rel (%p6072) target = $region60
        $region59: #{tpu_custom_call.1} parent=55 // pred_region
          %s6075 = sand.u32 %s120, 1
          %s6076 = scalar_lea.sflag [#allocation5], %s6075
          %s6077 = sand.u32 %s120, 1
          %s6078 = smul.addr %s6077, 128
          %s6079 = scalar_lea.vmem [#allocation9], %s6078
          %6080 = dma.done %s6076, 2048
        $region60: #{tpu_custom_call.1} parent=55 // pred_fallthru
          _
      $region56: #{tpu_custom_call.1} parent=5 // pred_fallthru
        _
    $region6: #{tpu_custom_call.1} parent=1 // loop_footer
      %s21 = sadd.s32 1, %s17
    $region7: #{tpu_custom_call.1} parent=1 // loop_footer_branch
      %16 = sbr.rel target = $region3
    $region8: #{tpu_custom_call.1} parent=1 // loop_exit
      _
    %6081 = vsyncpa [#allocation4], 1
    %s6082 = scalar_lea.sflag [#allocation4], 1
    %6083 = vsyncpa %s6082, 1
    %6084 = vsyncpa [#allocation7], 1
    %6085 = vsyncpa [#allocation5], 1
    %s6086 = scalar_lea.sflag [#allocation5], 1
    %6087 = vsyncpa %s6086, 1

</llo_original>
